<compile_context>
chip_gen: v6e
topology: v6e:2x2x1
jax: 0.10.0
libtpu: 0.0.40
codegen_flags: <defaults>
</compile_context>

<pallas_src>
import math
import numpy as np
import jax
import jax.numpy as jnp
from jax.experimental import pallas as pl
from jax.experimental.pallas import tpu as pltpu  # noqa: F401  (kept for TPU-specific tuning hooks)

# ----------------------------- model config -----------------------------
B = 2              # batch
C = 3              # image channels
IMG = 16           # image H = W
PATCH = 8          # patch size -> 2x2 = 4 patches
N_PATCH = (IMG // PATCH) ** 2
SEQ = N_PATCH + 1  # +CLS token
TOT = B * SEQ      # all token rows, flattened
HIDDEN = 32        # ViT hidden size == feature_dim of the cls head
N_HEADS = 4
HEAD_DIM = HIDDEN // N_HEADS
MLP_DIM = 4 * HIDDEN
N_LAYERS = 2
NUM_CLASSES = 10
LN_EPS = 1e-12
LEAKY_SLOPE = 0.01


# ----------------------------- in-kernel helpers -----------------------------
def _layernorm(x, gamma, beta):
    mu = jnp.mean(x, axis=-1, keepdims=True)
    var = jnp.mean((x - mu) ** 2, axis=-1, keepdims=True)
    return (x - mu) * jax.lax.rsqrt(var + LN_EPS) * gamma + beta


def _gelu(x):
    # tanh-approximation of GELU (HF ViT default is exact erf GELU; diff ~1e-3)
    return 0.5 * x * (1.0 + jnp.tanh(0.7978845608028654 * (x + 0.044715 * x * x * x)))


def _leaky_relu(x):
    return jnp.where(x > 0, x, LEAKY_SLOPE * x)


# ----------------------------- the single fused kernel -----------------------------
def fused_vit_kernel(patches_ref, mask_ref, scatter_ref, poscls_ref, select_ref,
                     pw_ref, pb_ref, *rest):
    o_ref = rest[-1]
    layer_refs = rest[:N_LAYERS * 12]
    (gf_ref, bf_ref, wp_ref, bp_ref,
     f1w_ref, f1b_ref, f2w_ref, f2b_ref, f3w_ref, f3b_ref) = rest[N_LAYERS * 12:-1]

    # --- patch embedding (patch-conv as one matmul) ---
    emb = jnp.dot(patches_ref[...], pw_ref[...],
                  preferred_element_type=jnp.float32) + pb_ref[...]          # (B*N_PATCH, H)

    # --- insert CLS rows + add positional embedding (scatter matmul + add) ---
    h = jnp.dot(scatter_ref[...], emb,
                preferred_element_type=jnp.float32) + poscls_ref[...]        # (TOT, H)

    mask = mask_ref[...]                                                     # (TOT, TOT) additive
    scale = 1.0 / math.sqrt(HEAD_DIM)

    # --- transformer encoder layers (pre-LN) ---
    for l in range(N_LAYERS):
        (g1, be1, wqkv, bqkv, wo, bo, g2, be2, w1, b1, w2, b2) = \
            layer_refs[l * 12:(l + 1) * 12]

        x = _layernorm(h, g1[...], be1[...])
        qkv = jnp.dot(x, wqkv[...], preferred_element_type=jnp.float32) + bqkv[...]  # (TOT, 3H)
        wo_v = wo[...]

        attn = None
        for hd in range(N_HEADS):                      # static per-head loop, all in registers
            lo = hd * HEAD_DIM
            qh = qkv[:, lo:lo + HEAD_DIM]
            kh = qkv[:, HIDDEN + lo:HIDDEN + lo + HEAD_DIM]
            vh = qkv[:, 2 * HIDDEN + lo:2 * HIDDEN + lo + HEAD_DIM]
            s = jnp.dot(qh, kh.T, preferred_element_type=jnp.float32) * scale + mask
            s = s - jnp.max(s, axis=-1, keepdims=True)
            p = jnp.exp(s)
            p = p * pl.reciprocal(jnp.sum(p, axis=-1, keepdims=True), approx=True)
            ctx = jnp.dot(p, vh, preferred_element_type=jnp.float32)         # (TOT, HEAD_DIM)
            contrib = jnp.dot(ctx, wo_v[lo:lo + HEAD_DIM, :],
                              preferred_element_type=jnp.float32)            # (TOT, H)
            attn = contrib if attn is None else attn + contrib
        h1 = h + attn + bo[...]

        y = _layernorm(h1, g2[...], be2[...])
        y = _gelu(jnp.dot(y, w1[...], preferred_element_type=jnp.float32) + b1[...])
        y = jnp.dot(y, w2[...], preferred_element_type=jnp.float32) + b2[...]
        h = h1 + y

    # --- CLS-row extraction (select matmul), final LN (per-token => exact on CLS only) ---
    cls_rows = jnp.dot(select_ref[...], h, preferred_element_type=jnp.float32)  # (B, H)
    z = _layernorm(cls_rows, gf_ref[...], bf_ref[...])
    # pooler_output = tanh(dense(cls_token))
    z = jnp.tanh(jnp.dot(z, wp_ref[...], preferred_element_type=jnp.float32) + bp_ref[...])
    # nn.Flatten() is a no-op on (B, feature_dim)
    z = _leaky_relu(jnp.dot(z, f1w_ref[...], preferred_element_type=jnp.float32) + f1b_ref[...])
    # TODO(synk): nn.Dropout layers run in eval mode (identity) -- not applied.
    z = _leaky_relu(jnp.dot(z, f2w_ref[...], preferred_element_type=jnp.float32) + f2b_ref[...])
    o_ref[...] = jnp.dot(z, f3w_ref[...], preferred_element_type=jnp.float32) + f3b_ref[...]


# ----------------------------- parameter init (deterministic, synthetic) -----------------------------
def init_params(key):
    keys = iter(jax.random.split(key, 64))

    def w(shape, scale=0.02):
        return (scale * jax.random.normal(next(keys), shape)).astype(jnp.float32)

    cpp = C * PATCH * PATCH
    cls = w((1, HIDDEN))
    pos = w((SEQ, HIDDEN))
    # pos embedding tiled over the batch, with the CLS token folded into the CLS rows
    pos_cls = jnp.tile(pos, (B, 1)).at[jnp.arange(B) * SEQ].add(cls[0])

    # constant helper matrices (computed once; passed as kernel inputs -> pure matmuls in-kernel)
    scat = np.zeros((TOT, B * N_PATCH), np.float32)      # scatter patch rows into token rows
    sel = np.zeros((B, TOT), np.float32)                 # select CLS rows
    for b in range(B):
        sel[b, b * SEQ] = 1.0
        for p in range(N_PATCH):
            scat[b * SEQ + 1 + p, b * N_PATCH + p] = 1.0
    ids = np.arange(TOT) // SEQ
    mask = np.where(ids[:, None] == ids[None, :], 0.0, -1e30).astype(np.float32)

    params = {
        "patch_w": w((cpp, HIDDEN)),
        "patch_b": w((1, HIDDEN)),
        "pos_cls": pos_cls,
        "scatter": jnp.asarray(scat),
        "select_cls": jnp.asarray(sel),
        "attn_mask": jnp.asarray(mask),
        "ln_f_g": jnp.ones((1, HIDDEN), jnp.float32),
        "ln_f_b": jnp.zeros((1, HIDDEN), jnp.float32),
        "pool_w": w((HIDDEN, HIDDEN)), "pool_b": w((1, HIDDEN)),
        "fc1_w": w((HIDDEN, 150)), "fc1_b": w((1, 150)),
        "fc2_w": w((150, 50)),     "fc2_b": w((1, 50)),
        "fc3_w": w((50, NUM_CLASSES)), "fc3_b": w((1, NUM_CLASSES)),
    }
    layers = []
    for _ in range(N_LAYERS):
        layers.append([
            jnp.ones((1, HIDDEN), jnp.float32), jnp.zeros((1, HIDDEN), jnp.float32),  # LN1
            w((HIDDEN, 3 * HIDDEN)), w((1, 3 * HIDDEN)),   # fused Wqkv, bqkv
            w((HIDDEN, HIDDEN)), w((1, HIDDEN)),           # Wo, bo
            jnp.ones((1, HIDDEN), jnp.float32), jnp.zeros((1, HIDDEN), jnp.float32),  # LN2
            w((HIDDEN, MLP_DIM)), w((1, MLP_DIM)),         # MLP fc1
            w((MLP_DIM, HIDDEN)), w((1, HIDDEN)),          # MLP fc2
        ])
    params["layers"] = layers
    return params


# ----------------------------- full forward (single pallas_call) -----------------------------
def vit_cls_head_forward(x, params):
    # patchify NCHW -> (B*N_PATCH, C*P*P), channel-major inside each patch (Conv2d order)
    bx, cx, hh, ww = x.shape
    nh, nw = hh // PATCH, ww // PATCH
    p = x.reshape(bx, cx, nh, PATCH, nw, PATCH)
    p = p.transpose(0, 2, 4, 1, 3, 5).reshape(bx * nh * nw, cx * PATCH * PATCH)

    layer_flat = [t for layer in params["layers"] for t in layer]
    return pl.pallas_call(
        fused_vit_kernel,
        out_shape=jax.ShapeDtypeStruct((bx, NUM_CLASSES), jnp.float32),
    )(p, params["attn_mask"], params["scatter"], params["pos_cls"], params["select_cls"],
      params["patch_w"], params["patch_b"],
      *layer_flat,
      params["ln_f_g"], params["ln_f_b"], params["pool_w"], params["pool_b"],
      params["fc1_w"], params["fc1_b"], params["fc2_w"], params["fc2_b"],
      params["fc3_w"], params["fc3_b"])


if __name__ == "__main__":
    key = jax.random.PRNGKey(0)
    k_params, k_x = jax.random.split(key)
    params = init_params(k_params)
    x = jax.random.normal(k_x, (B, C, IMG, IMG), dtype=jnp.float32)   # NCHW like PyTorch

    logits = vit_cls_head_forward(x, params)
    logits = jax.block_until_ready(logits)
    assert logits.shape == (B, NUM_CLASSES)
    assert bool(jnp.all(jnp.isfinite(logits)))
    print("KERNEL_OK")
</pallas_src>

<mosaic_0001>
module attributes {stable_mosaic.version = 11 : i64} {
  func.func @fused_vit_kernel(%arg0: memref<8x192xf32, #tpu.memory_space<vmem>>, %arg1: memref<10x10xf32, #tpu.memory_space<vmem>>, %arg2: memref<10x8xf32, #tpu.memory_space<vmem>>, %arg3: memref<10x32xf32, #tpu.memory_space<vmem>>, %arg4: memref<2x10xf32, #tpu.memory_space<vmem>>, %arg5: memref<192x32xf32, #tpu.memory_space<vmem>>, %arg6: memref<1x32xf32, #tpu.memory_space<vmem>>, %arg7: memref<1x32xf32, #tpu.memory_space<vmem>>, %arg8: memref<1x32xf32, #tpu.memory_space<vmem>>, %arg9: memref<32x96xf32, #tpu.memory_space<vmem>>, %arg10: memref<1x96xf32, #tpu.memory_space<vmem>>, %arg11: memref<32x32xf32, #tpu.memory_space<vmem>>, %arg12: memref<1x32xf32, #tpu.memory_space<vmem>>, %arg13: memref<1x32xf32, #tpu.memory_space<vmem>>, %arg14: memref<1x32xf32, #tpu.memory_space<vmem>>, %arg15: memref<32x128xf32, #tpu.memory_space<vmem>>, %arg16: memref<1x128xf32, #tpu.memory_space<vmem>>, %arg17: memref<128x32xf32, #tpu.memory_space<vmem>>, %arg18: memref<1x32xf32, #tpu.memory_space<vmem>>, %arg19: memref<1x32xf32, #tpu.memory_space<vmem>>, %arg20: memref<1x32xf32, #tpu.memory_space<vmem>>, %arg21: memref<32x96xf32, #tpu.memory_space<vmem>>, %arg22: memref<1x96xf32, #tpu.memory_space<vmem>>, %arg23: memref<32x32xf32, #tpu.memory_space<vmem>>, %arg24: memref<1x32xf32, #tpu.memory_space<vmem>>, %arg25: memref<1x32xf32, #tpu.memory_space<vmem>>, %arg26: memref<1x32xf32, #tpu.memory_space<vmem>>, %arg27: memref<32x128xf32, #tpu.memory_space<vmem>>, %arg28: memref<1x128xf32, #tpu.memory_space<vmem>>, %arg29: memref<128x32xf32, #tpu.memory_space<vmem>>, %arg30: memref<1x32xf32, #tpu.memory_space<vmem>>, %arg31: memref<1x32xf32, #tpu.memory_space<vmem>>, %arg32: memref<1x32xf32, #tpu.memory_space<vmem>>, %arg33: memref<32x32xf32, #tpu.memory_space<vmem>>, %arg34: memref<1x32xf32, #tpu.memory_space<vmem>>, %arg35: memref<32x150xf32, #tpu.memory_space<vmem>>, %arg36: memref<1x150xf32, #tpu.memory_space<vmem>>, %arg37: memref<150x50xf32, #tpu.memory_space<vmem>>, %arg38: memref<1x50xf32, #tpu.memory_space<vmem>>, %arg39: memref<50x10xf32, #tpu.memory_space<vmem>>, %arg40: memref<1x10xf32, #tpu.memory_space<vmem>>, %arg41: memref<2x10xf32, #tpu.memory_space<vmem>>) attributes {dimension_semantics = [], scalar_prefetch = 0 : i64, scratch_operands = 0 : i64, tpu.core_type = #tpu.core_type<tc>} {
    %c0 = arith.constant 0 : index
    %c0_0 = arith.constant 0 : index
    %0 = vector.load %arg0[%c0, %c0_0] : memref<8x192xf32, #tpu.memory_space<vmem>>, vector<8x192xf32>
    %c0_1 = arith.constant 0 : index
    %c0_2 = arith.constant 0 : index
    %1 = vector.load %arg5[%c0_1, %c0_2] : memref<192x32xf32, #tpu.memory_space<vmem>>, vector<192x32xf32>
    %cst = arith.constant dense<0.000000e+00> : vector<8x32xf32>
    %2 = tpu.matmul %0, %1, %cst {dimension_numbers = #tpu.dot_dimension_numbers<[1], [0], [0], [1], [0, 0, 1, 1], [], []>} : vector<8x192xf32>, vector<192x32xf32>, vector<8x32xf32> -> vector<8x32xf32>
    %c0_3 = arith.constant 0 : index
    %c0_4 = arith.constant 0 : index
    %3 = vector.load %arg6[%c0_3, %c0_4] : memref<1x32xf32, #tpu.memory_space<vmem>>, vector<1x32xf32>
    %4 = vector.broadcast %3 : vector<1x32xf32> to vector<8x32xf32>
    %5 = arith.addf %2, %4 : vector<8x32xf32>
    %c0_5 = arith.constant 0 : index
    %c0_6 = arith.constant 0 : index
    %6 = vector.load %arg2[%c0_5, %c0_6] : memref<10x8xf32, #tpu.memory_space<vmem>>, vector<10x8xf32>
    %cst_7 = arith.constant dense<0.000000e+00> : vector<10x32xf32>
    %7 = tpu.matmul %6, %5, %cst_7 {dimension_numbers = #tpu.dot_dimension_numbers<[1], [0], [0], [1], [0, 0, 1, 1], [], []>} : vector<10x8xf32>, vector<8x32xf32>, vector<10x32xf32> -> vector<10x32xf32>
    %c0_8 = arith.constant 0 : index
    %c0_9 = arith.constant 0 : index
    %8 = vector.load %arg3[%c0_8, %c0_9] : memref<10x32xf32, #tpu.memory_space<vmem>>, vector<10x32xf32>
    %9 = arith.addf %7, %8 : vector<10x32xf32>
    %c0_10 = arith.constant 0 : index
    %c0_11 = arith.constant 0 : index
    %10 = vector.load %arg1[%c0_10, %c0_11] : memref<10x10xf32, #tpu.memory_space<vmem>>, vector<10x10xf32>
    %c0_12 = arith.constant 0 : index
    %c0_13 = arith.constant 0 : index
    %11 = vector.load %arg7[%c0_12, %c0_13] : memref<1x32xf32, #tpu.memory_space<vmem>>, vector<1x32xf32>
    %c0_14 = arith.constant 0 : index
    %c0_15 = arith.constant 0 : index
    %12 = vector.load %arg8[%c0_14, %c0_15] : memref<1x32xf32, #tpu.memory_space<vmem>>, vector<1x32xf32>
    %cst_16 = arith.constant dense<0.000000e+00> : vector<10xf32>
    %13 = vector.multi_reduction <add>, %9, %cst_16 [1] : vector<10x32xf32> to vector<10xf32>
    %14 = vector.shape_cast %13 : vector<10xf32> to vector<10x1xf32>
    %cst_17 = arith.constant 3.200000e+01 : f32
    %15 = vector.broadcast %cst_17 : f32 to vector<10x1xf32>
    %16 = arith.divf %14, %15 : vector<10x1xf32>
    %17 = vector.broadcast %16 : vector<10x1xf32> to vector<10x32xf32>
    %18 = arith.subf %9, %17 : vector<10x32xf32>
    %19 = arith.mulf %18, %18 : vector<10x32xf32>
    %cst_18 = arith.constant dense<0.000000e+00> : vector<10xf32>
    %20 = vector.multi_reduction <add>, %19, %cst_18 [1] : vector<10x32xf32> to vector<10xf32>
    %21 = vector.shape_cast %20 : vector<10xf32> to vector<10x1xf32>
    %cst_19 = arith.constant 3.200000e+01 : f32
    %22 = vector.broadcast %cst_19 : f32 to vector<10x1xf32>
    %23 = arith.divf %21, %22 : vector<10x1xf32>
    %24 = vector.broadcast %16 : vector<10x1xf32> to vector<10x32xf32>
    %25 = arith.subf %9, %24 : vector<10x32xf32>
    %cst_20 = arith.constant 9.99999996E-13 : f32
    %26 = vector.broadcast %cst_20 : f32 to vector<10x1xf32>
    %27 = arith.addf %23, %26 : vector<10x1xf32>
    %28 = math.rsqrt %27 : vector<10x1xf32>
    %29 = vector.broadcast %28 : vector<10x1xf32> to vector<10x32xf32>
    %30 = arith.mulf %25, %29 : vector<10x32xf32>
    %31 = vector.broadcast %11 : vector<1x32xf32> to vector<10x32xf32>
    %32 = arith.mulf %30, %31 : vector<10x32xf32>
    %33 = vector.broadcast %12 : vector<1x32xf32> to vector<10x32xf32>
    %34 = arith.addf %32, %33 : vector<10x32xf32>
    %c0_21 = arith.constant 0 : index
    %c0_22 = arith.constant 0 : index
    %35 = vector.load %arg9[%c0_21, %c0_22] : memref<32x96xf32, #tpu.memory_space<vmem>>, vector<32x96xf32>
    %cst_23 = arith.constant dense<0.000000e+00> : vector<10x96xf32>
    %36 = tpu.matmul %34, %35, %cst_23 {dimension_numbers = #tpu.dot_dimension_numbers<[1], [0], [0], [1], [0, 0, 1, 1], [], []>} : vector<10x32xf32>, vector<32x96xf32>, vector<10x96xf32> -> vector<10x96xf32>
    %c0_24 = arith.constant 0 : index
    %c0_25 = arith.constant 0 : index
    %37 = vector.load %arg10[%c0_24, %c0_25] : memref<1x96xf32, #tpu.memory_space<vmem>>, vector<1x96xf32>
    %38 = vector.broadcast %37 : vector<1x96xf32> to vector<10x96xf32>
    %39 = arith.addf %36, %38 : vector<10x96xf32>
    %c0_26 = arith.constant 0 : index
    %c0_27 = arith.constant 0 : index
    %40 = vector.load %arg11[%c0_26, %c0_27] : memref<32x32xf32, #tpu.memory_space<vmem>>, vector<32x32xf32>
    %41 = vector.extract_strided_slice %39 {offsets = [0, 0], sizes = [10, 8], strides = [1, 1]} : vector<10x96xf32> to vector<10x8xf32>
    %42 = vector.extract_strided_slice %39 {offsets = [0, 32], sizes = [10, 8], strides = [1, 1]} : vector<10x96xf32> to vector<10x8xf32>
    %43 = vector.extract_strided_slice %39 {offsets = [0, 64], sizes = [10, 8], strides = [1, 1]} : vector<10x96xf32> to vector<10x8xf32>
    %44 = tpu.transpose %42, [1, 0] : vector<10x8xf32> -> vector<8x10xf32>
    %cst_28 = arith.constant dense<0.000000e+00> : vector<10x10xf32>
    %45 = tpu.matmul %41, %44, %cst_28 {dimension_numbers = #tpu.dot_dimension_numbers<[1], [0], [0], [1], [0, 0, 1, 1], [], []>} : vector<10x8xf32>, vector<8x10xf32>, vector<10x10xf32> -> vector<10x10xf32>
    %cst_29 = arith.constant 0.353553385 : f32
    %46 = vector.broadcast %cst_29 : f32 to vector<10x10xf32>
    %47 = arith.mulf %45, %46 : vector<10x10xf32>
    %48 = arith.addf %47, %10 : vector<10x10xf32>
    %cst_30 = arith.constant dense<0xFF800000> : vector<10xf32>
    %49 = vector.multi_reduction <maximumf>, %48, %cst_30 [1] : vector<10x10xf32> to vector<10xf32>
    %50 = vector.shape_cast %49 : vector<10xf32> to vector<10x1xf32>
    %51 = vector.broadcast %50 : vector<10x1xf32> to vector<10x10xf32>
    %52 = arith.subf %48, %51 : vector<10x10xf32>
    %53 = math.exp %52 : vector<10x10xf32>
    %cst_31 = arith.constant dense<0.000000e+00> : vector<10xf32>
    %54 = vector.multi_reduction <add>, %53, %cst_31 [1] : vector<10x10xf32> to vector<10xf32>
    %55 = vector.shape_cast %54 : vector<10xf32> to vector<10x1xf32>
    %56 = tpu.reciprocal %55 {approx = true} : vector<10x1xf32> -> vector<10x1xf32>
    %57 = vector.broadcast %56 : vector<10x1xf32> to vector<10x10xf32>
    %58 = arith.mulf %53, %57 : vector<10x10xf32>
    %cst_32 = arith.constant dense<0.000000e+00> : vector<10x8xf32>
    %59 = tpu.matmul %58, %43, %cst_32 {dimension_numbers = #tpu.dot_dimension_numbers<[1], [0], [0], [1], [0, 0, 1, 1], [], []>} : vector<10x10xf32>, vector<10x8xf32>, vector<10x8xf32> -> vector<10x8xf32>
    %60 = vector.extract_strided_slice %40 {offsets = [0, 0], sizes = [8, 32], strides = [1, 1]} : vector<32x32xf32> to vector<8x32xf32>
    %cst_33 = arith.constant dense<0.000000e+00> : vector<10x32xf32>
    %61 = tpu.matmul %59, %60, %cst_33 {dimension_numbers = #tpu.dot_dimension_numbers<[1], [0], [0], [1], [0, 0, 1, 1], [], []>} : vector<10x8xf32>, vector<8x32xf32>, vector<10x32xf32> -> vector<10x32xf32>
    %62 = vector.extract_strided_slice %39 {offsets = [0, 8], sizes = [10, 8], strides = [1, 1]} : vector<10x96xf32> to vector<10x8xf32>
    %63 = vector.extract_strided_slice %39 {offsets = [0, 40], sizes = [10, 8], strides = [1, 1]} : vector<10x96xf32> to vector<10x8xf32>
    %64 = vector.extract_strided_slice %39 {offsets = [0, 72], sizes = [10, 8], strides = [1, 1]} : vector<10x96xf32> to vector<10x8xf32>
    %65 = tpu.transpose %63, [1, 0] : vector<10x8xf32> -> vector<8x10xf32>
    %cst_34 = arith.constant dense<0.000000e+00> : vector<10x10xf32>
    %66 = tpu.matmul %62, %65, %cst_34 {dimension_numbers = #tpu.dot_dimension_numbers<[1], [0], [0], [1], [0, 0, 1, 1], [], []>} : vector<10x8xf32>, vector<8x10xf32>, vector<10x10xf32> -> vector<10x10xf32>
    %cst_35 = arith.constant 0.353553385 : f32
    %67 = vector.broadcast %cst_35 : f32 to vector<10x10xf32>
    %68 = arith.mulf %66, %67 : vector<10x10xf32>
    %69 = arith.addf %68, %10 : vector<10x10xf32>
    %cst_36 = arith.constant dense<0xFF800000> : vector<10xf32>
    %70 = vector.multi_reduction <maximumf>, %69, %cst_36 [1] : vector<10x10xf32> to vector<10xf32>
    %71 = vector.shape_cast %70 : vector<10xf32> to vector<10x1xf32>
    %72 = vector.broadcast %71 : vector<10x1xf32> to vector<10x10xf32>
    %73 = arith.subf %69, %72 : vector<10x10xf32>
    %74 = math.exp %73 : vector<10x10xf32>
    %cst_37 = arith.constant dense<0.000000e+00> : vector<10xf32>
    %75 = vector.multi_reduction <add>, %74, %cst_37 [1] : vector<10x10xf32> to vector<10xf32>
    %76 = vector.shape_cast %75 : vector<10xf32> to vector<10x1xf32>
    %77 = tpu.reciprocal %76 {approx = true} : vector<10x1xf32> -> vector<10x1xf32>
    %78 = vector.broadcast %77 : vector<10x1xf32> to vector<10x10xf32>
    %79 = arith.mulf %74, %78 : vector<10x10xf32>
    %cst_38 = arith.constant dense<0.000000e+00> : vector<10x8xf32>
    %80 = tpu.matmul %79, %64, %cst_38 {dimension_numbers = #tpu.dot_dimension_numbers<[1], [0], [0], [1], [0, 0, 1, 1], [], []>} : vector<10x10xf32>, vector<10x8xf32>, vector<10x8xf32> -> vector<10x8xf32>
    %81 = vector.extract_strided_slice %40 {offsets = [8, 0], sizes = [8, 32], strides = [1, 1]} : vector<32x32xf32> to vector<8x32xf32>
    %cst_39 = arith.constant dense<0.000000e+00> : vector<10x32xf32>
    %82 = tpu.matmul %80, %81, %cst_39 {dimension_numbers = #tpu.dot_dimension_numbers<[1], [0], [0], [1], [0, 0, 1, 1], [], []>} : vector<10x8xf32>, vector<8x32xf32>, vector<10x32xf32> -> vector<10x32xf32>
    %83 = arith.addf %61, %82 : vector<10x32xf32>
    %84 = vector.extract_strided_slice %39 {offsets = [0, 16], sizes = [10, 8], strides = [1, 1]} : vector<10x96xf32> to vector<10x8xf32>
    %85 = vector.extract_strided_slice %39 {offsets = [0, 48], sizes = [10, 8], strides = [1, 1]} : vector<10x96xf32> to vector<10x8xf32>
    %86 = vector.extract_strided_slice %39 {offsets = [0, 80], sizes = [10, 8], strides = [1, 1]} : vector<10x96xf32> to vector<10x8xf32>
    %87 = tpu.transpose %85, [1, 0] : vector<10x8xf32> -> vector<8x10xf32>
    %cst_40 = arith.constant dense<0.000000e+00> : vector<10x10xf32>
    %88 = tpu.matmul %84, %87, %cst_40 {dimension_numbers = #tpu.dot_dimension_numbers<[1], [0], [0], [1], [0, 0, 1, 1], [], []>} : vector<10x8xf32>, vector<8x10xf32>, vector<10x10xf32> -> vector<10x10xf32>
    %cst_41 = arith.constant 0.353553385 : f32
    %89 = vector.broadcast %cst_41 : f32 to vector<10x10xf32>
    %90 = arith.mulf %88, %89 : vector<10x10xf32>
    %91 = arith.addf %90, %10 : vector<10x10xf32>
    %cst_42 = arith.constant dense<0xFF800000> : vector<10xf32>
    %92 = vector.multi_reduction <maximumf>, %91, %cst_42 [1] : vector<10x10xf32> to vector<10xf32>
    %93 = vector.shape_cast %92 : vector<10xf32> to vector<10x1xf32>
    %94 = vector.broadcast %93 : vector<10x1xf32> to vector<10x10xf32>
    %95 = arith.subf %91, %94 : vector<10x10xf32>
    %96 = math.exp %95 : vector<10x10xf32>
    %cst_43 = arith.constant dense<0.000000e+00> : vector<10xf32>
    %97 = vector.multi_reduction <add>, %96, %cst_43 [1] : vector<10x10xf32> to vector<10xf32>
    %98 = vector.shape_cast %97 : vector<10xf32> to vector<10x1xf32>
    %99 = tpu.reciprocal %98 {approx = true} : vector<10x1xf32> -> vector<10x1xf32>
    %100 = vector.broadcast %99 : vector<10x1xf32> to vector<10x10xf32>
    %101 = arith.mulf %96, %100 : vector<10x10xf32>
    %cst_44 = arith.constant dense<0.000000e+00> : vector<10x8xf32>
    %102 = tpu.matmul %101, %86, %cst_44 {dimension_numbers = #tpu.dot_dimension_numbers<[1], [0], [0], [1], [0, 0, 1, 1], [], []>} : vector<10x10xf32>, vector<10x8xf32>, vector<10x8xf32> -> vector<10x8xf32>
    %103 = vector.extract_strided_slice %40 {offsets = [16, 0], sizes = [8, 32], strides = [1, 1]} : vector<32x32xf32> to vector<8x32xf32>
    %cst_45 = arith.constant dense<0.000000e+00> : vector<10x32xf32>
    %104 = tpu.matmul %102, %103, %cst_45 {dimension_numbers = #tpu.dot_dimension_numbers<[1], [0], [0], [1], [0, 0, 1, 1], [], []>} : vector<10x8xf32>, vector<8x32xf32>, vector<10x32xf32> -> vector<10x32xf32>
    %105 = arith.addf %83, %104 : vector<10x32xf32>
    %106 = vector.extract_strided_slice %39 {offsets = [0, 24], sizes = [10, 8], strides = [1, 1]} : vector<10x96xf32> to vector<10x8xf32>
    %107 = vector.extract_strided_slice %39 {offsets = [0, 56], sizes = [10, 8], strides = [1, 1]} : vector<10x96xf32> to vector<10x8xf32>
    %108 = vector.extract_strided_slice %39 {offsets = [0, 88], sizes = [10, 8], strides = [1, 1]} : vector<10x96xf32> to vector<10x8xf32>
    %109 = tpu.transpose %107, [1, 0] : vector<10x8xf32> -> vector<8x10xf32>
    %cst_46 = arith.constant dense<0.000000e+00> : vector<10x10xf32>
    %110 = tpu.matmul %106, %109, %cst_46 {dimension_numbers = #tpu.dot_dimension_numbers<[1], [0], [0], [1], [0, 0, 1, 1], [], []>} : vector<10x8xf32>, vector<8x10xf32>, vector<10x10xf32> -> vector<10x10xf32>
    %cst_47 = arith.constant 0.353553385 : f32
    %111 = vector.broadcast %cst_47 : f32 to vector<10x10xf32>
    %112 = arith.mulf %110, %111 : vector<10x10xf32>
    %113 = arith.addf %112, %10 : vector<10x10xf32>
    %cst_48 = arith.constant dense<0xFF800000> : vector<10xf32>
    %114 = vector.multi_reduction <maximumf>, %113, %cst_48 [1] : vector<10x10xf32> to vector<10xf32>
    %115 = vector.shape_cast %114 : vector<10xf32> to vector<10x1xf32>
    %116 = vector.broadcast %115 : vector<10x1xf32> to vector<10x10xf32>
    %117 = arith.subf %113, %116 : vector<10x10xf32>
    %118 = math.exp %117 : vector<10x10xf32>
    %cst_49 = arith.constant dense<0.000000e+00> : vector<10xf32>
    %119 = vector.multi_reduction <add>, %118, %cst_49 [1] : vector<10x10xf32> to vector<10xf32>
    %120 = vector.shape_cast %119 : vector<10xf32> to vector<10x1xf32>
    %121 = tpu.reciprocal %120 {approx = true} : vector<10x1xf32> -> vector<10x1xf32>
    %122 = vector.broadcast %121 : vector<10x1xf32> to vector<10x10xf32>
    %123 = arith.mulf %118, %122 : vector<10x10xf32>
    %cst_50 = arith.constant dense<0.000000e+00> : vector<10x8xf32>
    %124 = tpu.matmul %123, %108, %cst_50 {dimension_numbers = #tpu.dot_dimension_numbers<[1], [0], [0], [1], [0, 0, 1, 1], [], []>} : vector<10x10xf32>, vector<10x8xf32>, vector<10x8xf32> -> vector<10x8xf32>
    %125 = vector.extract_strided_slice %40 {offsets = [24, 0], sizes = [8, 32], strides = [1, 1]} : vector<32x32xf32> to vector<8x32xf32>
    %cst_51 = arith.constant dense<0.000000e+00> : vector<10x32xf32>
    %126 = tpu.matmul %124, %125, %cst_51 {dimension_numbers = #tpu.dot_dimension_numbers<[1], [0], [0], [1], [0, 0, 1, 1], [], []>} : vector<10x8xf32>, vector<8x32xf32>, vector<10x32xf32> -> vector<10x32xf32>
    %127 = arith.addf %105, %126 : vector<10x32xf32>
    %128 = arith.addf %9, %127 : vector<10x32xf32>
    %c0_52 = arith.constant 0 : index
    %c0_53 = arith.constant 0 : index
    %129 = vector.load %arg12[%c0_52, %c0_53] : memref<1x32xf32, #tpu.memory_space<vmem>>, vector<1x32xf32>
    %130 = vector.broadcast %129 : vector<1x32xf32> to vector<10x32xf32>
    %131 = arith.addf %128, %130 : vector<10x32xf32>
    %c0_54 = arith.constant 0 : index
    %c0_55 = arith.constant 0 : index
    %132 = vector.load %arg13[%c0_54, %c0_55] : memref<1x32xf32, #tpu.memory_space<vmem>>, vector<1x32xf32>
    %c0_56 = arith.constant 0 : index
    %c0_57 = arith.constant 0 : index
    %133 = vector.load %arg14[%c0_56, %c0_57] : memref<1x32xf32, #tpu.memory_space<vmem>>, vector<1x32xf32>
    %cst_58 = arith.constant dense<0.000000e+00> : vector<10xf32>
    %134 = vector.multi_reduction <add>, %131, %cst_58 [1] : vector<10x32xf32> to vector<10xf32>
    %135 = vector.shape_cast %134 : vector<10xf32> to vector<10x1xf32>
    %cst_59 = arith.constant 3.200000e+01 : f32
    %136 = vector.broadcast %cst_59 : f32 to vector<10x1xf32>
    %137 = arith.divf %135, %136 : vector<10x1xf32>
    %138 = vector.broadcast %137 : vector<10x1xf32> to vector<10x32xf32>
    %139 = arith.subf %131, %138 : vector<10x32xf32>
    %140 = arith.mulf %139, %139 : vector<10x32xf32>
    %cst_60 = arith.constant dense<0.000000e+00> : vector<10xf32>
    %141 = vector.multi_reduction <add>, %140, %cst_60 [1] : vector<10x32xf32> to vector<10xf32>
    %142 = vector.shape_cast %141 : vector<10xf32> to vector<10x1xf32>
    %cst_61 = arith.constant 3.200000e+01 : f32
    %143 = vector.broadcast %cst_61 : f32 to vector<10x1xf32>
    %144 = arith.divf %142, %143 : vector<10x1xf32>
    %145 = vector.broadcast %137 : vector<10x1xf32> to vector<10x32xf32>
    %146 = arith.subf %131, %145 : vector<10x32xf32>
    %cst_62 = arith.constant 9.99999996E-13 : f32
    %147 = vector.broadcast %cst_62 : f32 to vector<10x1xf32>
    %148 = arith.addf %144, %147 : vector<10x1xf32>
    %149 = math.rsqrt %148 : vector<10x1xf32>
    %150 = vector.broadcast %149 : vector<10x1xf32> to vector<10x32xf32>
    %151 = arith.mulf %146, %150 : vector<10x32xf32>
    %152 = vector.broadcast %132 : vector<1x32xf32> to vector<10x32xf32>
    %153 = arith.mulf %151, %152 : vector<10x32xf32>
    %154 = vector.broadcast %133 : vector<1x32xf32> to vector<10x32xf32>
    %155 = arith.addf %153, %154 : vector<10x32xf32>
    %c0_63 = arith.constant 0 : index
    %c0_64 = arith.constant 0 : index
    %156 = vector.load %arg15[%c0_63, %c0_64] : memref<32x128xf32, #tpu.memory_space<vmem>>, vector<32x128xf32>
    %cst_65 = arith.constant dense<0.000000e+00> : vector<10x128xf32>
    %157 = tpu.matmul %155, %156, %cst_65 {dimension_numbers = #tpu.dot_dimension_numbers<[1], [0], [0], [1], [0, 0, 1, 1], [], []>} : vector<10x32xf32>, vector<32x128xf32>, vector<10x128xf32> -> vector<10x128xf32>
    %c0_66 = arith.constant 0 : index
    %c0_67 = arith.constant 0 : index
    %158 = vector.load %arg16[%c0_66, %c0_67] : memref<1x128xf32, #tpu.memory_space<vmem>>, vector<1x128xf32>
    %159 = vector.broadcast %158 : vector<1x128xf32> to vector<10x128xf32>
    %160 = arith.addf %157, %159 : vector<10x128xf32>
    %cst_68 = arith.constant 5.000000e-01 : f32
    %161 = vector.broadcast %cst_68 : f32 to vector<10x128xf32>
    %162 = arith.mulf %161, %160 : vector<10x128xf32>
    %cst_69 = arith.constant 4.471500e-02 : f32
    %163 = vector.broadcast %cst_69 : f32 to vector<10x128xf32>
    %164 = arith.mulf %163, %160 : vector<10x128xf32>
    %165 = arith.mulf %164, %160 : vector<10x128xf32>
    %166 = arith.mulf %165, %160 : vector<10x128xf32>
    %167 = arith.addf %160, %166 : vector<10x128xf32>
    %cst_70 = arith.constant 0.797884583 : f32
    %168 = vector.broadcast %cst_70 : f32 to vector<10x128xf32>
    %169 = arith.mulf %168, %167 : vector<10x128xf32>
    %170 = math.tanh %169 : vector<10x128xf32>
    %cst_71 = arith.constant 1.000000e+00 : f32
    %171 = vector.broadcast %cst_71 : f32 to vector<10x128xf32>
    %172 = arith.addf %171, %170 : vector<10x128xf32>
    %173 = arith.mulf %162, %172 : vector<10x128xf32>
    %c0_72 = arith.constant 0 : index
    %c0_73 = arith.constant 0 : index
    %174 = vector.load %arg17[%c0_72, %c0_73] : memref<128x32xf32, #tpu.memory_space<vmem>>, vector<128x32xf32>
    %cst_74 = arith.constant dense<0.000000e+00> : vector<10x32xf32>
    %175 = tpu.matmul %173, %174, %cst_74 {dimension_numbers = #tpu.dot_dimension_numbers<[1], [0], [0], [1], [0, 0, 1, 1], [], []>} : vector<10x128xf32>, vector<128x32xf32>, vector<10x32xf32> -> vector<10x32xf32>
    %c0_75 = arith.constant 0 : index
    %c0_76 = arith.constant 0 : index
    %176 = vector.load %arg18[%c0_75, %c0_76] : memref<1x32xf32, #tpu.memory_space<vmem>>, vector<1x32xf32>
    %177 = vector.broadcast %176 : vector<1x32xf32> to vector<10x32xf32>
    %178 = arith.addf %175, %177 : vector<10x32xf32>
    %179 = arith.addf %131, %178 : vector<10x32xf32>
    %c0_77 = arith.constant 0 : index
    %c0_78 = arith.constant 0 : index
    %180 = vector.load %arg19[%c0_77, %c0_78] : memref<1x32xf32, #tpu.memory_space<vmem>>, vector<1x32xf32>
    %c0_79 = arith.constant 0 : index
    %c0_80 = arith.constant 0 : index
    %181 = vector.load %arg20[%c0_79, %c0_80] : memref<1x32xf32, #tpu.memory_space<vmem>>, vector<1x32xf32>
    %cst_81 = arith.constant dense<0.000000e+00> : vector<10xf32>
    %182 = vector.multi_reduction <add>, %179, %cst_81 [1] : vector<10x32xf32> to vector<10xf32>
    %183 = vector.shape_cast %182 : vector<10xf32> to vector<10x1xf32>
    %cst_82 = arith.constant 3.200000e+01 : f32
    %184 = vector.broadcast %cst_82 : f32 to vector<10x1xf32>
    %185 = arith.divf %183, %184 : vector<10x1xf32>
    %186 = vector.broadcast %185 : vector<10x1xf32> to vector<10x32xf32>
    %187 = arith.subf %179, %186 : vector<10x32xf32>
    %188 = arith.mulf %187, %187 : vector<10x32xf32>
    %cst_83 = arith.constant dense<0.000000e+00> : vector<10xf32>
    %189 = vector.multi_reduction <add>, %188, %cst_83 [1] : vector<10x32xf32> to vector<10xf32>
    %190 = vector.shape_cast %189 : vector<10xf32> to vector<10x1xf32>
    %cst_84 = arith.constant 3.200000e+01 : f32
    %191 = vector.broadcast %cst_84 : f32 to vector<10x1xf32>
    %192 = arith.divf %190, %191 : vector<10x1xf32>
    %193 = vector.broadcast %185 : vector<10x1xf32> to vector<10x32xf32>
    %194 = arith.subf %179, %193 : vector<10x32xf32>
    %cst_85 = arith.constant 9.99999996E-13 : f32
    %195 = vector.broadcast %cst_85 : f32 to vector<10x1xf32>
    %196 = arith.addf %192, %195 : vector<10x1xf32>
    %197 = math.rsqrt %196 : vector<10x1xf32>
    %198 = vector.broadcast %197 : vector<10x1xf32> to vector<10x32xf32>
    %199 = arith.mulf %194, %198 : vector<10x32xf32>
    %200 = vector.broadcast %180 : vector<1x32xf32> to vector<10x32xf32>
    %201 = arith.mulf %199, %200 : vector<10x32xf32>
    %202 = vector.broadcast %181 : vector<1x32xf32> to vector<10x32xf32>
    %203 = arith.addf %201, %202 : vector<10x32xf32>
    %c0_86 = arith.constant 0 : index
    %c0_87 = arith.constant 0 : index
    %204 = vector.load %arg21[%c0_86, %c0_87] : memref<32x96xf32, #tpu.memory_space<vmem>>, vector<32x96xf32>
    %cst_88 = arith.constant dense<0.000000e+00> : vector<10x96xf32>
    %205 = tpu.matmul %203, %204, %cst_88 {dimension_numbers = #tpu.dot_dimension_numbers<[1], [0], [0], [1], [0, 0, 1, 1], [], []>} : vector<10x32xf32>, vector<32x96xf32>, vector<10x96xf32> -> vector<10x96xf32>
    %c0_89 = arith.constant 0 : index
    %c0_90 = arith.constant 0 : index
    %206 = vector.load %arg22[%c0_89, %c0_90] : memref<1x96xf32, #tpu.memory_space<vmem>>, vector<1x96xf32>
    %207 = vector.broadcast %206 : vector<1x96xf32> to vector<10x96xf32>
    %208 = arith.addf %205, %207 : vector<10x96xf32>
    %c0_91 = arith.constant 0 : index
    %c0_92 = arith.constant 0 : index
    %209 = vector.load %arg23[%c0_91, %c0_92] : memref<32x32xf32, #tpu.memory_space<vmem>>, vector<32x32xf32>
    %210 = vector.extract_strided_slice %208 {offsets = [0, 0], sizes = [10, 8], strides = [1, 1]} : vector<10x96xf32> to vector<10x8xf32>
    %211 = vector.extract_strided_slice %208 {offsets = [0, 32], sizes = [10, 8], strides = [1, 1]} : vector<10x96xf32> to vector<10x8xf32>
    %212 = vector.extract_strided_slice %208 {offsets = [0, 64], sizes = [10, 8], strides = [1, 1]} : vector<10x96xf32> to vector<10x8xf32>
    %213 = tpu.transpose %211, [1, 0] : vector<10x8xf32> -> vector<8x10xf32>
    %cst_93 = arith.constant dense<0.000000e+00> : vector<10x10xf32>
    %214 = tpu.matmul %210, %213, %cst_93 {dimension_numbers = #tpu.dot_dimension_numbers<[1], [0], [0], [1], [0, 0, 1, 1], [], []>} : vector<10x8xf32>, vector<8x10xf32>, vector<10x10xf32> -> vector<10x10xf32>
    %cst_94 = arith.constant 0.353553385 : f32
    %215 = vector.broadcast %cst_94 : f32 to vector<10x10xf32>
    %216 = arith.mulf %214, %215 : vector<10x10xf32>
    %217 = arith.addf %216, %10 : vector<10x10xf32>
    %cst_95 = arith.constant dense<0xFF800000> : vector<10xf32>
    %218 = vector.multi_reduction <maximumf>, %217, %cst_95 [1] : vector<10x10xf32> to vector<10xf32>
    %219 = vector.shape_cast %218 : vector<10xf32> to vector<10x1xf32>
    %220 = vector.broadcast %219 : vector<10x1xf32> to vector<10x10xf32>
    %221 = arith.subf %217, %220 : vector<10x10xf32>
    %222 = math.exp %221 : vector<10x10xf32>
    %cst_96 = arith.constant dense<0.000000e+00> : vector<10xf32>
    %223 = vector.multi_reduction <add>, %222, %cst_96 [1] : vector<10x10xf32> to vector<10xf32>
    %224 = vector.shape_cast %223 : vector<10xf32> to vector<10x1xf32>
    %225 = tpu.reciprocal %224 {approx = true} : vector<10x1xf32> -> vector<10x1xf32>
    %226 = vector.broadcast %225 : vector<10x1xf32> to vector<10x10xf32>
    %227 = arith.mulf %222, %226 : vector<10x10xf32>
    %cst_97 = arith.constant dense<0.000000e+00> : vector<10x8xf32>
    %228 = tpu.matmul %227, %212, %cst_97 {dimension_numbers = #tpu.dot_dimension_numbers<[1], [0], [0], [1], [0, 0, 1, 1], [], []>} : vector<10x10xf32>, vector<10x8xf32>, vector<10x8xf32> -> vector<10x8xf32>
    %229 = vector.extract_strided_slice %209 {offsets = [0, 0], sizes = [8, 32], strides = [1, 1]} : vector<32x32xf32> to vector<8x32xf32>
    %cst_98 = arith.constant dense<0.000000e+00> : vector<10x32xf32>
    %230 = tpu.matmul %228, %229, %cst_98 {dimension_numbers = #tpu.dot_dimension_numbers<[1], [0], [0], [1], [0, 0, 1, 1], [], []>} : vector<10x8xf32>, vector<8x32xf32>, vector<10x32xf32> -> vector<10x32xf32>
    %231 = vector.extract_strided_slice %208 {offsets = [0, 8], sizes = [10, 8], strides = [1, 1]} : vector<10x96xf32> to vector<10x8xf32>
    %232 = vector.extract_strided_slice %208 {offsets = [0, 40], sizes = [10, 8], strides = [1, 1]} : vector<10x96xf32> to vector<10x8xf32>
    %233 = vector.extract_strided_slice %208 {offsets = [0, 72], sizes = [10, 8], strides = [1, 1]} : vector<10x96xf32> to vector<10x8xf32>
    %234 = tpu.transpose %232, [1, 0] : vector<10x8xf32> -> vector<8x10xf32>
    %cst_99 = arith.constant dense<0.000000e+00> : vector<10x10xf32>
    %235 = tpu.matmul %231, %234, %cst_99 {dimension_numbers = #tpu.dot_dimension_numbers<[1], [0], [0], [1], [0, 0, 1, 1], [], []>} : vector<10x8xf32>, vector<8x10xf32>, vector<10x10xf32> -> vector<10x10xf32>
    %cst_100 = arith.constant 0.353553385 : f32
    %236 = vector.broadcast %cst_100 : f32 to vector<10x10xf32>
    %237 = arith.mulf %235, %236 : vector<10x10xf32>
    %238 = arith.addf %237, %10 : vector<10x10xf32>
    %cst_101 = arith.constant dense<0xFF800000> : vector<10xf32>
    %239 = vector.multi_reduction <maximumf>, %238, %cst_101 [1] : vector<10x10xf32> to vector<10xf32>
    %240 = vector.shape_cast %239 : vector<10xf32> to vector<10x1xf32>
    %241 = vector.broadcast %240 : vector<10x1xf32> to vector<10x10xf32>
    %242 = arith.subf %238, %241 : vector<10x10xf32>
    %243 = math.exp %242 : vector<10x10xf32>
    %cst_102 = arith.constant dense<0.000000e+00> : vector<10xf32>
    %244 = vector.multi_reduction <add>, %243, %cst_102 [1] : vector<10x10xf32> to vector<10xf32>
    %245 = vector.shape_cast %244 : vector<10xf32> to vector<10x1xf32>
    %246 = tpu.reciprocal %245 {approx = true} : vector<10x1xf32> -> vector<10x1xf32>
    %247 = vector.broadcast %246 : vector<10x1xf32> to vector<10x10xf32>
    %248 = arith.mulf %243, %247 : vector<10x10xf32>
    %cst_103 = arith.constant dense<0.000000e+00> : vector<10x8xf32>
    %249 = tpu.matmul %248, %233, %cst_103 {dimension_numbers = #tpu.dot_dimension_numbers<[1], [0], [0], [1], [0, 0, 1, 1], [], []>} : vector<10x10xf32>, vector<10x8xf32>, vector<10x8xf32> -> vector<10x8xf32>
    %250 = vector.extract_strided_slice %209 {offsets = [8, 0], sizes = [8, 32], strides = [1, 1]} : vector<32x32xf32> to vector<8x32xf32>
    %cst_104 = arith.constant dense<0.000000e+00> : vector<10x32xf32>
    %251 = tpu.matmul %249, %250, %cst_104 {dimension_numbers = #tpu.dot_dimension_numbers<[1], [0], [0], [1], [0, 0, 1, 1], [], []>} : vector<10x8xf32>, vector<8x32xf32>, vector<10x32xf32> -> vector<10x32xf32>
    %252 = arith.addf %230, %251 : vector<10x32xf32>
    %253 = vector.extract_strided_slice %208 {offsets = [0, 16], sizes = [10, 8], strides = [1, 1]} : vector<10x96xf32> to vector<10x8xf32>
    %254 = vector.extract_strided_slice %208 {offsets = [0, 48], sizes = [10, 8], strides = [1, 1]} : vector<10x96xf32> to vector<10x8xf32>
    %255 = vector.extract_strided_slice %208 {offsets = [0, 80], sizes = [10, 8], strides = [1, 1]} : vector<10x96xf32> to vector<10x8xf32>
    %256 = tpu.transpose %254, [1, 0] : vector<10x8xf32> -> vector<8x10xf32>
    %cst_105 = arith.constant dense<0.000000e+00> : vector<10x10xf32>
    %257 = tpu.matmul %253, %256, %cst_105 {dimension_numbers = #tpu.dot_dimension_numbers<[1], [0], [0], [1], [0, 0, 1, 1], [], []>} : vector<10x8xf32>, vector<8x10xf32>, vector<10x10xf32> -> vector<10x10xf32>
    %cst_106 = arith.constant 0.353553385 : f32
    %258 = vector.broadcast %cst_106 : f32 to vector<10x10xf32>
    %259 = arith.mulf %257, %258 : vector<10x10xf32>
    %260 = arith.addf %259, %10 : vector<10x10xf32>
    %cst_107 = arith.constant dense<0xFF800000> : vector<10xf32>
    %261 = vector.multi_reduction <maximumf>, %260, %cst_107 [1] : vector<10x10xf32> to vector<10xf32>
    %262 = vector.shape_cast %261 : vector<10xf32> to vector<10x1xf32>
    %263 = vector.broadcast %262 : vector<10x1xf32> to vector<10x10xf32>
    %264 = arith.subf %260, %263 : vector<10x10xf32>
    %265 = math.exp %264 : vector<10x10xf32>
    %cst_108 = arith.constant dense<0.000000e+00> : vector<10xf32>
    %266 = vector.multi_reduction <add>, %265, %cst_108 [1] : vector<10x10xf32> to vector<10xf32>
    %267 = vector.shape_cast %266 : vector<10xf32> to vector<10x1xf32>
    %268 = tpu.reciprocal %267 {approx = true} : vector<10x1xf32> -> vector<10x1xf32>
    %269 = vector.broadcast %268 : vector<10x1xf32> to vector<10x10xf32>
    %270 = arith.mulf %265, %269 : vector<10x10xf32>
    %cst_109 = arith.constant dense<0.000000e+00> : vector<10x8xf32>
    %271 = tpu.matmul %270, %255, %cst_109 {dimension_numbers = #tpu.dot_dimension_numbers<[1], [0], [0], [1], [0, 0, 1, 1], [], []>} : vector<10x10xf32>, vector<10x8xf32>, vector<10x8xf32> -> vector<10x8xf32>
    %272 = vector.extract_strided_slice %209 {offsets = [16, 0], sizes = [8, 32], strides = [1, 1]} : vector<32x32xf32> to vector<8x32xf32>
    %cst_110 = arith.constant dense<0.000000e+00> : vector<10x32xf32>
    %273 = tpu.matmul %271, %272, %cst_110 {dimension_numbers = #tpu.dot_dimension_numbers<[1], [0], [0], [1], [0, 0, 1, 1], [], []>} : vector<10x8xf32>, vector<8x32xf32>, vector<10x32xf32> -> vector<10x32xf32>
    %274 = arith.addf %252, %273 : vector<10x32xf32>
    %275 = vector.extract_strided_slice %208 {offsets = [0, 24], sizes = [10, 8], strides = [1, 1]} : vector<10x96xf32> to vector<10x8xf32>
    %276 = vector.extract_strided_slice %208 {offsets = [0, 56], sizes = [10, 8], strides = [1, 1]} : vector<10x96xf32> to vector<10x8xf32>
    %277 = vector.extract_strided_slice %208 {offsets = [0, 88], sizes = [10, 8], strides = [1, 1]} : vector<10x96xf32> to vector<10x8xf32>
    %278 = tpu.transpose %276, [1, 0] : vector<10x8xf32> -> vector<8x10xf32>
    %cst_111 = arith.constant dense<0.000000e+00> : vector<10x10xf32>
    %279 = tpu.matmul %275, %278, %cst_111 {dimension_numbers = #tpu.dot_dimension_numbers<[1], [0], [0], [1], [0, 0, 1, 1], [], []>} : vector<10x8xf32>, vector<8x10xf32>, vector<10x10xf32> -> vector<10x10xf32>
    %cst_112 = arith.constant 0.353553385 : f32
    %280 = vector.broadcast %cst_112 : f32 to vector<10x10xf32>
    %281 = arith.mulf %279, %280 : vector<10x10xf32>
    %282 = arith.addf %281, %10 : vector<10x10xf32>
    %cst_113 = arith.constant dense<0xFF800000> : vector<10xf32>
    %283 = vector.multi_reduction <maximumf>, %282, %cst_113 [1] : vector<10x10xf32> to vector<10xf32>
    %284 = vector.shape_cast %283 : vector<10xf32> to vector<10x1xf32>
    %285 = vector.broadcast %284 : vector<10x1xf32> to vector<10x10xf32>
    %286 = arith.subf %282, %285 : vector<10x10xf32>
    %287 = math.exp %286 : vector<10x10xf32>
    %cst_114 = arith.constant dense<0.000000e+00> : vector<10xf32>
    %288 = vector.multi_reduction <add>, %287, %cst_114 [1] : vector<10x10xf32> to vector<10xf32>
    %289 = vector.shape_cast %288 : vector<10xf32> to vector<10x1xf32>
    %290 = tpu.reciprocal %289 {approx = true} : vector<10x1xf32> -> vector<10x1xf32>
    %291 = vector.broadcast %290 : vector<10x1xf32> to vector<10x10xf32>
    %292 = arith.mulf %287, %291 : vector<10x10xf32>
    %cst_115 = arith.constant dense<0.000000e+00> : vector<10x8xf32>
    %293 = tpu.matmul %292, %277, %cst_115 {dimension_numbers = #tpu.dot_dimension_numbers<[1], [0], [0], [1], [0, 0, 1, 1], [], []>} : vector<10x10xf32>, vector<10x8xf32>, vector<10x8xf32> -> vector<10x8xf32>
    %294 = vector.extract_strided_slice %209 {offsets = [24, 0], sizes = [8, 32], strides = [1, 1]} : vector<32x32xf32> to vector<8x32xf32>
    %cst_116 = arith.constant dense<0.000000e+00> : vector<10x32xf32>
    %295 = tpu.matmul %293, %294, %cst_116 {dimension_numbers = #tpu.dot_dimension_numbers<[1], [0], [0], [1], [0, 0, 1, 1], [], []>} : vector<10x8xf32>, vector<8x32xf32>, vector<10x32xf32> -> vector<10x32xf32>
    %296 = arith.addf %274, %295 : vector<10x32xf32>
    %297 = arith.addf %179, %296 : vector<10x32xf32>
    %c0_117 = arith.constant 0 : index
    %c0_118 = arith.constant 0 : index
    %298 = vector.load %arg24[%c0_117, %c0_118] : memref<1x32xf32, #tpu.memory_space<vmem>>, vector<1x32xf32>
    %299 = vector.broadcast %298 : vector<1x32xf32> to vector<10x32xf32>
    %300 = arith.addf %297, %299 : vector<10x32xf32>
    %c0_119 = arith.constant 0 : index
    %c0_120 = arith.constant 0 : index
    %301 = vector.load %arg25[%c0_119, %c0_120] : memref<1x32xf32, #tpu.memory_space<vmem>>, vector<1x32xf32>
    %c0_121 = arith.constant 0 : index
    %c0_122 = arith.constant 0 : index
    %302 = vector.load %arg26[%c0_121, %c0_122] : memref<1x32xf32, #tpu.memory_space<vmem>>, vector<1x32xf32>
    %cst_123 = arith.constant dense<0.000000e+00> : vector<10xf32>
    %303 = vector.multi_reduction <add>, %300, %cst_123 [1] : vector<10x32xf32> to vector<10xf32>
    %304 = vector.shape_cast %303 : vector<10xf32> to vector<10x1xf32>
    %cst_124 = arith.constant 3.200000e+01 : f32
    %305 = vector.broadcast %cst_124 : f32 to vector<10x1xf32>
    %306 = arith.divf %304, %305 : vector<10x1xf32>
    %307 = vector.broadcast %306 : vector<10x1xf32> to vector<10x32xf32>
    %308 = arith.subf %300, %307 : vector<10x32xf32>
    %309 = arith.mulf %308, %308 : vector<10x32xf32>
    %cst_125 = arith.constant dense<0.000000e+00> : vector<10xf32>
    %310 = vector.multi_reduction <add>, %309, %cst_125 [1] : vector<10x32xf32> to vector<10xf32>
    %311 = vector.shape_cast %310 : vector<10xf32> to vector<10x1xf32>
    %cst_126 = arith.constant 3.200000e+01 : f32
    %312 = vector.broadcast %cst_126 : f32 to vector<10x1xf32>
    %313 = arith.divf %311, %312 : vector<10x1xf32>
    %314 = vector.broadcast %306 : vector<10x1xf32> to vector<10x32xf32>
    %315 = arith.subf %300, %314 : vector<10x32xf32>
    %cst_127 = arith.constant 9.99999996E-13 : f32
    %316 = vector.broadcast %cst_127 : f32 to vector<10x1xf32>
    %317 = arith.addf %313, %316 : vector<10x1xf32>
    %318 = math.rsqrt %317 : vector<10x1xf32>
    %319 = vector.broadcast %318 : vector<10x1xf32> to vector<10x32xf32>
    %320 = arith.mulf %315, %319 : vector<10x32xf32>
    %321 = vector.broadcast %301 : vector<1x32xf32> to vector<10x32xf32>
    %322 = arith.mulf %320, %321 : vector<10x32xf32>
    %323 = vector.broadcast %302 : vector<1x32xf32> to vector<10x32xf32>
    %324 = arith.addf %322, %323 : vector<10x32xf32>
    %c0_128 = arith.constant 0 : index
    %c0_129 = arith.constant 0 : index
    %325 = vector.load %arg27[%c0_128, %c0_129] : memref<32x128xf32, #tpu.memory_space<vmem>>, vector<32x128xf32>
    %cst_130 = arith.constant dense<0.000000e+00> : vector<10x128xf32>
    %326 = tpu.matmul %324, %325, %cst_130 {dimension_numbers = #tpu.dot_dimension_numbers<[1], [0], [0], [1], [0, 0, 1, 1], [], []>} : vector<10x32xf32>, vector<32x128xf32>, vector<10x128xf32> -> vector<10x128xf32>
    %c0_131 = arith.constant 0 : index
    %c0_132 = arith.constant 0 : index
    %327 = vector.load %arg28[%c0_131, %c0_132] : memref<1x128xf32, #tpu.memory_space<vmem>>, vector<1x128xf32>
    %328 = vector.broadcast %327 : vector<1x128xf32> to vector<10x128xf32>
    %329 = arith.addf %326, %328 : vector<10x128xf32>
    %cst_133 = arith.constant 5.000000e-01 : f32
    %330 = vector.broadcast %cst_133 : f32 to vector<10x128xf32>
    %331 = arith.mulf %330, %329 : vector<10x128xf32>
    %cst_134 = arith.constant 4.471500e-02 : f32
    %332 = vector.broadcast %cst_134 : f32 to vector<10x128xf32>
    %333 = arith.mulf %332, %329 : vector<10x128xf32>
    %334 = arith.mulf %333, %329 : vector<10x128xf32>
    %335 = arith.mulf %334, %329 : vector<10x128xf32>
    %336 = arith.addf %329, %335 : vector<10x128xf32>
    %cst_135 = arith.constant 0.797884583 : f32
    %337 = vector.broadcast %cst_135 : f32 to vector<10x128xf32>
    %338 = arith.mulf %337, %336 : vector<10x128xf32>
    %339 = math.tanh %338 : vector<10x128xf32>
    %cst_136 = arith.constant 1.000000e+00 : f32
    %340 = vector.broadcast %cst_136 : f32 to vector<10x128xf32>
    %341 = arith.addf %340, %339 : vector<10x128xf32>
    %342 = arith.mulf %331, %341 : vector<10x128xf32>
    %c0_137 = arith.constant 0 : index
    %c0_138 = arith.constant 0 : index
    %343 = vector.load %arg29[%c0_137, %c0_138] : memref<128x32xf32, #tpu.memory_space<vmem>>, vector<128x32xf32>
    %cst_139 = arith.constant dense<0.000000e+00> : vector<10x32xf32>
    %344 = tpu.matmul %342, %343, %cst_139 {dimension_numbers = #tpu.dot_dimension_numbers<[1], [0], [0], [1], [0, 0, 1, 1], [], []>} : vector<10x128xf32>, vector<128x32xf32>, vector<10x32xf32> -> vector<10x32xf32>
    %c0_140 = arith.constant 0 : index
    %c0_141 = arith.constant 0 : index
    %345 = vector.load %arg30[%c0_140, %c0_141] : memref<1x32xf32, #tpu.memory_space<vmem>>, vector<1x32xf32>
    %346 = vector.broadcast %345 : vector<1x32xf32> to vector<10x32xf32>
    %347 = arith.addf %344, %346 : vector<10x32xf32>
    %348 = arith.addf %300, %347 : vector<10x32xf32>
    %c0_142 = arith.constant 0 : index
    %c0_143 = arith.constant 0 : index
    %349 = vector.load %arg4[%c0_142, %c0_143] : memref<2x10xf32, #tpu.memory_space<vmem>>, vector<2x10xf32>
    %cst_144 = arith.constant dense<0.000000e+00> : vector<2x32xf32>
    %350 = tpu.matmul %349, %348, %cst_144 {dimension_numbers = #tpu.dot_dimension_numbers<[1], [0], [0], [1], [0, 0, 1, 1], [], []>} : vector<2x10xf32>, vector<10x32xf32>, vector<2x32xf32> -> vector<2x32xf32>
    %c0_145 = arith.constant 0 : index
    %c0_146 = arith.constant 0 : index
    %351 = vector.load %arg31[%c0_145, %c0_146] : memref<1x32xf32, #tpu.memory_space<vmem>>, vector<1x32xf32>
    %c0_147 = arith.constant 0 : index
    %c0_148 = arith.constant 0 : index
    %352 = vector.load %arg32[%c0_147, %c0_148] : memref<1x32xf32, #tpu.memory_space<vmem>>, vector<1x32xf32>
    %cst_149 = arith.constant dense<0.000000e+00> : vector<2xf32>
    %353 = vector.multi_reduction <add>, %350, %cst_149 [1] : vector<2x32xf32> to vector<2xf32>
    %354 = vector.shape_cast %353 : vector<2xf32> to vector<2x1xf32>
    %cst_150 = arith.constant 3.200000e+01 : f32
    %355 = vector.broadcast %cst_150 : f32 to vector<2x1xf32>
    %356 = arith.divf %354, %355 : vector<2x1xf32>
    %357 = vector.broadcast %356 : vector<2x1xf32> to vector<2x32xf32>
    %358 = arith.subf %350, %357 : vector<2x32xf32>
    %359 = arith.mulf %358, %358 : vector<2x32xf32>
    %cst_151 = arith.constant dense<0.000000e+00> : vector<2xf32>
    %360 = vector.multi_reduction <add>, %359, %cst_151 [1] : vector<2x32xf32> to vector<2xf32>
    %361 = vector.shape_cast %360 : vector<2xf32> to vector<2x1xf32>
    %cst_152 = arith.constant 3.200000e+01 : f32
    %362 = vector.broadcast %cst_152 : f32 to vector<2x1xf32>
    %363 = arith.divf %361, %362 : vector<2x1xf32>
    %364 = vector.broadcast %356 : vector<2x1xf32> to vector<2x32xf32>
    %365 = arith.subf %350, %364 : vector<2x32xf32>
    %cst_153 = arith.constant 9.99999996E-13 : f32
    %366 = vector.broadcast %cst_153 : f32 to vector<2x1xf32>
    %367 = arith.addf %363, %366 : vector<2x1xf32>
    %368 = math.rsqrt %367 : vector<2x1xf32>
    %369 = vector.broadcast %368 : vector<2x1xf32> to vector<2x32xf32>
    %370 = arith.mulf %365, %369 : vector<2x32xf32>
    %371 = vector.broadcast %351 : vector<1x32xf32> to vector<2x32xf32>
    %372 = arith.mulf %370, %371 : vector<2x32xf32>
    %373 = vector.broadcast %352 : vector<1x32xf32> to vector<2x32xf32>
    %374 = arith.addf %372, %373 : vector<2x32xf32>
    %c0_154 = arith.constant 0 : index
    %c0_155 = arith.constant 0 : index
    %375 = vector.load %arg33[%c0_154, %c0_155] : memref<32x32xf32, #tpu.memory_space<vmem>>, vector<32x32xf32>
    %cst_156 = arith.constant dense<0.000000e+00> : vector<2x32xf32>
    %376 = tpu.matmul %374, %375, %cst_156 {dimension_numbers = #tpu.dot_dimension_numbers<[1], [0], [0], [1], [0, 0, 1, 1], [], []>} : vector<2x32xf32>, vector<32x32xf32>, vector<2x32xf32> -> vector<2x32xf32>
    %c0_157 = arith.constant 0 : index
    %c0_158 = arith.constant 0 : index
    %377 = vector.load %arg34[%c0_157, %c0_158] : memref<1x32xf32, #tpu.memory_space<vmem>>, vector<1x32xf32>
    %378 = vector.broadcast %377 : vector<1x32xf32> to vector<2x32xf32>
    %379 = arith.addf %376, %378 : vector<2x32xf32>
    %380 = math.tanh %379 : vector<2x32xf32>
    %c0_159 = arith.constant 0 : index
    %c0_160 = arith.constant 0 : index
    %381 = vector.load %arg35[%c0_159, %c0_160] : memref<32x150xf32, #tpu.memory_space<vmem>>, vector<32x150xf32>
    %cst_161 = arith.constant dense<0.000000e+00> : vector<2x150xf32>
    %382 = tpu.matmul %380, %381, %cst_161 {dimension_numbers = #tpu.dot_dimension_numbers<[1], [0], [0], [1], [0, 0, 1, 1], [], []>} : vector<2x32xf32>, vector<32x150xf32>, vector<2x150xf32> -> vector<2x150xf32>
    %c0_162 = arith.constant 0 : index
    %c0_163 = arith.constant 0 : index
    %383 = vector.load %arg36[%c0_162, %c0_163] : memref<1x150xf32, #tpu.memory_space<vmem>>, vector<1x150xf32>
    %384 = vector.broadcast %383 : vector<1x150xf32> to vector<2x150xf32>
    %385 = arith.addf %382, %384 : vector<2x150xf32>
    %cst_164 = arith.constant 0.000000e+00 : f32
    %386 = vector.broadcast %cst_164 : f32 to vector<2x150xf32>
    %387 = arith.cmpf ogt, %385, %386 : vector<2x150xf32>
    %cst_165 = arith.constant 0.00999999977 : f32
    %388 = vector.broadcast %cst_165 : f32 to vector<2x150xf32>
    %389 = arith.mulf %388, %385 : vector<2x150xf32>
    %390 = arith.select %387, %385, %389 : vector<2x150xi1>, vector<2x150xf32>
    %c0_166 = arith.constant 0 : index
    %c0_167 = arith.constant 0 : index
    %391 = vector.load %arg37[%c0_166, %c0_167] : memref<150x50xf32, #tpu.memory_space<vmem>>, vector<150x50xf32>
    %cst_168 = arith.constant dense<0.000000e+00> : vector<2x50xf32>
    %392 = tpu.matmul %390, %391, %cst_168 {dimension_numbers = #tpu.dot_dimension_numbers<[1], [0], [0], [1], [0, 0, 1, 1], [], []>} : vector<2x150xf32>, vector<150x50xf32>, vector<2x50xf32> -> vector<2x50xf32>
    %c0_169 = arith.constant 0 : index
    %c0_170 = arith.constant 0 : index
    %393 = vector.load %arg38[%c0_169, %c0_170] : memref<1x50xf32, #tpu.memory_space<vmem>>, vector<1x50xf32>
    %394 = vector.broadcast %393 : vector<1x50xf32> to vector<2x50xf32>
    %395 = arith.addf %392, %394 : vector<2x50xf32>
    %cst_171 = arith.constant 0.000000e+00 : f32
    %396 = vector.broadcast %cst_171 : f32 to vector<2x50xf32>
    %397 = arith.cmpf ogt, %395, %396 : vector<2x50xf32>
    %cst_172 = arith.constant 0.00999999977 : f32
    %398 = vector.broadcast %cst_172 : f32 to vector<2x50xf32>
    %399 = arith.mulf %398, %395 : vector<2x50xf32>
    %400 = arith.select %397, %395, %399 : vector<2x50xi1>, vector<2x50xf32>
    %c0_173 = arith.constant 0 : index
    %c0_174 = arith.constant 0 : index
    %401 = vector.load %arg39[%c0_173, %c0_174] : memref<50x10xf32, #tpu.memory_space<vmem>>, vector<50x10xf32>
    %cst_175 = arith.constant dense<0.000000e+00> : vector<2x10xf32>
    %402 = tpu.matmul %400, %401, %cst_175 {dimension_numbers = #tpu.dot_dimension_numbers<[1], [0], [0], [1], [0, 0, 1, 1], [], []>} : vector<2x50xf32>, vector<50x10xf32>, vector<2x10xf32> -> vector<2x10xf32>
    %c0_176 = arith.constant 0 : index
    %c0_177 = arith.constant 0 : index
    %403 = vector.load %arg40[%c0_176, %c0_177] : memref<1x10xf32, #tpu.memory_space<vmem>>, vector<1x10xf32>
    %404 = vector.broadcast %403 : vector<1x10xf32> to vector<2x10xf32>
    %405 = arith.addf %402, %404 : vector<2x10xf32>
    %c0_178 = arith.constant 0 : index
    %c0_179 = arith.constant 0 : index
    %406 = vector.load %arg41[%c0_178, %c0_179] : memref<2x10xf32, #tpu.memory_space<vmem>>, vector<2x10xf32>
    tpu.vector_store %arg41[%c0_178, %c0_179], %405 {strides = array<i32>} : memref<2x10xf32, #tpu.memory_space<vmem>>, vector<2x10xf32>,
    return
  }
}

</mosaic_0001>

<llo_original>
// kernel: tpu_custom_call.1
$region0: #{tpu_custom_call.1}
  #allocation0 [shape = 'u32[]', space=smem, size = 0x4, offset = 0x4, fixed_abs, tag = 'smem constant byte address 0x4 - core index']
  #allocation1 [shape = 'u32[144,128]{1,0:T(1,128)}', space=vmem, size = 0x12000, scoped, tag = 'internal scratch']
  %s0 = inlined_call_operand.smem [shape: u32[42], index: -1, kind: input, shape index: {}]
  %s1 = sld [smem:[%s0]]
  %s2 = scalar_lea.smem %s0, 1
  %s3 = sld [smem:[%s2]]
  %s4 = scalar_lea.smem %s0, 2
  %s5 = sld [smem:[%s4]]
  %s6 = scalar_lea.smem %s0, 3
  %s7 = sld [smem:[%s6]]
  %s8 = scalar_lea.smem %s0, 4
  %s9 = sld [smem:[%s8]]
  %s10 = scalar_lea.smem %s0, 5
  %s11 = sld [smem:[%s10]]
  %s12 = scalar_lea.smem %s0, 6
  %s13 = sld [smem:[%s12]]
  %s14 = scalar_lea.smem %s0, 7
  %s15 = sld [smem:[%s14]]
  %s16 = scalar_lea.smem %s0, 8
  %s17 = sld [smem:[%s16]]
  %s18 = scalar_lea.smem %s0, 9
  %s19 = sld [smem:[%s18]]
  %s20 = scalar_lea.smem %s0, 10
  %s21 = sld [smem:[%s20]]
  %s22 = scalar_lea.smem %s0, 11
  %s23 = sld [smem:[%s22]]
  %s24 = scalar_lea.smem %s0, 12
  %s25 = sld [smem:[%s24]]
  %s26 = scalar_lea.smem %s0, 13
  %s27 = sld [smem:[%s26]]
  %s28 = scalar_lea.smem %s0, 14
  %s29 = sld [smem:[%s28]]
  %s30 = scalar_lea.smem %s0, 15
  %s31 = sld [smem:[%s30]]
  %s32 = scalar_lea.smem %s0, 16
  %s33 = sld [smem:[%s32]]
  %s34 = scalar_lea.smem %s0, 17
  %s35 = sld [smem:[%s34]]
  %s36 = scalar_lea.smem %s0, 18
  %s37 = sld [smem:[%s36]]
  %s38 = scalar_lea.smem %s0, 19
  %s39 = sld [smem:[%s38]]
  %s40 = scalar_lea.smem %s0, 20
  %s41 = sld [smem:[%s40]]
  %s42 = scalar_lea.smem %s0, 21
  %s43 = sld [smem:[%s42]]
  %s44 = scalar_lea.smem %s0, 22
  %s45 = sld [smem:[%s44]]
  %s46 = scalar_lea.smem %s0, 23
  %s47 = sld [smem:[%s46]]
  %s48 = scalar_lea.smem %s0, 24
  %s49 = sld [smem:[%s48]]
  %s50 = scalar_lea.smem %s0, 25
  %s51 = sld [smem:[%s50]]
  %s52 = scalar_lea.smem %s0, 26
  %s53 = sld [smem:[%s52]]
  %s54 = scalar_lea.smem %s0, 27
  %s55 = sld [smem:[%s54]]
  %s56 = scalar_lea.smem %s0, 28
  %s57 = sld [smem:[%s56]]
  %s58 = scalar_lea.smem %s0, 29
  %s59 = sld [smem:[%s58]]
  %s60 = scalar_lea.smem %s0, 30
  %s61 = sld [smem:[%s60]]
  %s62 = scalar_lea.smem %s0, 31
  %s63 = sld [smem:[%s62]]
  %s64 = scalar_lea.smem %s0, 32
  %s65 = sld [smem:[%s64]]
  %s66 = scalar_lea.smem %s0, 33
  %s67 = sld [smem:[%s66]]
  %s68 = scalar_lea.smem %s0, 34
  %s69 = sld [smem:[%s68]]
  %s70 = scalar_lea.smem %s0, 35
  %s71 = sld [smem:[%s70]]
  %s72 = scalar_lea.smem %s0, 36
  %s73 = sld [smem:[%s72]]
  %s74 = scalar_lea.smem %s0, 37
  %s75 = sld [smem:[%s74]]
  %s76 = scalar_lea.smem %s0, 38
  %s77 = sld [smem:[%s76]]
  %s78 = scalar_lea.smem %s0, 39
  %s79 = sld [smem:[%s78]]
  %s80 = scalar_lea.smem %s0, 40
  %s81 = sld [smem:[%s80]]
  %s82 = scalar_lea.smem %s0, 41
  %s83 = sld [smem:[%s82]]
  %s84 = sld [smem:[#allocation0]]
  $region174: #{tpu_custom_call.1} parent=0
    _
  %s86 = ssub.s32 1, %s84
  %s87 = scalar_select 0, %s86, %s84
  $region1: #{tpu_custom_call.1} parent=0
    #allocation2 [shape = 'u8[1024]{0}', space=vmem, size = 0x400, scoped, tag = 'output window, operand 0, single buffered']
    #allocation3 [shape = 's32[1]{0}', space=sflag, size = 0x4, scoped, tag = 'scoped memory for tpu_custom_call.1']
    %88 = vsyncpa [#allocation3], 0
    // Predicated region
    $region2: #{tpu_custom_call.1} parent=1 // pred_check
      _
    $region3: #{tpu_custom_call.1} parent=1 // pred_check_branch
      %90 = sbr.rel (0) target = $region5
    $region4: #{tpu_custom_call.1} parent=1 // pred_region
      _
    $region5: #{tpu_custom_call.1} parent=1 // pred_fallthru
      _
    // Predicated region
    $region6: #{tpu_custom_call.1} parent=1 // pred_check
      _
    $region7: #{tpu_custom_call.1} parent=1 // pred_check_branch
      %92 = sbr.rel (0) target = $region9
    $region8: #{tpu_custom_call.1} parent=1 // pred_region
      _
    $region9: #{tpu_custom_call.1} parent=1 // pred_fallthru
      _
    // Predicated region
    $region10: #{tpu_custom_call.1} parent=1 // pred_check
      _
    $region11: #{tpu_custom_call.1} parent=1 // pred_check_branch
      %94 = sbr.rel (0) target = $region13
    $region12: #{tpu_custom_call.1} parent=1 // pred_region
      _
    $region13: #{tpu_custom_call.1} parent=1 // pred_fallthru
      _
    // Predicated region
    $region14: #{tpu_custom_call.1} parent=1 // pred_check
      _
    $region15: #{tpu_custom_call.1} parent=1 // pred_check_branch
      %96 = sbr.rel (0) target = $region17
    $region16: #{tpu_custom_call.1} parent=1 // pred_region
      _
    $region17: #{tpu_custom_call.1} parent=1 // pred_fallthru
      _
    // Predicated region
    $region18: #{tpu_custom_call.1} parent=1 // pred_check
      _
    $region19: #{tpu_custom_call.1} parent=1 // pred_check_branch
      %98 = sbr.rel (0) target = $region21
    $region20: #{tpu_custom_call.1} parent=1 // pred_region
      _
    $region21: #{tpu_custom_call.1} parent=1 // pred_fallthru
      _
    // Predicated region
    $region22: #{tpu_custom_call.1} parent=1 // pred_check
      _
    $region23: #{tpu_custom_call.1} parent=1 // pred_check_branch
      %100 = sbr.rel (0) target = $region25
    $region24: #{tpu_custom_call.1} parent=1 // pred_region
      _
    $region25: #{tpu_custom_call.1} parent=1 // pred_fallthru
      _
    // Predicated region
    $region26: #{tpu_custom_call.1} parent=1 // pred_check
      _
    $region27: #{tpu_custom_call.1} parent=1 // pred_check_branch
      %102 = sbr.rel (0) target = $region29
    $region28: #{tpu_custom_call.1} parent=1 // pred_region
      _
    $region29: #{tpu_custom_call.1} parent=1 // pred_fallthru
      _
    // Predicated region
    $region30: #{tpu_custom_call.1} parent=1 // pred_check
      _
    $region31: #{tpu_custom_call.1} parent=1 // pred_check_branch
      %104 = sbr.rel (0) target = $region33
    $region32: #{tpu_custom_call.1} parent=1 // pred_region
      _
    $region33: #{tpu_custom_call.1} parent=1 // pred_fallthru
      _
    // Predicated region
    $region34: #{tpu_custom_call.1} parent=1 // pred_check
      _
    $region35: #{tpu_custom_call.1} parent=1 // pred_check_branch
      %106 = sbr.rel (0) target = $region37
    $region36: #{tpu_custom_call.1} parent=1 // pred_region
      _
    $region37: #{tpu_custom_call.1} parent=1 // pred_fallthru
      _
    // Predicated region
    $region38: #{tpu_custom_call.1} parent=1 // pred_check
      _
    $region39: #{tpu_custom_call.1} parent=1 // pred_check_branch
      %108 = sbr.rel (0) target = $region41
    $region40: #{tpu_custom_call.1} parent=1 // pred_region
      _
    $region41: #{tpu_custom_call.1} parent=1 // pred_fallthru
      _
    // Predicated region
    $region42: #{tpu_custom_call.1} parent=1 // pred_check
      _
    $region43: #{tpu_custom_call.1} parent=1 // pred_check_branch
      %110 = sbr.rel (0) target = $region45
    $region44: #{tpu_custom_call.1} parent=1 // pred_region
      _
    $region45: #{tpu_custom_call.1} parent=1 // pred_fallthru
      _
    // Predicated region
    $region46: #{tpu_custom_call.1} parent=1 // pred_check
      _
    $region47: #{tpu_custom_call.1} parent=1 // pred_check_branch
      %112 = sbr.rel (0) target = $region49
    $region48: #{tpu_custom_call.1} parent=1 // pred_region
      _
    $region49: #{tpu_custom_call.1} parent=1 // pred_fallthru
      _
    // Predicated region
    $region50: #{tpu_custom_call.1} parent=1 // pred_check
      _
    $region51: #{tpu_custom_call.1} parent=1 // pred_check_branch
      %114 = sbr.rel (0) target = $region53
    $region52: #{tpu_custom_call.1} parent=1 // pred_region
      _
    $region53: #{tpu_custom_call.1} parent=1 // pred_fallthru
      _
    // Predicated region
    $region54: #{tpu_custom_call.1} parent=1 // pred_check
      _
    $region55: #{tpu_custom_call.1} parent=1 // pred_check_branch
      %116 = sbr.rel (0) target = $region57
    $region56: #{tpu_custom_call.1} parent=1 // pred_region
      _
    $region57: #{tpu_custom_call.1} parent=1 // pred_fallthru
      _
    // Predicated region
    $region58: #{tpu_custom_call.1} parent=1 // pred_check
      _
    $region59: #{tpu_custom_call.1} parent=1 // pred_check_branch
      %118 = sbr.rel (0) target = $region61
    $region60: #{tpu_custom_call.1} parent=1 // pred_region
      _
    $region61: #{tpu_custom_call.1} parent=1 // pred_fallthru
      _
    // Predicated region
    $region62: #{tpu_custom_call.1} parent=1 // pred_check
      _
    $region63: #{tpu_custom_call.1} parent=1 // pred_check_branch
      %120 = sbr.rel (0) target = $region65
    $region64: #{tpu_custom_call.1} parent=1 // pred_region
      _
    $region65: #{tpu_custom_call.1} parent=1 // pred_fallthru
      _
    // Predicated region
    $region66: #{tpu_custom_call.1} parent=1 // pred_check
      _
    $region67: #{tpu_custom_call.1} parent=1 // pred_check_branch
      %122 = sbr.rel (0) target = $region69
    $region68: #{tpu_custom_call.1} parent=1 // pred_region
      _
    $region69: #{tpu_custom_call.1} parent=1 // pred_fallthru
      _
    // Predicated region
    $region70: #{tpu_custom_call.1} parent=1 // pred_check
      _
    $region71: #{tpu_custom_call.1} parent=1 // pred_check_branch
      %124 = sbr.rel (0) target = $region73
    $region72: #{tpu_custom_call.1} parent=1 // pred_region
      _
    $region73: #{tpu_custom_call.1} parent=1 // pred_fallthru
      _
    // Predicated region
    $region74: #{tpu_custom_call.1} parent=1 // pred_check
      _
    $region75: #{tpu_custom_call.1} parent=1 // pred_check_branch
      %126 = sbr.rel (0) target = $region77
    $region76: #{tpu_custom_call.1} parent=1 // pred_region
      _
    $region77: #{tpu_custom_call.1} parent=1 // pred_fallthru
      _
    // Predicated region
    $region78: #{tpu_custom_call.1} parent=1 // pred_check
      _
    $region79: #{tpu_custom_call.1} parent=1 // pred_check_branch
      %128 = sbr.rel (0) target = $region81
    $region80: #{tpu_custom_call.1} parent=1 // pred_region
      _
    $region81: #{tpu_custom_call.1} parent=1 // pred_fallthru
      _
    // Predicated region
    $region82: #{tpu_custom_call.1} parent=1 // pred_check
      _
    $region83: #{tpu_custom_call.1} parent=1 // pred_check_branch
      %130 = sbr.rel (0) target = $region85
    $region84: #{tpu_custom_call.1} parent=1 // pred_region
      _
    $region85: #{tpu_custom_call.1} parent=1 // pred_fallthru
      _
    // Predicated region
    $region86: #{tpu_custom_call.1} parent=1 // pred_check
      _
    $region87: #{tpu_custom_call.1} parent=1 // pred_check_branch
      %132 = sbr.rel (0) target = $region89
    $region88: #{tpu_custom_call.1} parent=1 // pred_region
      _
    $region89: #{tpu_custom_call.1} parent=1 // pred_fallthru
      _
    // Predicated region
    $region90: #{tpu_custom_call.1} parent=1 // pred_check
      _
    $region91: #{tpu_custom_call.1} parent=1 // pred_check_branch
      %134 = sbr.rel (0) target = $region93
    $region92: #{tpu_custom_call.1} parent=1 // pred_region
      _
    $region93: #{tpu_custom_call.1} parent=1 // pred_fallthru
      _
    // Predicated region
    $region94: #{tpu_custom_call.1} parent=1 // pred_check
      _
    $region95: #{tpu_custom_call.1} parent=1 // pred_check_branch
      %136 = sbr.rel (0) target = $region97
    $region96: #{tpu_custom_call.1} parent=1 // pred_region
      _
    $region97: #{tpu_custom_call.1} parent=1 // pred_fallthru
      _
    // Predicated region
    $region98: #{tpu_custom_call.1} parent=1 // pred_check
      _
    $region99: #{tpu_custom_call.1} parent=1 // pred_check_branch
      %138 = sbr.rel (0) target = $region101
    $region100: #{tpu_custom_call.1} parent=1 // pred_region
      _
    $region101: #{tpu_custom_call.1} parent=1 // pred_fallthru
      _
    // Predicated region
    $region102: #{tpu_custom_call.1} parent=1 // pred_check
      _
    $region103: #{tpu_custom_call.1} parent=1 // pred_check_branch
      %140 = sbr.rel (0) target = $region105
    $region104: #{tpu_custom_call.1} parent=1 // pred_region
      _
    $region105: #{tpu_custom_call.1} parent=1 // pred_fallthru
      _
    // Predicated region
    $region106: #{tpu_custom_call.1} parent=1 // pred_check
      _
    $region107: #{tpu_custom_call.1} parent=1 // pred_check_branch
      %142 = sbr.rel (0) target = $region109
    $region108: #{tpu_custom_call.1} parent=1 // pred_region
      _
    $region109: #{tpu_custom_call.1} parent=1 // pred_fallthru
      _
    // Predicated region
    $region110: #{tpu_custom_call.1} parent=1 // pred_check
      _
    $region111: #{tpu_custom_call.1} parent=1 // pred_check_branch
      %144 = sbr.rel (0) target = $region113
    $region112: #{tpu_custom_call.1} parent=1 // pred_region
      _
    $region113: #{tpu_custom_call.1} parent=1 // pred_fallthru
      _
    // Predicated region
    $region114: #{tpu_custom_call.1} parent=1 // pred_check
      _
    $region115: #{tpu_custom_call.1} parent=1 // pred_check_branch
      %146 = sbr.rel (0) target = $region117
    $region116: #{tpu_custom_call.1} parent=1 // pred_region
      _
    $region117: #{tpu_custom_call.1} parent=1 // pred_fallthru
      _
    // Predicated region
    $region118: #{tpu_custom_call.1} parent=1 // pred_check
      _
    $region119: #{tpu_custom_call.1} parent=1 // pred_check_branch
      %148 = sbr.rel (0) target = $region121
    $region120: #{tpu_custom_call.1} parent=1 // pred_region
      _
    $region121: #{tpu_custom_call.1} parent=1 // pred_fallthru
      _
    // Predicated region
    $region122: #{tpu_custom_call.1} parent=1 // pred_check
      _
    $region123: #{tpu_custom_call.1} parent=1 // pred_check_branch
      %150 = sbr.rel (0) target = $region125
    $region124: #{tpu_custom_call.1} parent=1 // pred_region
      _
    $region125: #{tpu_custom_call.1} parent=1 // pred_fallthru
      _
    // Predicated region
    $region126: #{tpu_custom_call.1} parent=1 // pred_check
      _
    $region127: #{tpu_custom_call.1} parent=1 // pred_check_branch
      %152 = sbr.rel (0) target = $region129
    $region128: #{tpu_custom_call.1} parent=1 // pred_region
      _
    $region129: #{tpu_custom_call.1} parent=1 // pred_fallthru
      _
    // Predicated region
    $region130: #{tpu_custom_call.1} parent=1 // pred_check
      _
    $region131: #{tpu_custom_call.1} parent=1 // pred_check_branch
      %154 = sbr.rel (0) target = $region133
    $region132: #{tpu_custom_call.1} parent=1 // pred_region
      _
    $region133: #{tpu_custom_call.1} parent=1 // pred_fallthru
      _
    // Predicated region
    $region134: #{tpu_custom_call.1} parent=1 // pred_check
      _
    $region135: #{tpu_custom_call.1} parent=1 // pred_check_branch
      %156 = sbr.rel (0) target = $region137
    $region136: #{tpu_custom_call.1} parent=1 // pred_region
      _
    $region137: #{tpu_custom_call.1} parent=1 // pred_fallthru
      _
    // Predicated region
    $region138: #{tpu_custom_call.1} parent=1 // pred_check
      _
    $region139: #{tpu_custom_call.1} parent=1 // pred_check_branch
      %158 = sbr.rel (0) target = $region141
    $region140: #{tpu_custom_call.1} parent=1 // pred_region
      _
    $region141: #{tpu_custom_call.1} parent=1 // pred_fallthru
      _
    // Predicated region
    $region142: #{tpu_custom_call.1} parent=1 // pred_check
      _
    $region143: #{tpu_custom_call.1} parent=1 // pred_check_branch
      %160 = sbr.rel (0) target = $region145
    $region144: #{tpu_custom_call.1} parent=1 // pred_region
      _
    $region145: #{tpu_custom_call.1} parent=1 // pred_fallthru
      _
    // Predicated region
    $region146: #{tpu_custom_call.1} parent=1 // pred_check
      _
    $region147: #{tpu_custom_call.1} parent=1 // pred_check_branch
      %162 = sbr.rel (0) target = $region149
    $region148: #{tpu_custom_call.1} parent=1 // pred_region
      _
    $region149: #{tpu_custom_call.1} parent=1 // pred_fallthru
      _
    // Predicated region
    $region150: #{tpu_custom_call.1} parent=1 // pred_check
      _
    $region151: #{tpu_custom_call.1} parent=1 // pred_check_branch
      %164 = sbr.rel (0) target = $region153
    $region152: #{tpu_custom_call.1} parent=1 // pred_region
      _
    $region153: #{tpu_custom_call.1} parent=1 // pred_fallthru
      _
    // Predicated region
    $region154: #{tpu_custom_call.1} parent=1 // pred_check
      _
    $region155: #{tpu_custom_call.1} parent=1 // pred_check_branch
      %166 = sbr.rel (0) target = $region157
    $region156: #{tpu_custom_call.1} parent=1 // pred_region
      _
    $region157: #{tpu_custom_call.1} parent=1 // pred_fallthru
      _
    // Predicated region
    $region158: #{tpu_custom_call.1} parent=1 // pred_check
      _
    $region159: #{tpu_custom_call.1} parent=1 // pred_check_branch
      %168 = sbr.rel (0) target = $region161
    $region160: #{tpu_custom_call.1} parent=1 // pred_region
      _
    $region161: #{tpu_custom_call.1} parent=1 // pred_fallthru
      _
    // Predicated region
    $region162: #{tpu_custom_call.1} parent=1 // pred_check
      _
    $region163: #{tpu_custom_call.1} parent=1 // pred_check_branch
      %170 = sbr.rel (0) target = $region165
    $region164: #{tpu_custom_call.1} parent=1 // pred_region
      _
    $region165: #{tpu_custom_call.1} parent=1 // pred_fallthru
      _
    %v171 = vld [vmem:[%s1] sm:$0xff]
    %v172 = vld [vmem:[%s1 + $0x8] sm:$0xff]
    %v173 = vld [vmem:[%s11] sm:$0xff]
    %v174 = vld [vmem:[%s11 + $0x8] sm:$0xff]
    %v175 = vld [vmem:[%s11 + $0x10] sm:$0xff]
    %v176 = vld [vmem:[%s11 + $0x18] sm:$0xff]
    %v177 = vld [vmem:[%s11 + $0x20] sm:$0xff]
    %v178 = vld [vmem:[%s11 + $0x28] sm:$0xff]
    %v179 = vld [vmem:[%s11 + $0x30] sm:$0xff]
    %v180 = vld [vmem:[%s11 + $0x38] sm:$0xff]
    %v181 = vld [vmem:[%s11 + $0x40] sm:$0xff]
    %v182 = vld [vmem:[%s11 + $0x48] sm:$0xff]
    %v183 = vld [vmem:[%s11 + $0x50] sm:$0xff]
    %v184 = vld [vmem:[%s11 + $0x58] sm:$0xff]
    %v185 = vld [vmem:[%s11 + $0x60] sm:$0xff]
    %v186 = vld [vmem:[%s11 + $0x68] sm:$0xff]
    %v187 = vld [vmem:[%s11 + $0x70] sm:$0xff]
    %v188 = vld [vmem:[%s11 + $0x78] sm:$0xff]
    %v189 = vld [vmem:[%s11 + $0x80] sm:$0xff]
    %v190 = vld [vmem:[%s11 + $0x88] sm:$0xff]
    %v191 = vld [vmem:[%s11 + $0x90] sm:$0xff]
    %v192 = vld [vmem:[%s11 + $0x98] sm:$0xff]
    %v193 = vld [vmem:[%s11 + $0xa0] sm:$0xff]
    %v194 = vld [vmem:[%s11 + $0xa8] sm:$0xff]
    %v195 = vld [vmem:[%s11 + $0xb0] sm:$0xff]
    %v196 = vld [vmem:[%s11 + $0xb8] sm:$0xff]
    %v197 = vld [vmem:[%s13] sm:$0x1]
    %v199 = vlaneseq
    %v200 = vshrl.u32 %v199, 7
    %v201 = vsub.s32 0, %v200
    %v202 = vrot.slane %v197, %v201
    %vm204 = vcmask 523264
    %v206 = vsel %vm204, %v172, 0
    %208 = vmatprep.subr.mxu0 0.0
    %209 = vmatpush1.msra.mxu0 %v188
    %210 = vmatprep.subr.mxu0 0.0
    %211 = vmatpush1.msra.mxu0 %v187
    %212 = vmatprep.subr.mxu0 0.0
    %213 = vmatpush1.msra.mxu0 %v186
    %214 = vmatprep.subr.mxu0 0.0
    %215 = vmatpush1.msra.mxu0 %v185
    %216 = vmatprep.subr.mxu0 0.0
    %217 = vmatpush1.msra.mxu0 %v184
    %218 = vmatprep.subr.mxu0 0.0
    %219 = vmatpush1.msra.mxu0 %v183
    %220 = vmatprep.subr.mxu0 0.0
    %221 = vmatpush1.msra.mxu0 %v182
    %222 = vmatprep.subr.mxu0 0.0
    %223 = vmatpush1.msra.mxu0 %v181
    %224 = vmatprep.subr.mxu0 0.0
    %225 = vmatpush1.msra.mxu0 %v180
    %226 = vmatprep.subr.mxu0 0.0
    %227 = vmatpush1.msra.mxu0 %v179
    %228 = vmatprep.subr.mxu0 0.0
    %229 = vmatpush1.msra.mxu0 %v178
    %230 = vmatprep.subr.mxu0 0.0
    %231 = vmatpush1.msra.mxu0 %v177
    %232 = vmatprep.subr.mxu0 0.0
    %233 = vmatpush1.msra.mxu0 %v176
    %234 = vmatprep.subr.mxu0 0.0
    %235 = vmatpush1.msra.mxu0 %v175
    %236 = vmatprep.subr.mxu0 0.0
    %237 = vmatpush1.msra.mxu0 %v174
    %238 = vmatprep.subr.mxu0 0.0
    %239 = vmatpush1.msra.mxu0 %v173
    %240 = vmatprep.subr.mxu0 0.0
    %241 = vmatpush2.msra.mxu0 0.0
    %242 = vmatprep.subr.mxu0 0.0
    %243 = vmatpush2.msra.mxu0 0.0
    %244 = vmatprep.subr.mxu0 0.0
    %245 = vmatpush2.msra.mxu0 0.0
    %246 = vmatprep.subr.mxu0 0.0
    %247 = vmatpush2.msra.mxu0 0.0
    %248 = vmatprep.subr.mxu0 0.0
    %249 = vmatpush2.msra.mxu0 0.0
    %250 = vmatprep.subr.mxu0 0.0
    %251 = vmatpush2.msra.mxu0 0.0
    %252 = vmatprep.subr.mxu0 0.0
    %253 = vmatpush2.msra.mxu0 0.0
    %254 = vmatprep.subr.mxu0 0.0
    %255 = vmatpush2.msra.mxu0 0.0
    %256 = vmatprep.subr.mxu0 0.0
    %257 = vmatpush2.msra.mxu0 %v196
    %258 = vmatprep.subr.mxu0 0.0
    %259 = vmatpush2.msra.mxu0 %v195
    %260 = vmatprep.subr.mxu0 0.0
    %261 = vmatpush2.msra.mxu0 %v194
    %262 = vmatprep.subr.mxu0 0.0
    %263 = vmatpush2.msra.mxu0 %v193
    %264 = vmatprep.subr.mxu0 0.0
    %265 = vmatpush2.msra.mxu0 %v192
    %266 = vmatprep.subr.mxu0 0.0
    %267 = vmatpush2.msra.mxu0 %v191
    %268 = vmatprep.subr.mxu0 0.0
    %269 = vmatpush2.msra.mxu0 %v190
    %270 = vmatprep.subr.mxu0 0.0
    %271 = vmatpush2.msra.mxu0 %v189
    %272 = vmatprep.mubr.f32.mxu0 %v206
    %273 = vmatmul.mubr.f32.gmra.mxu0 %v171
    %v274 = vpop.f32.mrf.mxu0
    %v275 = vadd.f32 %v202, %v274
    %v276 = vpop.f32.mrf.mxu0
    %277 = vdwg.mxu0
    %v278 = vld [vmem:[%s5] sm:$0xff]
    %v279 = vld [vmem:[%s5 + $0x8] sm:$0x3]
    %v280 = vld [vmem:[%s7] sm:$0xff]
    %v281 = vld [vmem:[%s7 + $0x8] sm:$0x3]
    %vm282 = vcmask 64512
    %v284 = vsel %vm282, %v278, 0
    %v287 = vsel %vm282, %v279, 0
    %289 = vmatprep.subr.mxu0 0.0
    %290 = vmatpush1.msra.mxu0 0.0
    %291 = vmatprep.subr.mxu0 0.0
    %292 = vmatpush1.msra.mxu0 0.0
    %293 = vmatprep.subr.mxu0 0.0
    %294 = vmatpush1.msra.mxu0 0.0
    %295 = vmatprep.subr.mxu0 0.0
    %296 = vmatpush1.msra.mxu0 0.0
    %297 = vmatprep.subr.mxu0 0.0
    %298 = vmatpush1.msra.mxu0 0.0
    %299 = vmatprep.subr.mxu0 0.0
    %300 = vmatpush1.msra.mxu0 0.0
    %301 = vmatprep.subr.mxu0 0.0
    %302 = vmatpush1.msra.mxu0 0.0
    %303 = vmatprep.subr.mxu0 0.0
    %304 = vmatpush1.msra.mxu0 0.0
    %305 = vmatprep.subr.mxu0 0.0
    %306 = vmatpush1.msra.mxu0 0.0
    %307 = vmatprep.subr.mxu0 0.0
    %308 = vmatpush1.msra.mxu0 0.0
    %309 = vmatprep.subr.mxu0 0.0
    %310 = vmatpush1.msra.mxu0 0.0
    %311 = vmatprep.subr.mxu0 0.0
    %312 = vmatpush1.msra.mxu0 0.0
    %313 = vmatprep.subr.mxu0 0.0
    %314 = vmatpush1.msra.mxu0 0.0
    %315 = vmatprep.subr.mxu0 0.0
    %316 = vmatpush1.msra.mxu0 0.0
    %317 = vmatprep.subr.mxu0 0.0
    %318 = vmatpush1.msra.mxu0 0.0
    %319 = vmatprep.subr.mxu0 0.0
    %320 = vmatpush1.msra.mxu0 %v275
    %321 = vmatprep.subr.mxu0 0.0
    %322 = vmatpush2.msra.mxu0 0.0
    %323 = vmatprep.subr.mxu0 0.0
    %324 = vmatpush2.msra.mxu0 0.0
    %325 = vmatprep.subr.mxu0 0.0
    %326 = vmatpush2.msra.mxu0 0.0
    %327 = vmatprep.subr.mxu0 0.0
    %328 = vmatpush2.msra.mxu0 0.0
    %329 = vmatprep.subr.mxu0 0.0
    %330 = vmatpush2.msra.mxu0 0.0
    %331 = vmatprep.subr.mxu0 0.0
    %332 = vmatpush2.msra.mxu0 0.0
    %333 = vmatprep.subr.mxu0 0.0
    %334 = vmatpush2.msra.mxu0 0.0
    %335 = vmatprep.subr.mxu0 0.0
    %336 = vmatpush2.msra.mxu0 0.0
    %337 = vmatprep.subr.mxu0 0.0
    %338 = vmatpush2.msra.mxu0 0.0
    %339 = vmatprep.subr.mxu0 0.0
    %340 = vmatpush2.msra.mxu0 0.0
    %341 = vmatprep.subr.mxu0 0.0
    %342 = vmatpush2.msra.mxu0 0.0
    %343 = vmatprep.subr.mxu0 0.0
    %344 = vmatpush2.msra.mxu0 0.0
    %345 = vmatprep.subr.mxu0 0.0
    %346 = vmatpush2.msra.mxu0 0.0
    %347 = vmatprep.subr.mxu0 0.0
    %348 = vmatpush2.msra.mxu0 0.0
    %349 = vmatprep.subr.mxu0 0.0
    %350 = vmatpush2.msra.mxu0 0.0
    %351 = vmatprep.subr.mxu0 0.0
    %352 = vmatpush2.msra.mxu0 0.0
    %353 = vmatprep.mubr.f32.mxu0 0.0
    %354 = vmatmul.mubr.f32.gmra.mxu0 %v284
    %v355 = vpop.f32.mrf.mxu0
    %v356 = vadd.f32 %v280, %v355
    %v357 = vpop.f32.mrf.mxu0
    %358 = vmatprep.mubr.f32.mxu0 0.0
    %359 = vmatmul.mubr.f32.gmra.mxu0 %v287
    %v360 = vpop.f32.mrf.mxu0
    %v361 = vadd.f32 %v281, %v360
    %v362 = vpop.f32.mrf.mxu0
    %363 = vdwg.mxu0
    %v364 = vld [vmem:[%s3] sm:$0xff]
    %v365 = vld [vmem:[%s3 + $0x8] sm:$0x3]
    %v366 = vld [vmem:[%s15] sm:$0x1]
    %v367 = vld [vmem:[%s17] sm:$0x1]
    %vm368 = vcmask 261120
    %v369 = vsel %vm368, %v356, 0.0
    %370 = vadd.xlane.f32.xlu0 %v369
    %v371 = vpop.xlane.xlu0 %370
    %vm372 = vcmask 254976
    %v373 = vsel %vm372, %v361, 0.0
    %374 = vadd.xlane.f32.xlu0 %v373
    %v375 = vpop.xlane.xlu0 %374
    %v376 = vrcp.pop 32.0
    %v377 = vmul.f32 %v371, %v376
    %v378 = vmul.f32 %v375, %v376
    %v379 = vsub.f32 %v356, %v377
    %v380 = vsub.f32 %v361, %v378
    %v381 = vmul.f32 %v379, %v379
    %v382 = vmul.f32 %v380, %v380
    %v383 = vsel %vm368, %v381, 0.0
    %384 = vadd.xlane.f32.xlu0 %v383
    %v385 = vpop.xlane.xlu0 %384
    %v386 = vsel %vm372, %v382, 0.0
    %387 = vadd.xlane.f32.xlu0 %v386
    %v388 = vpop.xlane.xlu0 %387
    %v389 = vmul.f32 %v385, %v376
    %v390 = vmul.f32 %v388, %v376
    %v391 = vadd.f32 %v389, 1e-12
    %v392 = vadd.f32 %v390, 1e-12
    %v393 = vrsqrt.pop %v391
    %v394 = vrsqrt.pop %v392
    %v395 = vmul.f32 %v379, %v393
    %v396 = vmul.f32 %v380, %v394
    %v398 = vlaneseq
    %v399 = vshrl.u32 %v398, 7
    %v400 = vsub.s32 0, %v399
    %v401 = vrot.slane %v366, %v400
    %v403 = vmul.f32 %v395, %v401
    %v404 = vmul.f32 %v396, %v401
    %v406 = vlaneseq
    %v407 = vshrl.u32 %v406, 7
    %v408 = vsub.s32 0, %v407
    %v409 = vrot.slane %v367, %v408
    %v411 = vadd.f32 %v403, %v409
    %v412 = vadd.f32 %v404, %v409
    %v413 = vld [vmem:[%s19] sm:$0xff]
    %v414 = vld [vmem:[%s19 + $0x8] sm:$0xff]
    %v415 = vld [vmem:[%s19 + $0x10] sm:$0xff]
    %v416 = vld [vmem:[%s19 + $0x18] sm:$0xff]
    %v417 = vld [vmem:[%s21] sm:$0x1]
    %v419 = vlaneseq
    %v420 = vshrl.u32 %v419, 7
    %v421 = vsub.s32 0, %v420
    %v422 = vrot.slane %v417, %v421
    %v425 = vsel %vm368, %v411, 0
    %v428 = vsel %vm368, %v412, 0
    %430 = vmatprep.subr.mxu0 0.0
    %431 = vmatpush1.msra.mxu0 0.0
    %432 = vmatprep.subr.mxu0 0.0
    %433 = vmatpush1.msra.mxu0 0.0
    %434 = vmatprep.subr.mxu0 0.0
    %435 = vmatpush1.msra.mxu0 0.0
    %436 = vmatprep.subr.mxu0 0.0
    %437 = vmatpush1.msra.mxu0 0.0
    %438 = vmatprep.subr.mxu0 0.0
    %439 = vmatpush1.msra.mxu0 0.0
    %440 = vmatprep.subr.mxu0 0.0
    %441 = vmatpush1.msra.mxu0 0.0
    %442 = vmatprep.subr.mxu0 0.0
    %443 = vmatpush1.msra.mxu0 0.0
    %444 = vmatprep.subr.mxu0 0.0
    %445 = vmatpush1.msra.mxu0 0.0
    %446 = vmatprep.subr.mxu0 0.0
    %447 = vmatpush1.msra.mxu0 0.0
    %448 = vmatprep.subr.mxu0 0.0
    %449 = vmatpush1.msra.mxu0 0.0
    %450 = vmatprep.subr.mxu0 0.0
    %451 = vmatpush1.msra.mxu0 0.0
    %452 = vmatprep.subr.mxu0 0.0
    %453 = vmatpush1.msra.mxu0 0.0
    %454 = vmatprep.subr.mxu0 0.0
    %455 = vmatpush1.msra.mxu0 %v416
    %456 = vmatprep.subr.mxu0 0.0
    %457 = vmatpush1.msra.mxu0 %v415
    %458 = vmatprep.subr.mxu0 0.0
    %459 = vmatpush1.msra.mxu0 %v414
    %460 = vmatprep.subr.mxu0 0.0
    %461 = vmatpush1.msra.mxu0 %v413
    %462 = vmatprep.subr.mxu0 0.0
    %463 = vmatpush2.msra.mxu0 0.0
    %464 = vmatprep.subr.mxu0 0.0
    %465 = vmatpush2.msra.mxu0 0.0
    %466 = vmatprep.subr.mxu0 0.0
    %467 = vmatpush2.msra.mxu0 0.0
    %468 = vmatprep.subr.mxu0 0.0
    %469 = vmatpush2.msra.mxu0 0.0
    %470 = vmatprep.subr.mxu0 0.0
    %471 = vmatpush2.msra.mxu0 0.0
    %472 = vmatprep.subr.mxu0 0.0
    %473 = vmatpush2.msra.mxu0 0.0
    %474 = vmatprep.subr.mxu0 0.0
    %475 = vmatpush2.msra.mxu0 0.0
    %476 = vmatprep.subr.mxu0 0.0
    %477 = vmatpush2.msra.mxu0 0.0
    %478 = vmatprep.subr.mxu0 0.0
    %479 = vmatpush2.msra.mxu0 0.0
    %480 = vmatprep.subr.mxu0 0.0
    %481 = vmatpush2.msra.mxu0 0.0
    %482 = vmatprep.subr.mxu0 0.0
    %483 = vmatpush2.msra.mxu0 0.0
    %484 = vmatprep.subr.mxu0 0.0
    %485 = vmatpush2.msra.mxu0 0.0
    %486 = vmatprep.subr.mxu0 0.0
    %487 = vmatpush2.msra.mxu0 0.0
    %488 = vmatprep.subr.mxu0 0.0
    %489 = vmatpush2.msra.mxu0 0.0
    %490 = vmatprep.subr.mxu0 0.0
    %491 = vmatpush2.msra.mxu0 0.0
    %492 = vmatprep.subr.mxu0 0.0
    %493 = vmatpush2.msra.mxu0 0.0
    %494 = vmatprep.mubr.f32.mxu0 0.0
    %495 = vmatmul.mubr.f32.gmra.mxu0 %v425
    %v496 = vpop.f32.mrf.mxu0
    %v497 = vadd.f32 %v422, %v496
    %v498 = vpop.f32.mrf.mxu0
    %499 = vmatprep.mubr.f32.mxu0 0.0
    %500 = vmatmul.mubr.f32.gmra.mxu0 %v428
    %v501 = vpop.f32.mrf.mxu0
    %v502 = vadd.f32 %v422, %v501
    %v503 = vpop.f32.mrf.mxu0
    %504 = vdwg.mxu0
    %v505 = vld [vmem:[%s23] sm:$0xff]
    %v506 = vld [vmem:[%s23 + $0x8] sm:$0xff]
    %v507 = vld [vmem:[%s23 + $0x10] sm:$0xff]
    %v508 = vld [vmem:[%s23 + $0x18] sm:$0xff]
    %511 = vrot.lane.b32.xlu0 %v497, 96
    %v512 = vpop.permute.xlu0 %511
    %513 = vrot.lane.b32.xlu0 %v502, 96
    %v514 = vpop.permute.xlu0 %513
    %v515 = vsel %vm282, %v497, 0
    %v517 = vsel %vm282, %v502, 0
    %v519 = vsel %vm282, %v512, 0
    %v521 = vsel %vm282, %v514, 0
    %523 = vmatprep.subr.mxu0 0.0
    %524 = vmatpush1.xpose.msra.mxu0 0.0
    %525 = vmatprep.subr.mxu0 0.0
    %526 = vmatpush1.xpose.msra.mxu0 0.0
    %527 = vmatprep.subr.mxu0 0.0
    %528 = vmatpush1.xpose.msra.mxu0 0.0
    %529 = vmatprep.subr.mxu0 0.0
    %530 = vmatpush1.xpose.msra.mxu0 0.0
    %531 = vmatprep.subr.mxu0 0.0
    %532 = vmatpush1.xpose.msra.mxu0 0.0
    %533 = vmatprep.subr.mxu0 0.0
    %534 = vmatpush1.xpose.msra.mxu0 0.0
    %535 = vmatprep.subr.mxu0 0.0
    %536 = vmatpush1.xpose.msra.mxu0 0.0
    %537 = vmatprep.subr.mxu0 0.0
    %538 = vmatpush1.xpose.msra.mxu0 0.0
    %539 = vmatprep.subr.mxu0 0.0
    %540 = vmatpush1.xpose.msra.mxu0 0.0
    %541 = vmatprep.subr.mxu0 0.0
    %542 = vmatpush1.xpose.msra.mxu0 0.0
    %543 = vmatprep.subr.mxu0 0.0
    %544 = vmatpush1.xpose.msra.mxu0 0.0
    %545 = vmatprep.subr.mxu0 0.0
    %546 = vmatpush1.xpose.msra.mxu0 0.0
    %547 = vmatprep.subr.mxu0 0.0
    %548 = vmatpush1.xpose.msra.mxu0 0.0
    %549 = vmatprep.subr.mxu0 0.0
    %550 = vmatpush1.xpose.msra.mxu0 0.0
    %551 = vmatprep.subr.mxu0 0.0
    %552 = vmatpush1.xpose.msra.mxu0 %v521
    %553 = vmatprep.subr.mxu0 0.0
    %554 = vmatpush1.xpose.msra.mxu0 %v519
    %555 = vmatprep.subr.mxu0 0.0
    %556 = vmatpush2.xpose.msra.mxu0 0.0
    %557 = vmatprep.subr.mxu0 0.0
    %558 = vmatpush2.xpose.msra.mxu0 0.0
    %559 = vmatprep.subr.mxu0 0.0
    %560 = vmatpush2.xpose.msra.mxu0 0.0
    %561 = vmatprep.subr.mxu0 0.0
    %562 = vmatpush2.xpose.msra.mxu0 0.0
    %563 = vmatprep.subr.mxu0 0.0
    %564 = vmatpush2.xpose.msra.mxu0 0.0
    %565 = vmatprep.subr.mxu0 0.0
    %566 = vmatpush2.xpose.msra.mxu0 0.0
    %567 = vmatprep.subr.mxu0 0.0
    %568 = vmatpush2.xpose.msra.mxu0 0.0
    %569 = vmatprep.subr.mxu0 0.0
    %570 = vmatpush2.xpose.msra.mxu0 0.0
    %571 = vmatprep.subr.mxu0 0.0
    %572 = vmatpush2.xpose.msra.mxu0 0.0
    %573 = vmatprep.subr.mxu0 0.0
    %574 = vmatpush2.xpose.msra.mxu0 0.0
    %575 = vmatprep.subr.mxu0 0.0
    %576 = vmatpush2.xpose.msra.mxu0 0.0
    %577 = vmatprep.subr.mxu0 0.0
    %578 = vmatpush2.xpose.msra.mxu0 0.0
    %579 = vmatprep.subr.mxu0 0.0
    %580 = vmatpush2.xpose.msra.mxu0 0.0
    %581 = vmatprep.subr.mxu0 0.0
    %582 = vmatpush2.xpose.msra.mxu0 0.0
    %583 = vmatprep.subr.mxu0 0.0
    %584 = vmatpush2.xpose.msra.mxu0 0.0
    %585 = vmatprep.subr.mxu0 0.0
    %586 = vmatpush2.xpose.msra.mxu0 0.0
    %587 = vmatprep.mubr.f32.mxu0 0.0
    %588 = vmatmul.mubr.f32.gmra.mxu0 %v515
    %v589 = vpop.f32.mrf.mxu0
    %v590 = vadd.f32 0.0, %v589
    %v591 = vpop.f32.mrf.mxu0
    %592 = vmatprep.mubr.f32.mxu0 0.0
    %593 = vmatmul.mubr.f32.gmra.mxu0 %v517
    %v594 = vpop.f32.mrf.mxu0
    %v595 = vadd.f32 0.0, %v594
    %v596 = vpop.f32.mrf.mxu0
    %597 = vdwg.mxu0
    %v598 = vmul.f32 %v590, 0.35355338
    %v599 = vmul.f32 %v595, 0.35355338
    %v600 = vadd.f32 %v598, %v364
    %v601 = vadd.f32 %v599, %v365
    %vm602 = vcmask 80896
    %v603 = vsel %vm602, %v600, -inf
    %604 = vmax.xlane.f32.xlu0 %v603
    %v605 = vpop.xlane.xlu0 %604
    %vm606 = vcmask 74752
    %v607 = vsel %vm606, %v601, -inf
    %608 = vmax.xlane.f32.xlu0 %v607
    %v609 = vpop.xlane.xlu0 %608
    %v610 = vsub.f32 %v600, %v605
    %v611 = vsub.f32 %v601, %v609
    %v612 = vmul.f32 %v610, 1.442695
    %v613 = vpow.pop %v612
    %v614 = vmul.f32 %v611, 1.442695
    %v615 = vpow.pop %v614
    %v616 = vsel %vm602, %v613, 0.0
    %617 = vadd.xlane.f32.xlu0 %v616
    %v618 = vpop.xlane.xlu0 %617
    %v619 = vsel %vm606, %v615, 0.0
    %620 = vadd.xlane.f32.xlu0 %v619
    %v621 = vpop.xlane.xlu0 %620
    %v622 = vrcp.pop %v618
    %v623 = vrcp.pop %v621
    %v624 = vmul.f32 %v613, %v622
    %v625 = vmul.f32 %v615, %v623
    %626 = vrot.lane.b32.xlu0 %v497, 64
    %v627 = vpop.permute.xlu0 %626
    %628 = vrot.lane.b32.xlu0 %v502, 64
    %v629 = vpop.permute.xlu0 %628
    %v632 = vsel %vm602, %v624, 0
    %v635 = vsel %vm602, %v625, 0
    %vm637 = vcmask 1041408
    %v638 = vsel %vm637, %v629, 0
    %640 = vmatprep.subr.mxu0 0.0
    %641 = vmatpush1.msra.mxu0 0.0
    %642 = vmatprep.subr.mxu0 0.0
    %643 = vmatpush1.msra.mxu0 0.0
    %644 = vmatprep.subr.mxu0 0.0
    %645 = vmatpush1.msra.mxu0 0.0
    %646 = vmatprep.subr.mxu0 0.0
    %647 = vmatpush1.msra.mxu0 0.0
    %648 = vmatprep.subr.mxu0 0.0
    %649 = vmatpush1.msra.mxu0 0.0
    %650 = vmatprep.subr.mxu0 0.0
    %651 = vmatpush1.msra.mxu0 0.0
    %652 = vmatprep.subr.mxu0 0.0
    %653 = vmatpush1.msra.mxu0 0.0
    %654 = vmatprep.subr.mxu0 0.0
    %655 = vmatpush1.msra.mxu0 0.0
    %656 = vmatprep.subr.mxu0 0.0
    %657 = vmatpush1.msra.mxu0 0.0
    %658 = vmatprep.subr.mxu0 0.0
    %659 = vmatpush1.msra.mxu0 0.0
    %660 = vmatprep.subr.mxu0 0.0
    %661 = vmatpush1.msra.mxu0 0.0
    %662 = vmatprep.subr.mxu0 0.0
    %663 = vmatpush1.msra.mxu0 0.0
    %664 = vmatprep.subr.mxu0 0.0
    %665 = vmatpush1.msra.mxu0 0.0
    %666 = vmatprep.subr.mxu0 0.0
    %667 = vmatpush1.msra.mxu0 0.0
    %668 = vmatprep.subr.mxu0 0.0
    %669 = vmatpush1.msra.mxu0 %v638
    %670 = vmatprep.subr.mxu0 0.0
    %671 = vmatpush1.msra.mxu0 %v627
    %672 = vmatprep.subr.mxu0 0.0
    %673 = vmatpush2.msra.mxu0 0.0
    %674 = vmatprep.subr.mxu0 0.0
    %675 = vmatpush2.msra.mxu0 0.0
    %676 = vmatprep.subr.mxu0 0.0
    %677 = vmatpush2.msra.mxu0 0.0
    %678 = vmatprep.subr.mxu0 0.0
    %679 = vmatpush2.msra.mxu0 0.0
    %680 = vmatprep.subr.mxu0 0.0
    %681 = vmatpush2.msra.mxu0 0.0
    %682 = vmatprep.subr.mxu0 0.0
    %683 = vmatpush2.msra.mxu0 0.0
    %684 = vmatprep.subr.mxu0 0.0
    %685 = vmatpush2.msra.mxu0 0.0
    %686 = vmatprep.subr.mxu0 0.0
    %687 = vmatpush2.msra.mxu0 0.0
    %688 = vmatprep.subr.mxu0 0.0
    %689 = vmatpush2.msra.mxu0 0.0
    %690 = vmatprep.subr.mxu0 0.0
    %691 = vmatpush2.msra.mxu0 0.0
    %692 = vmatprep.subr.mxu0 0.0
    %693 = vmatpush2.msra.mxu0 0.0
    %694 = vmatprep.subr.mxu0 0.0
    %695 = vmatpush2.msra.mxu0 0.0
    %696 = vmatprep.subr.mxu0 0.0
    %697 = vmatpush2.msra.mxu0 0.0
    %698 = vmatprep.subr.mxu0 0.0
    %699 = vmatpush2.msra.mxu0 0.0
    %700 = vmatprep.subr.mxu0 0.0
    %701 = vmatpush2.msra.mxu0 0.0
    %702 = vmatprep.subr.mxu0 0.0
    %703 = vmatpush2.msra.mxu0 0.0
    %704 = vmatprep.mubr.f32.mxu0 0.0
    %705 = vmatmul.mubr.f32.gmra.mxu0 %v632
    %v706 = vpop.f32.mrf.mxu0
    %v707 = vadd.f32 0.0, %v706
    %v708 = vpop.f32.mrf.mxu0
    %709 = vmatprep.mubr.f32.mxu0 0.0
    %710 = vmatmul.mubr.f32.gmra.mxu0 %v635
    %v711 = vpop.f32.mrf.mxu0
    %v712 = vadd.f32 0.0, %v711
    %v713 = vpop.f32.mrf.mxu0
    %714 = vdwg.mxu0
    %715 = vrot.lane.b32.xlu0 %v497, 120
    %v716 = vpop.permute.xlu0 %715
    %717 = vrot.lane.b32.xlu0 %v502, 120
    %v718 = vpop.permute.xlu0 %717
    %719 = vrot.lane.b32.xlu0 %v497, 88
    %v720 = vpop.permute.xlu0 %719
    %721 = vrot.lane.b32.xlu0 %v502, 88
    %v722 = vpop.permute.xlu0 %721
    %v723 = vsel %vm282, %v716, 0
    %v725 = vsel %vm282, %v718, 0
    %v727 = vsel %vm282, %v720, 0
    %v729 = vsel %vm282, %v722, 0
    %731 = vmatprep.subr.mxu0 0.0
    %732 = vmatpush1.xpose.msra.mxu0 0.0
    %733 = vmatprep.subr.mxu0 0.0
    %734 = vmatpush1.xpose.msra.mxu0 0.0
    %735 = vmatprep.subr.mxu0 0.0
    %736 = vmatpush1.xpose.msra.mxu0 0.0
    %737 = vmatprep.subr.mxu0 0.0
    %738 = vmatpush1.xpose.msra.mxu0 0.0
    %739 = vmatprep.subr.mxu0 0.0
    %740 = vmatpush1.xpose.msra.mxu0 0.0
    %741 = vmatprep.subr.mxu0 0.0
    %742 = vmatpush1.xpose.msra.mxu0 0.0
    %743 = vmatprep.subr.mxu0 0.0
    %744 = vmatpush1.xpose.msra.mxu0 0.0
    %745 = vmatprep.subr.mxu0 0.0
    %746 = vmatpush1.xpose.msra.mxu0 0.0
    %747 = vmatprep.subr.mxu0 0.0
    %748 = vmatpush1.xpose.msra.mxu0 0.0
    %749 = vmatprep.subr.mxu0 0.0
    %750 = vmatpush1.xpose.msra.mxu0 0.0
    %751 = vmatprep.subr.mxu0 0.0
    %752 = vmatpush1.xpose.msra.mxu0 0.0
    %753 = vmatprep.subr.mxu0 0.0
    %754 = vmatpush1.xpose.msra.mxu0 0.0
    %755 = vmatprep.subr.mxu0 0.0
    %756 = vmatpush1.xpose.msra.mxu0 0.0
    %757 = vmatprep.subr.mxu0 0.0
    %758 = vmatpush1.xpose.msra.mxu0 0.0
    %759 = vmatprep.subr.mxu0 0.0
    %760 = vmatpush1.xpose.msra.mxu0 %v729
    %761 = vmatprep.subr.mxu0 0.0
    %762 = vmatpush1.xpose.msra.mxu0 %v727
    %763 = vmatprep.subr.mxu0 0.0
    %764 = vmatpush2.xpose.msra.mxu0 0.0
    %765 = vmatprep.subr.mxu0 0.0
    %766 = vmatpush2.xpose.msra.mxu0 0.0
    %767 = vmatprep.subr.mxu0 0.0
    %768 = vmatpush2.xpose.msra.mxu0 0.0
    %769 = vmatprep.subr.mxu0 0.0
    %770 = vmatpush2.xpose.msra.mxu0 0.0
    %771 = vmatprep.subr.mxu0 0.0
    %772 = vmatpush2.xpose.msra.mxu0 0.0
    %773 = vmatprep.subr.mxu0 0.0
    %774 = vmatpush2.xpose.msra.mxu0 0.0
    %775 = vmatprep.subr.mxu0 0.0
    %776 = vmatpush2.xpose.msra.mxu0 0.0
    %777 = vmatprep.subr.mxu0 0.0
    %778 = vmatpush2.xpose.msra.mxu0 0.0
    %779 = vmatprep.subr.mxu0 0.0
    %780 = vmatpush2.xpose.msra.mxu0 0.0
    %781 = vmatprep.subr.mxu0 0.0
    %782 = vmatpush2.xpose.msra.mxu0 0.0
    %783 = vmatprep.subr.mxu0 0.0
    %784 = vmatpush2.xpose.msra.mxu0 0.0
    %785 = vmatprep.subr.mxu0 0.0
    %786 = vmatpush2.xpose.msra.mxu0 0.0
    %787 = vmatprep.subr.mxu0 0.0
    %788 = vmatpush2.xpose.msra.mxu0 0.0
    %789 = vmatprep.subr.mxu0 0.0
    %790 = vmatpush2.xpose.msra.mxu0 0.0
    %791 = vmatprep.subr.mxu0 0.0
    %792 = vmatpush2.xpose.msra.mxu0 0.0
    %793 = vmatprep.subr.mxu0 0.0
    %794 = vmatpush2.xpose.msra.mxu0 0.0
    %795 = vmatprep.mubr.f32.mxu0 0.0
    %796 = vmatmul.mubr.f32.gmra.mxu0 %v723
    %v797 = vpop.f32.mrf.mxu0
    %v798 = vadd.f32 0.0, %v797
    %v799 = vpop.f32.mrf.mxu0
    %800 = vmatprep.mubr.f32.mxu0 0.0
    %801 = vmatmul.mubr.f32.gmra.mxu0 %v725
    %v802 = vpop.f32.mrf.mxu0
    %v803 = vadd.f32 0.0, %v802
    %v804 = vpop.f32.mrf.mxu0
    %805 = vdwg.mxu0
    %v806 = vmul.f32 %v798, 0.35355338
    %v807 = vmul.f32 %v803, 0.35355338
    %v808 = vadd.f32 %v806, %v364
    %v809 = vadd.f32 %v807, %v365
    %v810 = vsel %vm602, %v808, -inf
    %811 = vmax.xlane.f32.xlu0 %v810
    %v812 = vpop.xlane.xlu0 %811
    %v813 = vsel %vm606, %v809, -inf
    %814 = vmax.xlane.f32.xlu0 %v813
    %v815 = vpop.xlane.xlu0 %814
    %v816 = vsub.f32 %v808, %v812
    %v817 = vsub.f32 %v809, %v815
    %v818 = vmul.f32 %v816, 1.442695
    %v819 = vpow.pop %v818
    %v820 = vmul.f32 %v817, 1.442695
    %v821 = vpow.pop %v820
    %v822 = vsel %vm602, %v819, 0.0
    %823 = vadd.xlane.f32.xlu0 %v822
    %v824 = vpop.xlane.xlu0 %823
    %v825 = vsel %vm606, %v821, 0.0
    %826 = vadd.xlane.f32.xlu0 %v825
    %v827 = vpop.xlane.xlu0 %826
    %v828 = vrcp.pop %v824
    %v829 = vrcp.pop %v827
    %v830 = vmul.f32 %v819, %v828
    %v831 = vmul.f32 %v821, %v829
    %832 = vrot.lane.b32.xlu0 %v497, 56
    %v833 = vpop.permute.xlu0 %832
    %834 = vrot.lane.b32.xlu0 %v502, 56
    %v835 = vpop.permute.xlu0 %834
    %v838 = vsel %vm602, %v830, 0
    %v841 = vsel %vm602, %v831, 0
    %v843 = vsel %vm637, %v835, 0
    %845 = vmatprep.subr.mxu0 0.0
    %846 = vmatpush1.msra.mxu0 0.0
    %847 = vmatprep.subr.mxu0 0.0
    %848 = vmatpush1.msra.mxu0 0.0
    %849 = vmatprep.subr.mxu0 0.0
    %850 = vmatpush1.msra.mxu0 0.0
    %851 = vmatprep.subr.mxu0 0.0
    %852 = vmatpush1.msra.mxu0 0.0
    %853 = vmatprep.subr.mxu0 0.0
    %854 = vmatpush1.msra.mxu0 0.0
    %855 = vmatprep.subr.mxu0 0.0
    %856 = vmatpush1.msra.mxu0 0.0
    %857 = vmatprep.subr.mxu0 0.0
    %858 = vmatpush1.msra.mxu0 0.0
    %859 = vmatprep.subr.mxu0 0.0
    %860 = vmatpush1.msra.mxu0 0.0
    %861 = vmatprep.subr.mxu0 0.0
    %862 = vmatpush1.msra.mxu0 0.0
    %863 = vmatprep.subr.mxu0 0.0
    %864 = vmatpush1.msra.mxu0 0.0
    %865 = vmatprep.subr.mxu0 0.0
    %866 = vmatpush1.msra.mxu0 0.0
    %867 = vmatprep.subr.mxu0 0.0
    %868 = vmatpush1.msra.mxu0 0.0
    %869 = vmatprep.subr.mxu0 0.0
    %870 = vmatpush1.msra.mxu0 0.0
    %871 = vmatprep.subr.mxu0 0.0
    %872 = vmatpush1.msra.mxu0 0.0
    %873 = vmatprep.subr.mxu0 0.0
    %874 = vmatpush1.msra.mxu0 %v843
    %875 = vmatprep.subr.mxu0 0.0
    %876 = vmatpush1.msra.mxu0 %v833
    %877 = vmatprep.subr.mxu0 0.0
    %878 = vmatpush2.msra.mxu0 0.0
    %879 = vmatprep.subr.mxu0 0.0
    %880 = vmatpush2.msra.mxu0 0.0
    %881 = vmatprep.subr.mxu0 0.0
    %882 = vmatpush2.msra.mxu0 0.0
    %883 = vmatprep.subr.mxu0 0.0
    %884 = vmatpush2.msra.mxu0 0.0
    %885 = vmatprep.subr.mxu0 0.0
    %886 = vmatpush2.msra.mxu0 0.0
    %887 = vmatprep.subr.mxu0 0.0
    %888 = vmatpush2.msra.mxu0 0.0
    %889 = vmatprep.subr.mxu0 0.0
    %890 = vmatpush2.msra.mxu0 0.0
    %891 = vmatprep.subr.mxu0 0.0
    %892 = vmatpush2.msra.mxu0 0.0
    %893 = vmatprep.subr.mxu0 0.0
    %894 = vmatpush2.msra.mxu0 0.0
    %895 = vmatprep.subr.mxu0 0.0
    %896 = vmatpush2.msra.mxu0 0.0
    %897 = vmatprep.subr.mxu0 0.0
    %898 = vmatpush2.msra.mxu0 0.0
    %899 = vmatprep.subr.mxu0 0.0
    %900 = vmatpush2.msra.mxu0 0.0
    %901 = vmatprep.subr.mxu0 0.0
    %902 = vmatpush2.msra.mxu0 0.0
    %903 = vmatprep.subr.mxu0 0.0
    %904 = vmatpush2.msra.mxu0 0.0
    %905 = vmatprep.subr.mxu0 0.0
    %906 = vmatpush2.msra.mxu0 0.0
    %907 = vmatprep.subr.mxu0 0.0
    %908 = vmatpush2.msra.mxu0 0.0
    %909 = vmatprep.mubr.f32.mxu0 0.0
    %910 = vmatmul.mubr.f32.gmra.mxu0 %v838
    %v911 = vpop.f32.mrf.mxu0
    %v912 = vadd.f32 0.0, %v911
    %v913 = vpop.f32.mrf.mxu0
    %914 = vmatprep.mubr.f32.mxu0 0.0
    %915 = vmatmul.mubr.f32.gmra.mxu0 %v841
    %v916 = vpop.f32.mrf.mxu0
    %v917 = vadd.f32 0.0, %v916
    %v918 = vpop.f32.mrf.mxu0
    %919 = vdwg.mxu0
    %v921 = vsel %vm282, %v912, 0
    %v924 = vsel %vm282, %v917, 0
    %926 = vmatprep.subr.mxu0 0.0
    %927 = vmatpush1.msra.mxu0 0.0
    %928 = vmatprep.subr.mxu0 0.0
    %929 = vmatpush1.msra.mxu0 0.0
    %930 = vmatprep.subr.mxu0 0.0
    %931 = vmatpush1.msra.mxu0 0.0
    %932 = vmatprep.subr.mxu0 0.0
    %933 = vmatpush1.msra.mxu0 0.0
    %934 = vmatprep.subr.mxu0 0.0
    %935 = vmatpush1.msra.mxu0 0.0
    %936 = vmatprep.subr.mxu0 0.0
    %937 = vmatpush1.msra.mxu0 0.0
    %938 = vmatprep.subr.mxu0 0.0
    %939 = vmatpush1.msra.mxu0 0.0
    %940 = vmatprep.subr.mxu0 0.0
    %941 = vmatpush1.msra.mxu0 0.0
    %942 = vmatprep.subr.mxu0 0.0
    %943 = vmatpush1.msra.mxu0 0.0
    %944 = vmatprep.subr.mxu0 0.0
    %945 = vmatpush1.msra.mxu0 0.0
    %946 = vmatprep.subr.mxu0 0.0
    %947 = vmatpush1.msra.mxu0 0.0
    %948 = vmatprep.subr.mxu0 0.0
    %949 = vmatpush1.msra.mxu0 0.0
    %950 = vmatprep.subr.mxu0 0.0
    %951 = vmatpush1.msra.mxu0 0.0
    %952 = vmatprep.subr.mxu0 0.0
    %953 = vmatpush1.msra.mxu0 0.0
    %954 = vmatprep.subr.mxu0 0.0
    %955 = vmatpush1.msra.mxu0 0.0
    %956 = vmatprep.subr.mxu0 0.0
    %957 = vmatpush1.msra.mxu0 %v506
    %958 = vmatprep.subr.mxu0 0.0
    %959 = vmatpush2.msra.mxu0 0.0
    %960 = vmatprep.subr.mxu0 0.0
    %961 = vmatpush2.msra.mxu0 0.0
    %962 = vmatprep.subr.mxu0 0.0
    %963 = vmatpush2.msra.mxu0 0.0
    %964 = vmatprep.subr.mxu0 0.0
    %965 = vmatpush2.msra.mxu0 0.0
    %966 = vmatprep.subr.mxu0 0.0
    %967 = vmatpush2.msra.mxu0 0.0
    %968 = vmatprep.subr.mxu0 0.0
    %969 = vmatpush2.msra.mxu0 0.0
    %970 = vmatprep.subr.mxu0 0.0
    %971 = vmatpush2.msra.mxu0 0.0
    %972 = vmatprep.subr.mxu0 0.0
    %973 = vmatpush2.msra.mxu0 0.0
    %974 = vmatprep.subr.mxu0 0.0
    %975 = vmatpush2.msra.mxu0 0.0
    %976 = vmatprep.subr.mxu0 0.0
    %977 = vmatpush2.msra.mxu0 0.0
    %978 = vmatprep.subr.mxu0 0.0
    %979 = vmatpush2.msra.mxu0 0.0
    %980 = vmatprep.subr.mxu0 0.0
    %981 = vmatpush2.msra.mxu0 0.0
    %982 = vmatprep.subr.mxu0 0.0
    %983 = vmatpush2.msra.mxu0 0.0
    %984 = vmatprep.subr.mxu0 0.0
    %985 = vmatpush2.msra.mxu0 0.0
    %986 = vmatprep.subr.mxu0 0.0
    %987 = vmatpush2.msra.mxu0 0.0
    %988 = vmatprep.subr.mxu0 0.0
    %989 = vmatpush2.msra.mxu0 0.0
    %990 = vmatprep.mubr.f32.mxu0 0.0
    %991 = vmatmul.mubr.f32.gmra.mxu0 %v921
    %v992 = vpop.f32.mrf.mxu0
    %v993 = vadd.f32 0.0, %v992
    %v994 = vpop.f32.mrf.mxu0
    %995 = vmatprep.mubr.f32.mxu0 0.0
    %996 = vmatmul.mubr.f32.gmra.mxu0 %v924
    %v997 = vpop.f32.mrf.mxu0
    %v998 = vadd.f32 0.0, %v997
    %v999 = vpop.f32.mrf.mxu0
    %1000 = vdwg.mxu0
    %v1002 = vsel %vm282, %v707, 0
    %v1005 = vsel %vm282, %v712, 0
    %1007 = vmatprep.subr.mxu0 0.0
    %1008 = vmatpush1.msra.mxu0 0.0
    %1009 = vmatprep.subr.mxu0 0.0
    %1010 = vmatpush1.msra.mxu0 0.0
    %1011 = vmatprep.subr.mxu0 0.0
    %1012 = vmatpush1.msra.mxu0 0.0
    %1013 = vmatprep.subr.mxu0 0.0
    %1014 = vmatpush1.msra.mxu0 0.0
    %1015 = vmatprep.subr.mxu0 0.0
    %1016 = vmatpush1.msra.mxu0 0.0
    %1017 = vmatprep.subr.mxu0 0.0
    %1018 = vmatpush1.msra.mxu0 0.0
    %1019 = vmatprep.subr.mxu0 0.0
    %1020 = vmatpush1.msra.mxu0 0.0
    %1021 = vmatprep.subr.mxu0 0.0
    %1022 = vmatpush1.msra.mxu0 0.0
    %1023 = vmatprep.subr.mxu0 0.0
    %1024 = vmatpush1.msra.mxu0 0.0
    %1025 = vmatprep.subr.mxu0 0.0
    %1026 = vmatpush1.msra.mxu0 0.0
    %1027 = vmatprep.subr.mxu0 0.0
    %1028 = vmatpush1.msra.mxu0 0.0
    %1029 = vmatprep.subr.mxu0 0.0
    %1030 = vmatpush1.msra.mxu0 0.0
    %1031 = vmatprep.subr.mxu0 0.0
    %1032 = vmatpush1.msra.mxu0 0.0
    %1033 = vmatprep.subr.mxu0 0.0
    %1034 = vmatpush1.msra.mxu0 0.0
    %1035 = vmatprep.subr.mxu0 0.0
    %1036 = vmatpush1.msra.mxu0 0.0
    %1037 = vmatprep.subr.mxu0 0.0
    %1038 = vmatpush1.msra.mxu0 %v505
    %1039 = vmatprep.subr.mxu0 0.0
    %1040 = vmatpush2.msra.mxu0 0.0
    %1041 = vmatprep.subr.mxu0 0.0
    %1042 = vmatpush2.msra.mxu0 0.0
    %1043 = vmatprep.subr.mxu0 0.0
    %1044 = vmatpush2.msra.mxu0 0.0
    %1045 = vmatprep.subr.mxu0 0.0
    %1046 = vmatpush2.msra.mxu0 0.0
    %1047 = vmatprep.subr.mxu0 0.0
    %1048 = vmatpush2.msra.mxu0 0.0
    %1049 = vmatprep.subr.mxu0 0.0
    %1050 = vmatpush2.msra.mxu0 0.0
    %1051 = vmatprep.subr.mxu0 0.0
    %1052 = vmatpush2.msra.mxu0 0.0
    %1053 = vmatprep.subr.mxu0 0.0
    %1054 = vmatpush2.msra.mxu0 0.0
    %1055 = vmatprep.subr.mxu0 0.0
    %1056 = vmatpush2.msra.mxu0 0.0
    %1057 = vmatprep.subr.mxu0 0.0
    %1058 = vmatpush2.msra.mxu0 0.0
    %1059 = vmatprep.subr.mxu0 0.0
    %1060 = vmatpush2.msra.mxu0 0.0
    %1061 = vmatprep.subr.mxu0 0.0
    %1062 = vmatpush2.msra.mxu0 0.0
    %1063 = vmatprep.subr.mxu0 0.0
    %1064 = vmatpush2.msra.mxu0 0.0
    %1065 = vmatprep.subr.mxu0 0.0
    %1066 = vmatpush2.msra.mxu0 0.0
    %1067 = vmatprep.subr.mxu0 0.0
    %1068 = vmatpush2.msra.mxu0 0.0
    %1069 = vmatprep.subr.mxu0 0.0
    %1070 = vmatpush2.msra.mxu0 0.0
    %1071 = vmatprep.mubr.f32.mxu0 0.0
    %1072 = vmatmul.mubr.f32.gmra.mxu0 %v1002
    %v1073 = vpop.f32.mrf.mxu0
    %v1074 = vadd.f32 %v993, %v1073
    %v1075 = vpop.f32.mrf.mxu0
    %1076 = vmatprep.mubr.f32.mxu0 0.0
    %1077 = vmatmul.mubr.f32.gmra.mxu0 %v1005
    %v1078 = vpop.f32.mrf.mxu0
    %v1079 = vadd.f32 %v998, %v1078
    %v1080 = vpop.f32.mrf.mxu0
    %1081 = vdwg.mxu0
    %1082 = vrot.lane.b32.xlu0 %v497, 112
    %v1083 = vpop.permute.xlu0 %1082
    %1084 = vrot.lane.b32.xlu0 %v502, 112
    %v1085 = vpop.permute.xlu0 %1084
    %1086 = vrot.lane.b32.xlu0 %v497, 80
    %v1087 = vpop.permute.xlu0 %1086
    %1088 = vrot.lane.b32.xlu0 %v502, 80
    %v1089 = vpop.permute.xlu0 %1088
    %v1090 = vsel %vm282, %v1083, 0
    %v1092 = vsel %vm282, %v1085, 0
    %v1094 = vsel %vm282, %v1087, 0
    %v1096 = vsel %vm282, %v1089, 0
    %1098 = vmatprep.subr.mxu0 0.0
    %1099 = vmatpush1.xpose.msra.mxu0 0.0
    %1100 = vmatprep.subr.mxu0 0.0
    %1101 = vmatpush1.xpose.msra.mxu0 0.0
    %1102 = vmatprep.subr.mxu0 0.0
    %1103 = vmatpush1.xpose.msra.mxu0 0.0
    %1104 = vmatprep.subr.mxu0 0.0
    %1105 = vmatpush1.xpose.msra.mxu0 0.0
    %1106 = vmatprep.subr.mxu0 0.0
    %1107 = vmatpush1.xpose.msra.mxu0 0.0
    %1108 = vmatprep.subr.mxu0 0.0
    %1109 = vmatpush1.xpose.msra.mxu0 0.0
    %1110 = vmatprep.subr.mxu0 0.0
    %1111 = vmatpush1.xpose.msra.mxu0 0.0
    %1112 = vmatprep.subr.mxu0 0.0
    %1113 = vmatpush1.xpose.msra.mxu0 0.0
    %1114 = vmatprep.subr.mxu0 0.0
    %1115 = vmatpush1.xpose.msra.mxu0 0.0
    %1116 = vmatprep.subr.mxu0 0.0
    %1117 = vmatpush1.xpose.msra.mxu0 0.0
    %1118 = vmatprep.subr.mxu0 0.0
    %1119 = vmatpush1.xpose.msra.mxu0 0.0
    %1120 = vmatprep.subr.mxu0 0.0
    %1121 = vmatpush1.xpose.msra.mxu0 0.0
    %1122 = vmatprep.subr.mxu0 0.0
    %1123 = vmatpush1.xpose.msra.mxu0 0.0
    %1124 = vmatprep.subr.mxu0 0.0
    %1125 = vmatpush1.xpose.msra.mxu0 0.0
    %1126 = vmatprep.subr.mxu0 0.0
    %1127 = vmatpush1.xpose.msra.mxu0 %v1096
    %1128 = vmatprep.subr.mxu0 0.0
    %1129 = vmatpush1.xpose.msra.mxu0 %v1094
    %1130 = vmatprep.subr.mxu0 0.0
    %1131 = vmatpush2.xpose.msra.mxu0 0.0
    %1132 = vmatprep.subr.mxu0 0.0
    %1133 = vmatpush2.xpose.msra.mxu0 0.0
    %1134 = vmatprep.subr.mxu0 0.0
    %1135 = vmatpush2.xpose.msra.mxu0 0.0
    %1136 = vmatprep.subr.mxu0 0.0
    %1137 = vmatpush2.xpose.msra.mxu0 0.0
    %1138 = vmatprep.subr.mxu0 0.0
    %1139 = vmatpush2.xpose.msra.mxu0 0.0
    %1140 = vmatprep.subr.mxu0 0.0
    %1141 = vmatpush2.xpose.msra.mxu0 0.0
    %1142 = vmatprep.subr.mxu0 0.0
    %1143 = vmatpush2.xpose.msra.mxu0 0.0
    %1144 = vmatprep.subr.mxu0 0.0
    %1145 = vmatpush2.xpose.msra.mxu0 0.0
    %1146 = vmatprep.subr.mxu0 0.0
    %1147 = vmatpush2.xpose.msra.mxu0 0.0
    %1148 = vmatprep.subr.mxu0 0.0
    %1149 = vmatpush2.xpose.msra.mxu0 0.0
    %1150 = vmatprep.subr.mxu0 0.0
    %1151 = vmatpush2.xpose.msra.mxu0 0.0
    %1152 = vmatprep.subr.mxu0 0.0
    %1153 = vmatpush2.xpose.msra.mxu0 0.0
    %1154 = vmatprep.subr.mxu0 0.0
    %1155 = vmatpush2.xpose.msra.mxu0 0.0
    %1156 = vmatprep.subr.mxu0 0.0
    %1157 = vmatpush2.xpose.msra.mxu0 0.0
    %1158 = vmatprep.subr.mxu0 0.0
    %1159 = vmatpush2.xpose.msra.mxu0 0.0
    %1160 = vmatprep.subr.mxu0 0.0
    %1161 = vmatpush2.xpose.msra.mxu0 0.0
    %1162 = vmatprep.mubr.f32.mxu0 0.0
    %1163 = vmatmul.mubr.f32.gmra.mxu0 %v1090
    %v1164 = vpop.f32.mrf.mxu0
    %v1165 = vadd.f32 0.0, %v1164
    %v1166 = vpop.f32.mrf.mxu0
    %1167 = vmatprep.mubr.f32.mxu0 0.0
    %1168 = vmatmul.mubr.f32.gmra.mxu0 %v1092
    %v1169 = vpop.f32.mrf.mxu0
    %v1170 = vadd.f32 0.0, %v1169
    %v1171 = vpop.f32.mrf.mxu0
    %1172 = vdwg.mxu0
    %v1173 = vmul.f32 %v1165, 0.35355338
    %v1174 = vmul.f32 %v1170, 0.35355338
    %v1175 = vadd.f32 %v1173, %v364
    %v1176 = vadd.f32 %v1174, %v365
    %v1177 = vsel %vm602, %v1175, -inf
    %1178 = vmax.xlane.f32.xlu0 %v1177
    %v1179 = vpop.xlane.xlu0 %1178
    %v1180 = vsel %vm606, %v1176, -inf
    %1181 = vmax.xlane.f32.xlu0 %v1180
    %v1182 = vpop.xlane.xlu0 %1181
    %v1183 = vsub.f32 %v1175, %v1179
    %v1184 = vsub.f32 %v1176, %v1182
    %v1185 = vmul.f32 %v1183, 1.442695
    %v1186 = vpow.pop %v1185
    %v1187 = vmul.f32 %v1184, 1.442695
    %v1188 = vpow.pop %v1187
    %v1189 = vsel %vm602, %v1186, 0.0
    %1190 = vadd.xlane.f32.xlu0 %v1189
    %v1191 = vpop.xlane.xlu0 %1190
    %v1192 = vsel %vm606, %v1188, 0.0
    %1193 = vadd.xlane.f32.xlu0 %v1192
    %v1194 = vpop.xlane.xlu0 %1193
    %v1195 = vrcp.pop %v1191
    %v1196 = vrcp.pop %v1194
    %v1197 = vmul.f32 %v1186, %v1195
    %v1198 = vmul.f32 %v1188, %v1196
    %1199 = vrot.lane.b32.xlu0 %v497, 48
    %v1200 = vpop.permute.xlu0 %1199
    %1201 = vrot.lane.b32.xlu0 %v502, 48
    %v1202 = vpop.permute.xlu0 %1201
    %v1205 = vsel %vm602, %v1197, 0
    %v1208 = vsel %vm602, %v1198, 0
    %v1210 = vsel %vm637, %v1202, 0
    %1212 = vmatprep.subr.mxu0 0.0
    %1213 = vmatpush1.msra.mxu0 0.0
    %1214 = vmatprep.subr.mxu0 0.0
    %1215 = vmatpush1.msra.mxu0 0.0
    %1216 = vmatprep.subr.mxu0 0.0
    %1217 = vmatpush1.msra.mxu0 0.0
    %1218 = vmatprep.subr.mxu0 0.0
    %1219 = vmatpush1.msra.mxu0 0.0
    %1220 = vmatprep.subr.mxu0 0.0
    %1221 = vmatpush1.msra.mxu0 0.0
    %1222 = vmatprep.subr.mxu0 0.0
    %1223 = vmatpush1.msra.mxu0 0.0
    %1224 = vmatprep.subr.mxu0 0.0
    %1225 = vmatpush1.msra.mxu0 0.0
    %1226 = vmatprep.subr.mxu0 0.0
    %1227 = vmatpush1.msra.mxu0 0.0
    %1228 = vmatprep.subr.mxu0 0.0
    %1229 = vmatpush1.msra.mxu0 0.0
    %1230 = vmatprep.subr.mxu0 0.0
    %1231 = vmatpush1.msra.mxu0 0.0
    %1232 = vmatprep.subr.mxu0 0.0
    %1233 = vmatpush1.msra.mxu0 0.0
    %1234 = vmatprep.subr.mxu0 0.0
    %1235 = vmatpush1.msra.mxu0 0.0
    %1236 = vmatprep.subr.mxu0 0.0
    %1237 = vmatpush1.msra.mxu0 0.0
    %1238 = vmatprep.subr.mxu0 0.0
    %1239 = vmatpush1.msra.mxu0 0.0
    %1240 = vmatprep.subr.mxu0 0.0
    %1241 = vmatpush1.msra.mxu0 %v1210
    %1242 = vmatprep.subr.mxu0 0.0
    %1243 = vmatpush1.msra.mxu0 %v1200
    %1244 = vmatprep.subr.mxu0 0.0
    %1245 = vmatpush2.msra.mxu0 0.0
    %1246 = vmatprep.subr.mxu0 0.0
    %1247 = vmatpush2.msra.mxu0 0.0
    %1248 = vmatprep.subr.mxu0 0.0
    %1249 = vmatpush2.msra.mxu0 0.0
    %1250 = vmatprep.subr.mxu0 0.0
    %1251 = vmatpush2.msra.mxu0 0.0
    %1252 = vmatprep.subr.mxu0 0.0
    %1253 = vmatpush2.msra.mxu0 0.0
    %1254 = vmatprep.subr.mxu0 0.0
    %1255 = vmatpush2.msra.mxu0 0.0
    %1256 = vmatprep.subr.mxu0 0.0
    %1257 = vmatpush2.msra.mxu0 0.0
    %1258 = vmatprep.subr.mxu0 0.0
    %1259 = vmatpush2.msra.mxu0 0.0
    %1260 = vmatprep.subr.mxu0 0.0
    %1261 = vmatpush2.msra.mxu0 0.0
    %1262 = vmatprep.subr.mxu0 0.0
    %1263 = vmatpush2.msra.mxu0 0.0
    %1264 = vmatprep.subr.mxu0 0.0
    %1265 = vmatpush2.msra.mxu0 0.0
    %1266 = vmatprep.subr.mxu0 0.0
    %1267 = vmatpush2.msra.mxu0 0.0
    %1268 = vmatprep.subr.mxu0 0.0
    %1269 = vmatpush2.msra.mxu0 0.0
    %1270 = vmatprep.subr.mxu0 0.0
    %1271 = vmatpush2.msra.mxu0 0.0
    %1272 = vmatprep.subr.mxu0 0.0
    %1273 = vmatpush2.msra.mxu0 0.0
    %1274 = vmatprep.subr.mxu0 0.0
    %1275 = vmatpush2.msra.mxu0 0.0
    %1276 = vmatprep.mubr.f32.mxu0 0.0
    %1277 = vmatmul.mubr.f32.gmra.mxu0 %v1205
    %v1278 = vpop.f32.mrf.mxu0
    %v1279 = vadd.f32 0.0, %v1278
    %v1280 = vpop.f32.mrf.mxu0
    %1281 = vmatprep.mubr.f32.mxu0 0.0
    %1282 = vmatmul.mubr.f32.gmra.mxu0 %v1208
    %v1283 = vpop.f32.mrf.mxu0
    %v1284 = vadd.f32 0.0, %v1283
    %v1285 = vpop.f32.mrf.mxu0
    %1286 = vdwg.mxu0
    %v1288 = vsel %vm282, %v1279, 0
    %v1291 = vsel %vm282, %v1284, 0
    %1293 = vmatprep.subr.mxu0 0.0
    %1294 = vmatpush1.msra.mxu0 0.0
    %1295 = vmatprep.subr.mxu0 0.0
    %1296 = vmatpush1.msra.mxu0 0.0
    %1297 = vmatprep.subr.mxu0 0.0
    %1298 = vmatpush1.msra.mxu0 0.0
    %1299 = vmatprep.subr.mxu0 0.0
    %1300 = vmatpush1.msra.mxu0 0.0
    %1301 = vmatprep.subr.mxu0 0.0
    %1302 = vmatpush1.msra.mxu0 0.0
    %1303 = vmatprep.subr.mxu0 0.0
    %1304 = vmatpush1.msra.mxu0 0.0
    %1305 = vmatprep.subr.mxu0 0.0
    %1306 = vmatpush1.msra.mxu0 0.0
    %1307 = vmatprep.subr.mxu0 0.0
    %1308 = vmatpush1.msra.mxu0 0.0
    %1309 = vmatprep.subr.mxu0 0.0
    %1310 = vmatpush1.msra.mxu0 0.0
    %1311 = vmatprep.subr.mxu0 0.0
    %1312 = vmatpush1.msra.mxu0 0.0
    %1313 = vmatprep.subr.mxu0 0.0
    %1314 = vmatpush1.msra.mxu0 0.0
    %1315 = vmatprep.subr.mxu0 0.0
    %1316 = vmatpush1.msra.mxu0 0.0
    %1317 = vmatprep.subr.mxu0 0.0
    %1318 = vmatpush1.msra.mxu0 0.0
    %1319 = vmatprep.subr.mxu0 0.0
    %1320 = vmatpush1.msra.mxu0 0.0
    %1321 = vmatprep.subr.mxu0 0.0
    %1322 = vmatpush1.msra.mxu0 0.0
    %1323 = vmatprep.subr.mxu0 0.0
    %1324 = vmatpush1.msra.mxu0 %v507
    %1325 = vmatprep.subr.mxu0 0.0
    %1326 = vmatpush2.msra.mxu0 0.0
    %1327 = vmatprep.subr.mxu0 0.0
    %1328 = vmatpush2.msra.mxu0 0.0
    %1329 = vmatprep.subr.mxu0 0.0
    %1330 = vmatpush2.msra.mxu0 0.0
    %1331 = vmatprep.subr.mxu0 0.0
    %1332 = vmatpush2.msra.mxu0 0.0
    %1333 = vmatprep.subr.mxu0 0.0
    %1334 = vmatpush2.msra.mxu0 0.0
    %1335 = vmatprep.subr.mxu0 0.0
    %1336 = vmatpush2.msra.mxu0 0.0
    %1337 = vmatprep.subr.mxu0 0.0
    %1338 = vmatpush2.msra.mxu0 0.0
    %1339 = vmatprep.subr.mxu0 0.0
    %1340 = vmatpush2.msra.mxu0 0.0
    %1341 = vmatprep.subr.mxu0 0.0
    %1342 = vmatpush2.msra.mxu0 0.0
    %1343 = vmatprep.subr.mxu0 0.0
    %1344 = vmatpush2.msra.mxu0 0.0
    %1345 = vmatprep.subr.mxu0 0.0
    %1346 = vmatpush2.msra.mxu0 0.0
    %1347 = vmatprep.subr.mxu0 0.0
    %1348 = vmatpush2.msra.mxu0 0.0
    %1349 = vmatprep.subr.mxu0 0.0
    %1350 = vmatpush2.msra.mxu0 0.0
    %1351 = vmatprep.subr.mxu0 0.0
    %1352 = vmatpush2.msra.mxu0 0.0
    %1353 = vmatprep.subr.mxu0 0.0
    %1354 = vmatpush2.msra.mxu0 0.0
    %1355 = vmatprep.subr.mxu0 0.0
    %1356 = vmatpush2.msra.mxu0 0.0
    %1357 = vmatprep.mubr.f32.mxu0 0.0
    %1358 = vmatmul.mubr.f32.gmra.mxu0 %v1288
    %v1359 = vpop.f32.mrf.mxu0
    %v1360 = vadd.f32 0.0, %v1359
    %v1361 = vpop.f32.mrf.mxu0
    %1362 = vmatprep.mubr.f32.mxu0 0.0
    %1363 = vmatmul.mubr.f32.gmra.mxu0 %v1291
    %v1364 = vpop.f32.mrf.mxu0
    %v1365 = vadd.f32 0.0, %v1364
    %v1366 = vpop.f32.mrf.mxu0
    %1367 = vdwg.mxu0
    %v1368 = vadd.f32 %v1074, %v1360
    %v1369 = vadd.f32 %v1079, %v1365
    %1370 = vrot.lane.b32.xlu0 %v497, 104
    %v1371 = vpop.permute.xlu0 %1370
    %1372 = vrot.lane.b32.xlu0 %v502, 104
    %v1373 = vpop.permute.xlu0 %1372
    %1374 = vrot.lane.b32.xlu0 %v497, 72
    %v1375 = vpop.permute.xlu0 %1374
    %1376 = vrot.lane.b32.xlu0 %v502, 72
    %v1377 = vpop.permute.xlu0 %1376
    %v1378 = vsel %vm282, %v1371, 0
    %v1380 = vsel %vm282, %v1373, 0
    %v1382 = vsel %vm282, %v1375, 0
    %v1384 = vsel %vm282, %v1377, 0
    %1386 = vmatprep.subr.mxu0 0.0
    %1387 = vmatpush1.xpose.msra.mxu0 0.0
    %1388 = vmatprep.subr.mxu0 0.0
    %1389 = vmatpush1.xpose.msra.mxu0 0.0
    %1390 = vmatprep.subr.mxu0 0.0
    %1391 = vmatpush1.xpose.msra.mxu0 0.0
    %1392 = vmatprep.subr.mxu0 0.0
    %1393 = vmatpush1.xpose.msra.mxu0 0.0
    %1394 = vmatprep.subr.mxu0 0.0
    %1395 = vmatpush1.xpose.msra.mxu0 0.0
    %1396 = vmatprep.subr.mxu0 0.0
    %1397 = vmatpush1.xpose.msra.mxu0 0.0
    %1398 = vmatprep.subr.mxu0 0.0
    %1399 = vmatpush1.xpose.msra.mxu0 0.0
    %1400 = vmatprep.subr.mxu0 0.0
    %1401 = vmatpush1.xpose.msra.mxu0 0.0
    %1402 = vmatprep.subr.mxu0 0.0
    %1403 = vmatpush1.xpose.msra.mxu0 0.0
    %1404 = vmatprep.subr.mxu0 0.0
    %1405 = vmatpush1.xpose.msra.mxu0 0.0
    %1406 = vmatprep.subr.mxu0 0.0
    %1407 = vmatpush1.xpose.msra.mxu0 0.0
    %1408 = vmatprep.subr.mxu0 0.0
    %1409 = vmatpush1.xpose.msra.mxu0 0.0
    %1410 = vmatprep.subr.mxu0 0.0
    %1411 = vmatpush1.xpose.msra.mxu0 0.0
    %1412 = vmatprep.subr.mxu0 0.0
    %1413 = vmatpush1.xpose.msra.mxu0 0.0
    %1414 = vmatprep.subr.mxu0 0.0
    %1415 = vmatpush1.xpose.msra.mxu0 %v1384
    %1416 = vmatprep.subr.mxu0 0.0
    %1417 = vmatpush1.xpose.msra.mxu0 %v1382
    %1418 = vmatprep.subr.mxu0 0.0
    %1419 = vmatpush2.xpose.msra.mxu0 0.0
    %1420 = vmatprep.subr.mxu0 0.0
    %1421 = vmatpush2.xpose.msra.mxu0 0.0
    %1422 = vmatprep.subr.mxu0 0.0
    %1423 = vmatpush2.xpose.msra.mxu0 0.0
    %1424 = vmatprep.subr.mxu0 0.0
    %1425 = vmatpush2.xpose.msra.mxu0 0.0
    %1426 = vmatprep.subr.mxu0 0.0
    %1427 = vmatpush2.xpose.msra.mxu0 0.0
    %1428 = vmatprep.subr.mxu0 0.0
    %1429 = vmatpush2.xpose.msra.mxu0 0.0
    %1430 = vmatprep.subr.mxu0 0.0
    %1431 = vmatpush2.xpose.msra.mxu0 0.0
    %1432 = vmatprep.subr.mxu0 0.0
    %1433 = vmatpush2.xpose.msra.mxu0 0.0
    %1434 = vmatprep.subr.mxu0 0.0
    %1435 = vmatpush2.xpose.msra.mxu0 0.0
    %1436 = vmatprep.subr.mxu0 0.0
    %1437 = vmatpush2.xpose.msra.mxu0 0.0
    %1438 = vmatprep.subr.mxu0 0.0
    %1439 = vmatpush2.xpose.msra.mxu0 0.0
    %1440 = vmatprep.subr.mxu0 0.0
    %1441 = vmatpush2.xpose.msra.mxu0 0.0
    %1442 = vmatprep.subr.mxu0 0.0
    %1443 = vmatpush2.xpose.msra.mxu0 0.0
    %1444 = vmatprep.subr.mxu0 0.0
    %1445 = vmatpush2.xpose.msra.mxu0 0.0
    %1446 = vmatprep.subr.mxu0 0.0
    %1447 = vmatpush2.xpose.msra.mxu0 0.0
    %1448 = vmatprep.subr.mxu0 0.0
    %1449 = vmatpush2.xpose.msra.mxu0 0.0
    %1450 = vmatprep.mubr.f32.mxu0 0.0
    %1451 = vmatmul.mubr.f32.gmra.mxu0 %v1378
    %v1452 = vpop.f32.mrf.mxu0
    %v1453 = vadd.f32 0.0, %v1452
    %v1454 = vpop.f32.mrf.mxu0
    %1455 = vmatprep.mubr.f32.mxu0 0.0
    %1456 = vmatmul.mubr.f32.gmra.mxu0 %v1380
    %v1457 = vpop.f32.mrf.mxu0
    %v1458 = vadd.f32 0.0, %v1457
    %v1459 = vpop.f32.mrf.mxu0
    %1460 = vdwg.mxu0
    %v1461 = vmul.f32 %v1453, 0.35355338
    %v1462 = vmul.f32 %v1458, 0.35355338
    %v1463 = vadd.f32 %v1461, %v364
    %v1464 = vadd.f32 %v1462, %v365
    %v1465 = vsel %vm602, %v1463, -inf
    %1466 = vmax.xlane.f32.xlu0 %v1465
    %v1467 = vpop.xlane.xlu0 %1466
    %v1468 = vsel %vm606, %v1464, -inf
    %1469 = vmax.xlane.f32.xlu0 %v1468
    %v1470 = vpop.xlane.xlu0 %1469
    %v1471 = vsub.f32 %v1463, %v1467
    %v1472 = vsub.f32 %v1464, %v1470
    %v1473 = vmul.f32 %v1471, 1.442695
    %v1474 = vpow.pop %v1473
    %v1475 = vmul.f32 %v1472, 1.442695
    %v1476 = vpow.pop %v1475
    %v1477 = vsel %vm602, %v1474, 0.0
    %1478 = vadd.xlane.f32.xlu0 %v1477
    %v1479 = vpop.xlane.xlu0 %1478
    %v1480 = vsel %vm606, %v1476, 0.0
    %1481 = vadd.xlane.f32.xlu0 %v1480
    %v1482 = vpop.xlane.xlu0 %1481
    %v1483 = vrcp.pop %v1479
    %v1484 = vrcp.pop %v1482
    %v1485 = vmul.f32 %v1474, %v1483
    %v1486 = vmul.f32 %v1476, %v1484
    %1487 = vrot.lane.b32.xlu0 %v497, 40
    %v1488 = vpop.permute.xlu0 %1487
    %1489 = vrot.lane.b32.xlu0 %v502, 40
    %v1490 = vpop.permute.xlu0 %1489
    %v1493 = vsel %vm602, %v1485, 0
    %v1496 = vsel %vm602, %v1486, 0
    %v1498 = vsel %vm637, %v1490, 0
    %1500 = vmatprep.subr.mxu0 0.0
    %1501 = vmatpush1.msra.mxu0 0.0
    %1502 = vmatprep.subr.mxu0 0.0
    %1503 = vmatpush1.msra.mxu0 0.0
    %1504 = vmatprep.subr.mxu0 0.0
    %1505 = vmatpush1.msra.mxu0 0.0
    %1506 = vmatprep.subr.mxu0 0.0
    %1507 = vmatpush1.msra.mxu0 0.0
    %1508 = vmatprep.subr.mxu0 0.0
    %1509 = vmatpush1.msra.mxu0 0.0
    %1510 = vmatprep.subr.mxu0 0.0
    %1511 = vmatpush1.msra.mxu0 0.0
    %1512 = vmatprep.subr.mxu0 0.0
    %1513 = vmatpush1.msra.mxu0 0.0
    %1514 = vmatprep.subr.mxu0 0.0
    %1515 = vmatpush1.msra.mxu0 0.0
    %1516 = vmatprep.subr.mxu0 0.0
    %1517 = vmatpush1.msra.mxu0 0.0
    %1518 = vmatprep.subr.mxu0 0.0
    %1519 = vmatpush1.msra.mxu0 0.0
    %1520 = vmatprep.subr.mxu0 0.0
    %1521 = vmatpush1.msra.mxu0 0.0
    %1522 = vmatprep.subr.mxu0 0.0
    %1523 = vmatpush1.msra.mxu0 0.0
    %1524 = vmatprep.subr.mxu0 0.0
    %1525 = vmatpush1.msra.mxu0 0.0
    %1526 = vmatprep.subr.mxu0 0.0
    %1527 = vmatpush1.msra.mxu0 0.0
    %1528 = vmatprep.subr.mxu0 0.0
    %1529 = vmatpush1.msra.mxu0 %v1498
    %1530 = vmatprep.subr.mxu0 0.0
    %1531 = vmatpush1.msra.mxu0 %v1488
    %1532 = vmatprep.subr.mxu0 0.0
    %1533 = vmatpush2.msra.mxu0 0.0
    %1534 = vmatprep.subr.mxu0 0.0
    %1535 = vmatpush2.msra.mxu0 0.0
    %1536 = vmatprep.subr.mxu0 0.0
    %1537 = vmatpush2.msra.mxu0 0.0
    %1538 = vmatprep.subr.mxu0 0.0
    %1539 = vmatpush2.msra.mxu0 0.0
    %1540 = vmatprep.subr.mxu0 0.0
    %1541 = vmatpush2.msra.mxu0 0.0
    %1542 = vmatprep.subr.mxu0 0.0
    %1543 = vmatpush2.msra.mxu0 0.0
    %1544 = vmatprep.subr.mxu0 0.0
    %1545 = vmatpush2.msra.mxu0 0.0
    %1546 = vmatprep.subr.mxu0 0.0
    %1547 = vmatpush2.msra.mxu0 0.0
    %1548 = vmatprep.subr.mxu0 0.0
    %1549 = vmatpush2.msra.mxu0 0.0
    %1550 = vmatprep.subr.mxu0 0.0
    %1551 = vmatpush2.msra.mxu0 0.0
    %1552 = vmatprep.subr.mxu0 0.0
    %1553 = vmatpush2.msra.mxu0 0.0
    %1554 = vmatprep.subr.mxu0 0.0
    %1555 = vmatpush2.msra.mxu0 0.0
    %1556 = vmatprep.subr.mxu0 0.0
    %1557 = vmatpush2.msra.mxu0 0.0
    %1558 = vmatprep.subr.mxu0 0.0
    %1559 = vmatpush2.msra.mxu0 0.0
    %1560 = vmatprep.subr.mxu0 0.0
    %1561 = vmatpush2.msra.mxu0 0.0
    %1562 = vmatprep.subr.mxu0 0.0
    %1563 = vmatpush2.msra.mxu0 0.0
    %1564 = vmatprep.mubr.f32.mxu0 0.0
    %1565 = vmatmul.mubr.f32.gmra.mxu0 %v1493
    %v1566 = vpop.f32.mrf.mxu0
    %v1567 = vadd.f32 0.0, %v1566
    %v1568 = vpop.f32.mrf.mxu0
    %1569 = vmatprep.mubr.f32.mxu0 0.0
    %1570 = vmatmul.mubr.f32.gmra.mxu0 %v1496
    %v1571 = vpop.f32.mrf.mxu0
    %v1572 = vadd.f32 0.0, %v1571
    %v1573 = vpop.f32.mrf.mxu0
    %1574 = vdwg.mxu0
    %v1576 = vsel %vm282, %v1567, 0
    %v1579 = vsel %vm282, %v1572, 0
    %1581 = vmatprep.subr.mxu0 0.0
    %1582 = vmatpush1.msra.mxu0 0.0
    %1583 = vmatprep.subr.mxu0 0.0
    %1584 = vmatpush1.msra.mxu0 0.0
    %1585 = vmatprep.subr.mxu0 0.0
    %1586 = vmatpush1.msra.mxu0 0.0
    %1587 = vmatprep.subr.mxu0 0.0
    %1588 = vmatpush1.msra.mxu0 0.0
    %1589 = vmatprep.subr.mxu0 0.0
    %1590 = vmatpush1.msra.mxu0 0.0
    %1591 = vmatprep.subr.mxu0 0.0
    %1592 = vmatpush1.msra.mxu0 0.0
    %1593 = vmatprep.subr.mxu0 0.0
    %1594 = vmatpush1.msra.mxu0 0.0
    %1595 = vmatprep.subr.mxu0 0.0
    %1596 = vmatpush1.msra.mxu0 0.0
    %1597 = vmatprep.subr.mxu0 0.0
    %1598 = vmatpush1.msra.mxu0 0.0
    %1599 = vmatprep.subr.mxu0 0.0
    %1600 = vmatpush1.msra.mxu0 0.0
    %1601 = vmatprep.subr.mxu0 0.0
    %1602 = vmatpush1.msra.mxu0 0.0
    %1603 = vmatprep.subr.mxu0 0.0
    %1604 = vmatpush1.msra.mxu0 0.0
    %1605 = vmatprep.subr.mxu0 0.0
    %1606 = vmatpush1.msra.mxu0 0.0
    %1607 = vmatprep.subr.mxu0 0.0
    %1608 = vmatpush1.msra.mxu0 0.0
    %1609 = vmatprep.subr.mxu0 0.0
    %1610 = vmatpush1.msra.mxu0 0.0
    %1611 = vmatprep.subr.mxu0 0.0
    %1612 = vmatpush1.msra.mxu0 %v508
    %1613 = vmatprep.subr.mxu0 0.0
    %1614 = vmatpush2.msra.mxu0 0.0
    %1615 = vmatprep.subr.mxu0 0.0
    %1616 = vmatpush2.msra.mxu0 0.0
    %1617 = vmatprep.subr.mxu0 0.0
    %1618 = vmatpush2.msra.mxu0 0.0
    %1619 = vmatprep.subr.mxu0 0.0
    %1620 = vmatpush2.msra.mxu0 0.0
    %1621 = vmatprep.subr.mxu0 0.0
    %1622 = vmatpush2.msra.mxu0 0.0
    %1623 = vmatprep.subr.mxu0 0.0
    %1624 = vmatpush2.msra.mxu0 0.0
    %1625 = vmatprep.subr.mxu0 0.0
    %1626 = vmatpush2.msra.mxu0 0.0
    %1627 = vmatprep.subr.mxu0 0.0
    %1628 = vmatpush2.msra.mxu0 0.0
    %1629 = vmatprep.subr.mxu0 0.0
    %1630 = vmatpush2.msra.mxu0 0.0
    %1631 = vmatprep.subr.mxu0 0.0
    %1632 = vmatpush2.msra.mxu0 0.0
    %1633 = vmatprep.subr.mxu0 0.0
    %1634 = vmatpush2.msra.mxu0 0.0
    %1635 = vmatprep.subr.mxu0 0.0
    %1636 = vmatpush2.msra.mxu0 0.0
    %1637 = vmatprep.subr.mxu0 0.0
    %1638 = vmatpush2.msra.mxu0 0.0
    %1639 = vmatprep.subr.mxu0 0.0
    %1640 = vmatpush2.msra.mxu0 0.0
    %1641 = vmatprep.subr.mxu0 0.0
    %1642 = vmatpush2.msra.mxu0 0.0
    %1643 = vmatprep.subr.mxu0 0.0
    %1644 = vmatpush2.msra.mxu0 0.0
    %1645 = vmatprep.mubr.f32.mxu0 0.0
    %1646 = vmatmul.mubr.f32.gmra.mxu0 %v1576
    %v1647 = vpop.f32.mrf.mxu0
    %v1648 = vadd.f32 0.0, %v1647
    %v1649 = vpop.f32.mrf.mxu0
    %1650 = vmatprep.mubr.f32.mxu0 0.0
    %1651 = vmatmul.mubr.f32.gmra.mxu0 %v1579
    %v1652 = vpop.f32.mrf.mxu0
    %v1653 = vadd.f32 0.0, %v1652
    %v1654 = vpop.f32.mrf.mxu0
    %1655 = vdwg.mxu0
    %v1656 = vadd.f32 %v1368, %v1648
    %v1657 = vadd.f32 %v1369, %v1653
    %v1658 = vadd.f32 %v356, %v1656
    %v1659 = vadd.f32 %v361, %v1657
    %v1660 = vld [vmem:[%s25] sm:$0x1]
    %v1662 = vlaneseq
    %v1663 = vshrl.u32 %v1662, 7
    %v1664 = vsub.s32 0, %v1663
    %v1665 = vrot.slane %v1660, %v1664
    %v1667 = vadd.f32 %v1658, %v1665
    %v1668 = vadd.f32 %v1659, %v1665
    %v1669 = vld [vmem:[%s27] sm:$0x1]
    %v1670 = vld [vmem:[%s29] sm:$0x1]
    %v1671 = vsel %vm368, %v1667, 0.0
    %1672 = vadd.xlane.f32.xlu0 %v1671
    %v1673 = vpop.xlane.xlu0 %1672
    %v1674 = vsel %vm372, %v1668, 0.0
    %1675 = vadd.xlane.f32.xlu0 %v1674
    %v1676 = vpop.xlane.xlu0 %1675
    %v1677 = vmul.f32 %v1673, %v376
    %v1678 = vmul.f32 %v1676, %v376
    %v1679 = vsub.f32 %v1667, %v1677
    %v1680 = vsub.f32 %v1668, %v1678
    %v1681 = vmul.f32 %v1679, %v1679
    %v1682 = vmul.f32 %v1680, %v1680
    %v1683 = vsel %vm368, %v1681, 0.0
    %1684 = vadd.xlane.f32.xlu0 %v1683
    %v1685 = vpop.xlane.xlu0 %1684
    %v1686 = vsel %vm372, %v1682, 0.0
    %1687 = vadd.xlane.f32.xlu0 %v1686
    %v1688 = vpop.xlane.xlu0 %1687
    %v1689 = vmul.f32 %v1685, %v376
    %v1690 = vmul.f32 %v1688, %v376
    %v1691 = vadd.f32 %v1689, 1e-12
    %v1692 = vadd.f32 %v1690, 1e-12
    %v1693 = vrsqrt.pop %v1691
    %v1694 = vrsqrt.pop %v1692
    %v1695 = vmul.f32 %v1679, %v1693
    %v1696 = vmul.f32 %v1680, %v1694
    %v1698 = vlaneseq
    %v1699 = vshrl.u32 %v1698, 7
    %v1700 = vsub.s32 0, %v1699
    %v1701 = vrot.slane %v1669, %v1700
    %v1703 = vmul.f32 %v1695, %v1701
    %v1704 = vmul.f32 %v1696, %v1701
    %v1706 = vlaneseq
    %v1707 = vshrl.u32 %v1706, 7
    %v1708 = vsub.s32 0, %v1707
    %v1709 = vrot.slane %v1670, %v1708
    %v1711 = vadd.f32 %v1703, %v1709
    %v1712 = vadd.f32 %v1704, %v1709
    %v1713 = vld [vmem:[%s31] sm:$0xff]
    %v1714 = vld [vmem:[%s31 + $0x8] sm:$0xff]
    %v1715 = vld [vmem:[%s31 + $0x10] sm:$0xff]
    %v1716 = vld [vmem:[%s31 + $0x18] sm:$0xff]
    %v1717 = vld [vmem:[%s33] sm:$0x1]
    %v1719 = vlaneseq
    %v1720 = vshrl.u32 %v1719, 7
    %v1721 = vsub.s32 0, %v1720
    %v1722 = vrot.slane %v1717, %v1721
    %v1725 = vsel %vm368, %v1711, 0
    %v1728 = vsel %vm368, %v1712, 0
    %1730 = vmatprep.subr.mxu0 0.0
    %1731 = vmatpush1.msra.mxu0 0.0
    %1732 = vmatprep.subr.mxu0 0.0
    %1733 = vmatpush1.msra.mxu0 0.0
    %1734 = vmatprep.subr.mxu0 0.0
    %1735 = vmatpush1.msra.mxu0 0.0
    %1736 = vmatprep.subr.mxu0 0.0
    %1737 = vmatpush1.msra.mxu0 0.0
    %1738 = vmatprep.subr.mxu0 0.0
    %1739 = vmatpush1.msra.mxu0 0.0
    %1740 = vmatprep.subr.mxu0 0.0
    %1741 = vmatpush1.msra.mxu0 0.0
    %1742 = vmatprep.subr.mxu0 0.0
    %1743 = vmatpush1.msra.mxu0 0.0
    %1744 = vmatprep.subr.mxu0 0.0
    %1745 = vmatpush1.msra.mxu0 0.0
    %1746 = vmatprep.subr.mxu0 0.0
    %1747 = vmatpush1.msra.mxu0 0.0
    %1748 = vmatprep.subr.mxu0 0.0
    %1749 = vmatpush1.msra.mxu0 0.0
    %1750 = vmatprep.subr.mxu0 0.0
    %1751 = vmatpush1.msra.mxu0 0.0
    %1752 = vmatprep.subr.mxu0 0.0
    %1753 = vmatpush1.msra.mxu0 0.0
    %1754 = vmatprep.subr.mxu0 0.0
    %1755 = vmatpush1.msra.mxu0 %v1716
    %1756 = vmatprep.subr.mxu0 0.0
    %1757 = vmatpush1.msra.mxu0 %v1715
    %1758 = vmatprep.subr.mxu0 0.0
    %1759 = vmatpush1.msra.mxu0 %v1714
    %1760 = vmatprep.subr.mxu0 0.0
    %1761 = vmatpush1.msra.mxu0 %v1713
    %1762 = vmatprep.subr.mxu0 0.0
    %1763 = vmatpush2.msra.mxu0 0.0
    %1764 = vmatprep.subr.mxu0 0.0
    %1765 = vmatpush2.msra.mxu0 0.0
    %1766 = vmatprep.subr.mxu0 0.0
    %1767 = vmatpush2.msra.mxu0 0.0
    %1768 = vmatprep.subr.mxu0 0.0
    %1769 = vmatpush2.msra.mxu0 0.0
    %1770 = vmatprep.subr.mxu0 0.0
    %1771 = vmatpush2.msra.mxu0 0.0
    %1772 = vmatprep.subr.mxu0 0.0
    %1773 = vmatpush2.msra.mxu0 0.0
    %1774 = vmatprep.subr.mxu0 0.0
    %1775 = vmatpush2.msra.mxu0 0.0
    %1776 = vmatprep.subr.mxu0 0.0
    %1777 = vmatpush2.msra.mxu0 0.0
    %1778 = vmatprep.subr.mxu0 0.0
    %1779 = vmatpush2.msra.mxu0 0.0
    %1780 = vmatprep.subr.mxu0 0.0
    %1781 = vmatpush2.msra.mxu0 0.0
    %1782 = vmatprep.subr.mxu0 0.0
    %1783 = vmatpush2.msra.mxu0 0.0
    %1784 = vmatprep.subr.mxu0 0.0
    %1785 = vmatpush2.msra.mxu0 0.0
    %1786 = vmatprep.subr.mxu0 0.0
    %1787 = vmatpush2.msra.mxu0 0.0
    %1788 = vmatprep.subr.mxu0 0.0
    %1789 = vmatpush2.msra.mxu0 0.0
    %1790 = vmatprep.subr.mxu0 0.0
    %1791 = vmatpush2.msra.mxu0 0.0
    %1792 = vmatprep.subr.mxu0 0.0
    %1793 = vmatpush2.msra.mxu0 0.0
    %1794 = vmatprep.mubr.f32.mxu0 0.0
    %1795 = vmatmul.mubr.f32.gmra.mxu0 %v1725
    %v1796 = vpop.f32.mrf.mxu0
    %v1797 = vadd.f32 %v1722, %v1796
    %v1798 = vpop.f32.mrf.mxu0
    %1799 = vmatprep.mubr.f32.mxu0 0.0
    %1800 = vmatmul.mubr.f32.gmra.mxu0 %v1728
    %v1801 = vpop.f32.mrf.mxu0
    %v1802 = vadd.f32 %v1722, %v1801
    %v1803 = vpop.f32.mrf.mxu0
    %1804 = vdwg.mxu0
    %v1805 = vmul.f32 %v1797, 0.5
    %v1806 = vmul.f32 %v1802, 0.5
    %v1807 = vmul.f32 %v1797, 0.044715
    %v1808 = vmul.f32 %v1802, 0.044715
    %v1809 = vmul.f32 %v1807, %v1797
    %v1810 = vmul.f32 %v1808, %v1802
    %v1811 = vmul.f32 %v1809, %v1797
    %v1812 = vmul.f32 %v1810, %v1802
    %v1813 = vadd.f32 %v1797, %v1811
    %v1814 = vadd.f32 %v1802, %v1812
    %v1815 = vmul.f32 %v1813, 0.7978846
    %v1816 = vmul.f32 %v1814, 0.7978846
    %v1817 = vtanh.pop %v1815
    %v1818 = vtanh.pop %v1816
    %v1819 = vadd.f32 %v1817, 1.0
    %v1820 = vadd.f32 %v1818, 1.0
    %v1821 = vmul.f32 %v1805, %v1819
    %v1822 = vmul.f32 %v1806, %v1820
    %v1823 = vld [vmem:[%s35] sm:$0xff]
    %v1824 = vld [vmem:[%s35 + $0x8] sm:$0xff]
    %v1825 = vld [vmem:[%s35 + $0x10] sm:$0xff]
    %v1826 = vld [vmem:[%s35 + $0x18] sm:$0xff]
    %v1827 = vld [vmem:[%s35 + $0x20] sm:$0xff]
    %v1828 = vld [vmem:[%s35 + $0x28] sm:$0xff]
    %v1829 = vld [vmem:[%s35 + $0x30] sm:$0xff]
    %v1830 = vld [vmem:[%s35 + $0x38] sm:$0xff]
    %v1831 = vld [vmem:[%s35 + $0x40] sm:$0xff]
    %v1832 = vld [vmem:[%s35 + $0x48] sm:$0xff]
    %v1833 = vld [vmem:[%s35 + $0x50] sm:$0xff]
    %v1834 = vld [vmem:[%s35 + $0x58] sm:$0xff]
    %v1835 = vld [vmem:[%s35 + $0x60] sm:$0xff]
    %v1836 = vld [vmem:[%s35 + $0x68] sm:$0xff]
    %v1837 = vld [vmem:[%s35 + $0x70] sm:$0xff]
    %v1838 = vld [vmem:[%s35 + $0x78] sm:$0xff]
    %v1839 = vld [vmem:[%s37] sm:$0x1]
    %v1841 = vlaneseq
    %v1842 = vshrl.u32 %v1841, 7
    %v1843 = vsub.s32 0, %v1842
    %v1844 = vrot.slane %v1839, %v1843
    %1846 = vmatprep.subr.mxu0 0.0
    %1847 = vmatpush1.msra.mxu0 %v1838
    %1848 = vmatprep.subr.mxu0 0.0
    %1849 = vmatpush1.msra.mxu0 %v1837
    %1850 = vmatprep.subr.mxu0 0.0
    %1851 = vmatpush1.msra.mxu0 %v1836
    %1852 = vmatprep.subr.mxu0 0.0
    %1853 = vmatpush1.msra.mxu0 %v1835
    %1854 = vmatprep.subr.mxu0 0.0
    %1855 = vmatpush1.msra.mxu0 %v1834
    %1856 = vmatprep.subr.mxu0 0.0
    %1857 = vmatpush1.msra.mxu0 %v1833
    %1858 = vmatprep.subr.mxu0 0.0
    %1859 = vmatpush1.msra.mxu0 %v1832
    %1860 = vmatprep.subr.mxu0 0.0
    %1861 = vmatpush1.msra.mxu0 %v1831
    %1862 = vmatprep.subr.mxu0 0.0
    %1863 = vmatpush1.msra.mxu0 %v1830
    %1864 = vmatprep.subr.mxu0 0.0
    %1865 = vmatpush1.msra.mxu0 %v1829
    %1866 = vmatprep.subr.mxu0 0.0
    %1867 = vmatpush1.msra.mxu0 %v1828
    %1868 = vmatprep.subr.mxu0 0.0
    %1869 = vmatpush1.msra.mxu0 %v1827
    %1870 = vmatprep.subr.mxu0 0.0
    %1871 = vmatpush1.msra.mxu0 %v1826
    %1872 = vmatprep.subr.mxu0 0.0
    %1873 = vmatpush1.msra.mxu0 %v1825
    %1874 = vmatprep.subr.mxu0 0.0
    %1875 = vmatpush1.msra.mxu0 %v1824
    %1876 = vmatprep.subr.mxu0 0.0
    %1877 = vmatpush1.msra.mxu0 %v1823
    %1878 = vmatprep.subr.mxu0 0.0
    %1879 = vmatpush2.msra.mxu0 0.0
    %1880 = vmatprep.subr.mxu0 0.0
    %1881 = vmatpush2.msra.mxu0 0.0
    %1882 = vmatprep.subr.mxu0 0.0
    %1883 = vmatpush2.msra.mxu0 0.0
    %1884 = vmatprep.subr.mxu0 0.0
    %1885 = vmatpush2.msra.mxu0 0.0
    %1886 = vmatprep.subr.mxu0 0.0
    %1887 = vmatpush2.msra.mxu0 0.0
    %1888 = vmatprep.subr.mxu0 0.0
    %1889 = vmatpush2.msra.mxu0 0.0
    %1890 = vmatprep.subr.mxu0 0.0
    %1891 = vmatpush2.msra.mxu0 0.0
    %1892 = vmatprep.subr.mxu0 0.0
    %1893 = vmatpush2.msra.mxu0 0.0
    %1894 = vmatprep.subr.mxu0 0.0
    %1895 = vmatpush2.msra.mxu0 0.0
    %1896 = vmatprep.subr.mxu0 0.0
    %1897 = vmatpush2.msra.mxu0 0.0
    %1898 = vmatprep.subr.mxu0 0.0
    %1899 = vmatpush2.msra.mxu0 0.0
    %1900 = vmatprep.subr.mxu0 0.0
    %1901 = vmatpush2.msra.mxu0 0.0
    %1902 = vmatprep.subr.mxu0 0.0
    %1903 = vmatpush2.msra.mxu0 0.0
    %1904 = vmatprep.subr.mxu0 0.0
    %1905 = vmatpush2.msra.mxu0 0.0
    %1906 = vmatprep.subr.mxu0 0.0
    %1907 = vmatpush2.msra.mxu0 0.0
    %1908 = vmatprep.subr.mxu0 0.0
    %1909 = vmatpush2.msra.mxu0 0.0
    %1910 = vmatprep.mubr.f32.mxu0 0.0
    %1911 = vmatmul.mubr.f32.gmra.mxu0 %v1821
    %v1912 = vpop.f32.mrf.mxu0
    %v1913 = vadd.f32 %v1844, %v1912
    %v1914 = vpop.f32.mrf.mxu0
    %1915 = vmatprep.mubr.f32.mxu0 0.0
    %1916 = vmatmul.mubr.f32.gmra.mxu0 %v1822
    %v1917 = vpop.f32.mrf.mxu0
    %v1918 = vadd.f32 %v1844, %v1917
    %v1919 = vpop.f32.mrf.mxu0
    %1920 = vdwg.mxu0
    %v1921 = vadd.f32 %v1667, %v1913
    %v1922 = vadd.f32 %v1668, %v1918
    %v1923 = vld [vmem:[%s39] sm:$0x1]
    %v1924 = vld [vmem:[%s41] sm:$0x1]
    %v1925 = vsel %vm368, %v1921, 0.0
    %1926 = vadd.xlane.f32.xlu0 %v1925
    %v1927 = vpop.xlane.xlu0 %1926
    %v1928 = vsel %vm372, %v1922, 0.0
    %1929 = vadd.xlane.f32.xlu0 %v1928
    %v1930 = vpop.xlane.xlu0 %1929
    %v1931 = vmul.f32 %v1927, %v376
    %v1932 = vmul.f32 %v1930, %v376
    %v1933 = vsub.f32 %v1921, %v1931
    %v1934 = vsub.f32 %v1922, %v1932
    %v1935 = vmul.f32 %v1933, %v1933
    %v1936 = vmul.f32 %v1934, %v1934
    %v1937 = vsel %vm368, %v1935, 0.0
    %1938 = vadd.xlane.f32.xlu0 %v1937
    %v1939 = vpop.xlane.xlu0 %1938
    %v1940 = vsel %vm372, %v1936, 0.0
    %1941 = vadd.xlane.f32.xlu0 %v1940
    %v1942 = vpop.xlane.xlu0 %1941
    %v1943 = vmul.f32 %v1939, %v376
    %v1944 = vmul.f32 %v1942, %v376
    %v1945 = vadd.f32 %v1943, 1e-12
    %v1946 = vadd.f32 %v1944, 1e-12
    %v1947 = vrsqrt.pop %v1945
    %v1948 = vrsqrt.pop %v1946
    %v1949 = vmul.f32 %v1933, %v1947
    %v1950 = vmul.f32 %v1934, %v1948
    %v1952 = vlaneseq
    %v1953 = vshrl.u32 %v1952, 7
    %v1954 = vsub.s32 0, %v1953
    %v1955 = vrot.slane %v1923, %v1954
    %v1957 = vmul.f32 %v1949, %v1955
    %v1958 = vmul.f32 %v1950, %v1955
    %v1960 = vlaneseq
    %v1961 = vshrl.u32 %v1960, 7
    %v1962 = vsub.s32 0, %v1961
    %v1963 = vrot.slane %v1924, %v1962
    %v1965 = vadd.f32 %v1957, %v1963
    %v1966 = vadd.f32 %v1958, %v1963
    %v1967 = vld [vmem:[%s43] sm:$0xff]
    %v1968 = vld [vmem:[%s43 + $0x8] sm:$0xff]
    %v1969 = vld [vmem:[%s43 + $0x10] sm:$0xff]
    %v1970 = vld [vmem:[%s43 + $0x18] sm:$0xff]
    %v1971 = vld [vmem:[%s45] sm:$0x1]
    %v1973 = vlaneseq
    %v1974 = vshrl.u32 %v1973, 7
    %v1975 = vsub.s32 0, %v1974
    %v1976 = vrot.slane %v1971, %v1975
    %v1979 = vsel %vm368, %v1965, 0
    %v1982 = vsel %vm368, %v1966, 0
    %1984 = vmatprep.subr.mxu0 0.0
    %1985 = vmatpush1.msra.mxu0 0.0
    %1986 = vmatprep.subr.mxu0 0.0
    %1987 = vmatpush1.msra.mxu0 0.0
    %1988 = vmatprep.subr.mxu0 0.0
    %1989 = vmatpush1.msra.mxu0 0.0
    %1990 = vmatprep.subr.mxu0 0.0
    %1991 = vmatpush1.msra.mxu0 0.0
    %1992 = vmatprep.subr.mxu0 0.0
    %1993 = vmatpush1.msra.mxu0 0.0
    %1994 = vmatprep.subr.mxu0 0.0
    %1995 = vmatpush1.msra.mxu0 0.0
    %1996 = vmatprep.subr.mxu0 0.0
    %1997 = vmatpush1.msra.mxu0 0.0
    %1998 = vmatprep.subr.mxu0 0.0
    %1999 = vmatpush1.msra.mxu0 0.0
    %2000 = vmatprep.subr.mxu0 0.0
    %2001 = vmatpush1.msra.mxu0 0.0
    %2002 = vmatprep.subr.mxu0 0.0
    %2003 = vmatpush1.msra.mxu0 0.0
    %2004 = vmatprep.subr.mxu0 0.0
    %2005 = vmatpush1.msra.mxu0 0.0
    %2006 = vmatprep.subr.mxu0 0.0
    %2007 = vmatpush1.msra.mxu0 0.0
    %2008 = vmatprep.subr.mxu0 0.0
    %2009 = vmatpush1.msra.mxu0 %v1970
    %2010 = vmatprep.subr.mxu0 0.0
    %2011 = vmatpush1.msra.mxu0 %v1969
    %2012 = vmatprep.subr.mxu0 0.0
    %2013 = vmatpush1.msra.mxu0 %v1968
    %2014 = vmatprep.subr.mxu0 0.0
    %2015 = vmatpush1.msra.mxu0 %v1967
    %2016 = vmatprep.subr.mxu0 0.0
    %2017 = vmatpush2.msra.mxu0 0.0
    %2018 = vmatprep.subr.mxu0 0.0
    %2019 = vmatpush2.msra.mxu0 0.0
    %2020 = vmatprep.subr.mxu0 0.0
    %2021 = vmatpush2.msra.mxu0 0.0
    %2022 = vmatprep.subr.mxu0 0.0
    %2023 = vmatpush2.msra.mxu0 0.0
    %2024 = vmatprep.subr.mxu0 0.0
    %2025 = vmatpush2.msra.mxu0 0.0
    %2026 = vmatprep.subr.mxu0 0.0
    %2027 = vmatpush2.msra.mxu0 0.0
    %2028 = vmatprep.subr.mxu0 0.0
    %2029 = vmatpush2.msra.mxu0 0.0
    %2030 = vmatprep.subr.mxu0 0.0
    %2031 = vmatpush2.msra.mxu0 0.0
    %2032 = vmatprep.subr.mxu0 0.0
    %2033 = vmatpush2.msra.mxu0 0.0
    %2034 = vmatprep.subr.mxu0 0.0
    %2035 = vmatpush2.msra.mxu0 0.0
    %2036 = vmatprep.subr.mxu0 0.0
    %2037 = vmatpush2.msra.mxu0 0.0
    %2038 = vmatprep.subr.mxu0 0.0
    %2039 = vmatpush2.msra.mxu0 0.0
    %2040 = vmatprep.subr.mxu0 0.0
    %2041 = vmatpush2.msra.mxu0 0.0
    %2042 = vmatprep.subr.mxu0 0.0
    %2043 = vmatpush2.msra.mxu0 0.0
    %2044 = vmatprep.subr.mxu0 0.0
    %2045 = vmatpush2.msra.mxu0 0.0
    %2046 = vmatprep.subr.mxu0 0.0
    %2047 = vmatpush2.msra.mxu0 0.0
    %2048 = vmatprep.mubr.f32.mxu0 0.0
    %2049 = vmatmul.mubr.f32.gmra.mxu0 %v1979
    %v2050 = vpop.f32.mrf.mxu0
    %v2051 = vadd.f32 %v1976, %v2050
    %v2052 = vpop.f32.mrf.mxu0
    %2053 = vmatprep.mubr.f32.mxu0 0.0
    %2054 = vmatmul.mubr.f32.gmra.mxu0 %v1982
    %v2055 = vpop.f32.mrf.mxu0
    %v2056 = vadd.f32 %v1976, %v2055
    %v2057 = vpop.f32.mrf.mxu0
    %2058 = vdwg.mxu0
    %v2059 = vld [vmem:[%s47] sm:$0xff]
    %v2060 = vld [vmem:[%s47 + $0x8] sm:$0xff]
    %v2061 = vld [vmem:[%s47 + $0x10] sm:$0xff]
    %v2062 = vld [vmem:[%s47 + $0x18] sm:$0xff]
    %2065 = vrot.lane.b32.xlu0 %v2051, 96
    %v2066 = vpop.permute.xlu0 %2065
    %2067 = vrot.lane.b32.xlu0 %v2056, 96
    %v2068 = vpop.permute.xlu0 %2067
    %v2069 = vsel %vm282, %v2051, 0
    %v2071 = vsel %vm282, %v2056, 0
    %v2073 = vsel %vm282, %v2066, 0
    %v2075 = vsel %vm282, %v2068, 0
    %2077 = vmatprep.subr.mxu0 0.0
    %2078 = vmatpush1.xpose.msra.mxu0 0.0
    %2079 = vmatprep.subr.mxu0 0.0
    %2080 = vmatpush1.xpose.msra.mxu0 0.0
    %2081 = vmatprep.subr.mxu0 0.0
    %2082 = vmatpush1.xpose.msra.mxu0 0.0
    %2083 = vmatprep.subr.mxu0 0.0
    %2084 = vmatpush1.xpose.msra.mxu0 0.0
    %2085 = vmatprep.subr.mxu0 0.0
    %2086 = vmatpush1.xpose.msra.mxu0 0.0
    %2087 = vmatprep.subr.mxu0 0.0
    %2088 = vmatpush1.xpose.msra.mxu0 0.0
    %2089 = vmatprep.subr.mxu0 0.0
    %2090 = vmatpush1.xpose.msra.mxu0 0.0
    %2091 = vmatprep.subr.mxu0 0.0
    %2092 = vmatpush1.xpose.msra.mxu0 0.0
    %2093 = vmatprep.subr.mxu0 0.0
    %2094 = vmatpush1.xpose.msra.mxu0 0.0
    %2095 = vmatprep.subr.mxu0 0.0
    %2096 = vmatpush1.xpose.msra.mxu0 0.0
    %2097 = vmatprep.subr.mxu0 0.0
    %2098 = vmatpush1.xpose.msra.mxu0 0.0
    %2099 = vmatprep.subr.mxu0 0.0
    %2100 = vmatpush1.xpose.msra.mxu0 0.0
    %2101 = vmatprep.subr.mxu0 0.0
    %2102 = vmatpush1.xpose.msra.mxu0 0.0
    %2103 = vmatprep.subr.mxu0 0.0
    %2104 = vmatpush1.xpose.msra.mxu0 0.0
    %2105 = vmatprep.subr.mxu0 0.0
    %2106 = vmatpush1.xpose.msra.mxu0 %v2075
    %2107 = vmatprep.subr.mxu0 0.0
    %2108 = vmatpush1.xpose.msra.mxu0 %v2073
    %2109 = vmatprep.subr.mxu0 0.0
    %2110 = vmatpush2.xpose.msra.mxu0 0.0
    %2111 = vmatprep.subr.mxu0 0.0
    %2112 = vmatpush2.xpose.msra.mxu0 0.0
    %2113 = vmatprep.subr.mxu0 0.0
    %2114 = vmatpush2.xpose.msra.mxu0 0.0
    %2115 = vmatprep.subr.mxu0 0.0
    %2116 = vmatpush2.xpose.msra.mxu0 0.0
    %2117 = vmatprep.subr.mxu0 0.0
    %2118 = vmatpush2.xpose.msra.mxu0 0.0
    %2119 = vmatprep.subr.mxu0 0.0
    %2120 = vmatpush2.xpose.msra.mxu0 0.0
    %2121 = vmatprep.subr.mxu0 0.0
    %2122 = vmatpush2.xpose.msra.mxu0 0.0
    %2123 = vmatprep.subr.mxu0 0.0
    %2124 = vmatpush2.xpose.msra.mxu0 0.0
    %2125 = vmatprep.subr.mxu0 0.0
    %2126 = vmatpush2.xpose.msra.mxu0 0.0
    %2127 = vmatprep.subr.mxu0 0.0
    %2128 = vmatpush2.xpose.msra.mxu0 0.0
    %2129 = vmatprep.subr.mxu0 0.0
    %2130 = vmatpush2.xpose.msra.mxu0 0.0
    %2131 = vmatprep.subr.mxu0 0.0
    %2132 = vmatpush2.xpose.msra.mxu0 0.0
    %2133 = vmatprep.subr.mxu0 0.0
    %2134 = vmatpush2.xpose.msra.mxu0 0.0
    %2135 = vmatprep.subr.mxu0 0.0
    %2136 = vmatpush2.xpose.msra.mxu0 0.0
    %2137 = vmatprep.subr.mxu0 0.0
    %2138 = vmatpush2.xpose.msra.mxu0 0.0
    %2139 = vmatprep.subr.mxu0 0.0
    %2140 = vmatpush2.xpose.msra.mxu0 0.0
    %2141 = vmatprep.mubr.f32.mxu0 0.0
    %2142 = vmatmul.mubr.f32.gmra.mxu0 %v2069
    %v2143 = vpop.f32.mrf.mxu0
    %v2144 = vadd.f32 0.0, %v2143
    %v2145 = vpop.f32.mrf.mxu0
    %2146 = vmatprep.mubr.f32.mxu0 0.0
    %2147 = vmatmul.mubr.f32.gmra.mxu0 %v2071
    %v2148 = vpop.f32.mrf.mxu0
    %v2149 = vadd.f32 0.0, %v2148
    %v2150 = vpop.f32.mrf.mxu0
    %2151 = vdwg.mxu0
    %v2152 = vmul.f32 %v2144, 0.35355338
    %v2153 = vmul.f32 %v2149, 0.35355338
    %v2154 = vadd.f32 %v2152, %v364
    %v2155 = vadd.f32 %v2153, %v365
    %v2156 = vsel %vm602, %v2154, -inf
    %2157 = vmax.xlane.f32.xlu0 %v2156
    %v2158 = vpop.xlane.xlu0 %2157
    %v2159 = vsel %vm606, %v2155, -inf
    %2160 = vmax.xlane.f32.xlu0 %v2159
    %v2161 = vpop.xlane.xlu0 %2160
    %v2162 = vsub.f32 %v2154, %v2158
    %v2163 = vsub.f32 %v2155, %v2161
    %v2164 = vmul.f32 %v2162, 1.442695
    %v2165 = vpow.pop %v2164
    %v2166 = vmul.f32 %v2163, 1.442695
    %v2167 = vpow.pop %v2166
    %v2168 = vsel %vm602, %v2165, 0.0
    %2169 = vadd.xlane.f32.xlu0 %v2168
    %v2170 = vpop.xlane.xlu0 %2169
    %v2171 = vsel %vm606, %v2167, 0.0
    %2172 = vadd.xlane.f32.xlu0 %v2171
    %v2173 = vpop.xlane.xlu0 %2172
    %v2174 = vrcp.pop %v2170
    %v2175 = vrcp.pop %v2173
    %v2176 = vmul.f32 %v2165, %v2174
    %v2177 = vmul.f32 %v2167, %v2175
    %2178 = vrot.lane.b32.xlu0 %v2051, 64
    %v2179 = vpop.permute.xlu0 %2178
    %2180 = vrot.lane.b32.xlu0 %v2056, 64
    %v2181 = vpop.permute.xlu0 %2180
    %v2184 = vsel %vm602, %v2176, 0
    %v2187 = vsel %vm602, %v2177, 0
    %v2189 = vsel %vm637, %v2181, 0
    %2191 = vmatprep.subr.mxu0 0.0
    %2192 = vmatpush1.msra.mxu0 0.0
    %2193 = vmatprep.subr.mxu0 0.0
    %2194 = vmatpush1.msra.mxu0 0.0
    %2195 = vmatprep.subr.mxu0 0.0
    %2196 = vmatpush1.msra.mxu0 0.0
    %2197 = vmatprep.subr.mxu0 0.0
    %2198 = vmatpush1.msra.mxu0 0.0
    %2199 = vmatprep.subr.mxu0 0.0
    %2200 = vmatpush1.msra.mxu0 0.0
    %2201 = vmatprep.subr.mxu0 0.0
    %2202 = vmatpush1.msra.mxu0 0.0
    %2203 = vmatprep.subr.mxu0 0.0
    %2204 = vmatpush1.msra.mxu0 0.0
    %2205 = vmatprep.subr.mxu0 0.0
    %2206 = vmatpush1.msra.mxu0 0.0
    %2207 = vmatprep.subr.mxu0 0.0
    %2208 = vmatpush1.msra.mxu0 0.0
    %2209 = vmatprep.subr.mxu0 0.0
    %2210 = vmatpush1.msra.mxu0 0.0
    %2211 = vmatprep.subr.mxu0 0.0
    %2212 = vmatpush1.msra.mxu0 0.0
    %2213 = vmatprep.subr.mxu0 0.0
    %2214 = vmatpush1.msra.mxu0 0.0
    %2215 = vmatprep.subr.mxu0 0.0
    %2216 = vmatpush1.msra.mxu0 0.0
    %2217 = vmatprep.subr.mxu0 0.0
    %2218 = vmatpush1.msra.mxu0 0.0
    %2219 = vmatprep.subr.mxu0 0.0
    %2220 = vmatpush1.msra.mxu0 %v2189
    %2221 = vmatprep.subr.mxu0 0.0
    %2222 = vmatpush1.msra.mxu0 %v2179
    %2223 = vmatprep.subr.mxu0 0.0
    %2224 = vmatpush2.msra.mxu0 0.0
    %2225 = vmatprep.subr.mxu0 0.0
    %2226 = vmatpush2.msra.mxu0 0.0
    %2227 = vmatprep.subr.mxu0 0.0
    %2228 = vmatpush2.msra.mxu0 0.0
    %2229 = vmatprep.subr.mxu0 0.0
    %2230 = vmatpush2.msra.mxu0 0.0
    %2231 = vmatprep.subr.mxu0 0.0
    %2232 = vmatpush2.msra.mxu0 0.0
    %2233 = vmatprep.subr.mxu0 0.0
    %2234 = vmatpush2.msra.mxu0 0.0
    %2235 = vmatprep.subr.mxu0 0.0
    %2236 = vmatpush2.msra.mxu0 0.0
    %2237 = vmatprep.subr.mxu0 0.0
    %2238 = vmatpush2.msra.mxu0 0.0
    %2239 = vmatprep.subr.mxu0 0.0
    %2240 = vmatpush2.msra.mxu0 0.0
    %2241 = vmatprep.subr.mxu0 0.0
    %2242 = vmatpush2.msra.mxu0 0.0
    %2243 = vmatprep.subr.mxu0 0.0
    %2244 = vmatpush2.msra.mxu0 0.0
    %2245 = vmatprep.subr.mxu0 0.0
    %2246 = vmatpush2.msra.mxu0 0.0
    %2247 = vmatprep.subr.mxu0 0.0
    %2248 = vmatpush2.msra.mxu0 0.0
    %2249 = vmatprep.subr.mxu0 0.0
    %2250 = vmatpush2.msra.mxu0 0.0
    %2251 = vmatprep.subr.mxu0 0.0
    %2252 = vmatpush2.msra.mxu0 0.0
    %2253 = vmatprep.subr.mxu0 0.0
    %2254 = vmatpush2.msra.mxu0 0.0
    %2255 = vmatprep.mubr.f32.mxu0 0.0
    %2256 = vmatmul.mubr.f32.gmra.mxu0 %v2184
    %v2257 = vpop.f32.mrf.mxu0
    %v2258 = vadd.f32 0.0, %v2257
    %v2259 = vpop.f32.mrf.mxu0
    %2260 = vmatprep.mubr.f32.mxu0 0.0
    %2261 = vmatmul.mubr.f32.gmra.mxu0 %v2187
    %v2262 = vpop.f32.mrf.mxu0
    %v2263 = vadd.f32 0.0, %v2262
    %v2264 = vpop.f32.mrf.mxu0
    %2265 = vdwg.mxu0
    %2266 = vrot.lane.b32.xlu0 %v2051, 120
    %v2267 = vpop.permute.xlu0 %2266
    %2268 = vrot.lane.b32.xlu0 %v2056, 120
    %v2269 = vpop.permute.xlu0 %2268
    %2270 = vrot.lane.b32.xlu0 %v2051, 88
    %v2271 = vpop.permute.xlu0 %2270
    %2272 = vrot.lane.b32.xlu0 %v2056, 88
    %v2273 = vpop.permute.xlu0 %2272
    %v2274 = vsel %vm282, %v2267, 0
    %v2276 = vsel %vm282, %v2269, 0
    %v2278 = vsel %vm282, %v2271, 0
    %v2280 = vsel %vm282, %v2273, 0
    %2282 = vmatprep.subr.mxu0 0.0
    %2283 = vmatpush1.xpose.msra.mxu0 0.0
    %2284 = vmatprep.subr.mxu0 0.0
    %2285 = vmatpush1.xpose.msra.mxu0 0.0
    %2286 = vmatprep.subr.mxu0 0.0
    %2287 = vmatpush1.xpose.msra.mxu0 0.0
    %2288 = vmatprep.subr.mxu0 0.0
    %2289 = vmatpush1.xpose.msra.mxu0 0.0
    %2290 = vmatprep.subr.mxu0 0.0
    %2291 = vmatpush1.xpose.msra.mxu0 0.0
    %2292 = vmatprep.subr.mxu0 0.0
    %2293 = vmatpush1.xpose.msra.mxu0 0.0
    %2294 = vmatprep.subr.mxu0 0.0
    %2295 = vmatpush1.xpose.msra.mxu0 0.0
    %2296 = vmatprep.subr.mxu0 0.0
    %2297 = vmatpush1.xpose.msra.mxu0 0.0
    %2298 = vmatprep.subr.mxu0 0.0
    %2299 = vmatpush1.xpose.msra.mxu0 0.0
    %2300 = vmatprep.subr.mxu0 0.0
    %2301 = vmatpush1.xpose.msra.mxu0 0.0
    %2302 = vmatprep.subr.mxu0 0.0
    %2303 = vmatpush1.xpose.msra.mxu0 0.0
    %2304 = vmatprep.subr.mxu0 0.0
    %2305 = vmatpush1.xpose.msra.mxu0 0.0
    %2306 = vmatprep.subr.mxu0 0.0
    %2307 = vmatpush1.xpose.msra.mxu0 0.0
    %2308 = vmatprep.subr.mxu0 0.0
    %2309 = vmatpush1.xpose.msra.mxu0 0.0
    %2310 = vmatprep.subr.mxu0 0.0
    %2311 = vmatpush1.xpose.msra.mxu0 %v2280
    %2312 = vmatprep.subr.mxu0 0.0
    %2313 = vmatpush1.xpose.msra.mxu0 %v2278
    %2314 = vmatprep.subr.mxu0 0.0
    %2315 = vmatpush2.xpose.msra.mxu0 0.0
    %2316 = vmatprep.subr.mxu0 0.0
    %2317 = vmatpush2.xpose.msra.mxu0 0.0
    %2318 = vmatprep.subr.mxu0 0.0
    %2319 = vmatpush2.xpose.msra.mxu0 0.0
    %2320 = vmatprep.subr.mxu0 0.0
    %2321 = vmatpush2.xpose.msra.mxu0 0.0
    %2322 = vmatprep.subr.mxu0 0.0
    %2323 = vmatpush2.xpose.msra.mxu0 0.0
    %2324 = vmatprep.subr.mxu0 0.0
    %2325 = vmatpush2.xpose.msra.mxu0 0.0
    %2326 = vmatprep.subr.mxu0 0.0
    %2327 = vmatpush2.xpose.msra.mxu0 0.0
    %2328 = vmatprep.subr.mxu0 0.0
    %2329 = vmatpush2.xpose.msra.mxu0 0.0
    %2330 = vmatprep.subr.mxu0 0.0
    %2331 = vmatpush2.xpose.msra.mxu0 0.0
    %2332 = vmatprep.subr.mxu0 0.0
    %2333 = vmatpush2.xpose.msra.mxu0 0.0
    %2334 = vmatprep.subr.mxu0 0.0
    %2335 = vmatpush2.xpose.msra.mxu0 0.0
    %2336 = vmatprep.subr.mxu0 0.0
    %2337 = vmatpush2.xpose.msra.mxu0 0.0
    %2338 = vmatprep.subr.mxu0 0.0
    %2339 = vmatpush2.xpose.msra.mxu0 0.0
    %2340 = vmatprep.subr.mxu0 0.0
    %2341 = vmatpush2.xpose.msra.mxu0 0.0
    %2342 = vmatprep.subr.mxu0 0.0
    %2343 = vmatpush2.xpose.msra.mxu0 0.0
    %2344 = vmatprep.subr.mxu0 0.0
    %2345 = vmatpush2.xpose.msra.mxu0 0.0
    %2346 = vmatprep.mubr.f32.mxu0 0.0
    %2347 = vmatmul.mubr.f32.gmra.mxu0 %v2274
    %v2348 = vpop.f32.mrf.mxu0
    %v2349 = vadd.f32 0.0, %v2348
    %v2350 = vpop.f32.mrf.mxu0
    %2351 = vmatprep.mubr.f32.mxu0 0.0
    %2352 = vmatmul.mubr.f32.gmra.mxu0 %v2276
    %v2353 = vpop.f32.mrf.mxu0
    %v2354 = vadd.f32 0.0, %v2353
    %v2355 = vpop.f32.mrf.mxu0
    %2356 = vdwg.mxu0
    %v2357 = vmul.f32 %v2349, 0.35355338
    %v2358 = vmul.f32 %v2354, 0.35355338
    %v2359 = vadd.f32 %v2357, %v364
    %v2360 = vadd.f32 %v2358, %v365
    %v2361 = vsel %vm602, %v2359, -inf
    %2362 = vmax.xlane.f32.xlu0 %v2361
    %v2363 = vpop.xlane.xlu0 %2362
    %v2364 = vsel %vm606, %v2360, -inf
    %2365 = vmax.xlane.f32.xlu0 %v2364
    %v2366 = vpop.xlane.xlu0 %2365
    %v2367 = vsub.f32 %v2359, %v2363
    %v2368 = vsub.f32 %v2360, %v2366
    %v2369 = vmul.f32 %v2367, 1.442695
    %v2370 = vpow.pop %v2369
    %v2371 = vmul.f32 %v2368, 1.442695
    %v2372 = vpow.pop %v2371
    %v2373 = vsel %vm602, %v2370, 0.0
    %2374 = vadd.xlane.f32.xlu0 %v2373
    %v2375 = vpop.xlane.xlu0 %2374
    %v2376 = vsel %vm606, %v2372, 0.0
    %2377 = vadd.xlane.f32.xlu0 %v2376
    %v2378 = vpop.xlane.xlu0 %2377
    %v2379 = vrcp.pop %v2375
    %v2380 = vrcp.pop %v2378
    %v2381 = vmul.f32 %v2370, %v2379
    %v2382 = vmul.f32 %v2372, %v2380
    %2383 = vrot.lane.b32.xlu0 %v2051, 56
    %v2384 = vpop.permute.xlu0 %2383
    %2385 = vrot.lane.b32.xlu0 %v2056, 56
    %v2386 = vpop.permute.xlu0 %2385
    %v2389 = vsel %vm602, %v2381, 0
    %v2392 = vsel %vm602, %v2382, 0
    %v2394 = vsel %vm637, %v2386, 0
    %2396 = vmatprep.subr.mxu0 0.0
    %2397 = vmatpush1.msra.mxu0 0.0
    %2398 = vmatprep.subr.mxu0 0.0
    %2399 = vmatpush1.msra.mxu0 0.0
    %2400 = vmatprep.subr.mxu0 0.0
    %2401 = vmatpush1.msra.mxu0 0.0
    %2402 = vmatprep.subr.mxu0 0.0
    %2403 = vmatpush1.msra.mxu0 0.0
    %2404 = vmatprep.subr.mxu0 0.0
    %2405 = vmatpush1.msra.mxu0 0.0
    %2406 = vmatprep.subr.mxu0 0.0
    %2407 = vmatpush1.msra.mxu0 0.0
    %2408 = vmatprep.subr.mxu0 0.0
    %2409 = vmatpush1.msra.mxu0 0.0
    %2410 = vmatprep.subr.mxu0 0.0
    %2411 = vmatpush1.msra.mxu0 0.0
    %2412 = vmatprep.subr.mxu0 0.0
    %2413 = vmatpush1.msra.mxu0 0.0
    %2414 = vmatprep.subr.mxu0 0.0
    %2415 = vmatpush1.msra.mxu0 0.0
    %2416 = vmatprep.subr.mxu0 0.0
    %2417 = vmatpush1.msra.mxu0 0.0
    %2418 = vmatprep.subr.mxu0 0.0
    %2419 = vmatpush1.msra.mxu0 0.0
    %2420 = vmatprep.subr.mxu0 0.0
    %2421 = vmatpush1.msra.mxu0 0.0
    %2422 = vmatprep.subr.mxu0 0.0
    %2423 = vmatpush1.msra.mxu0 0.0
    %2424 = vmatprep.subr.mxu0 0.0
    %2425 = vmatpush1.msra.mxu0 %v2394
    %2426 = vmatprep.subr.mxu0 0.0
    %2427 = vmatpush1.msra.mxu0 %v2384
    %2428 = vmatprep.subr.mxu0 0.0
    %2429 = vmatpush2.msra.mxu0 0.0
    %2430 = vmatprep.subr.mxu0 0.0
    %2431 = vmatpush2.msra.mxu0 0.0
    %2432 = vmatprep.subr.mxu0 0.0
    %2433 = vmatpush2.msra.mxu0 0.0
    %2434 = vmatprep.subr.mxu0 0.0
    %2435 = vmatpush2.msra.mxu0 0.0
    %2436 = vmatprep.subr.mxu0 0.0
    %2437 = vmatpush2.msra.mxu0 0.0
    %2438 = vmatprep.subr.mxu0 0.0
    %2439 = vmatpush2.msra.mxu0 0.0
    %2440 = vmatprep.subr.mxu0 0.0
    %2441 = vmatpush2.msra.mxu0 0.0
    %2442 = vmatprep.subr.mxu0 0.0
    %2443 = vmatpush2.msra.mxu0 0.0
    %2444 = vmatprep.subr.mxu0 0.0
    %2445 = vmatpush2.msra.mxu0 0.0
    %2446 = vmatprep.subr.mxu0 0.0
    %2447 = vmatpush2.msra.mxu0 0.0
    %2448 = vmatprep.subr.mxu0 0.0
    %2449 = vmatpush2.msra.mxu0 0.0
    %2450 = vmatprep.subr.mxu0 0.0
    %2451 = vmatpush2.msra.mxu0 0.0
    %2452 = vmatprep.subr.mxu0 0.0
    %2453 = vmatpush2.msra.mxu0 0.0
    %2454 = vmatprep.subr.mxu0 0.0
    %2455 = vmatpush2.msra.mxu0 0.0
    %2456 = vmatprep.subr.mxu0 0.0
    %2457 = vmatpush2.msra.mxu0 0.0
    %2458 = vmatprep.subr.mxu0 0.0
    %2459 = vmatpush2.msra.mxu0 0.0
    %2460 = vmatprep.mubr.f32.mxu0 0.0
    %2461 = vmatmul.mubr.f32.gmra.mxu0 %v2389
    %v2462 = vpop.f32.mrf.mxu0
    %v2463 = vadd.f32 0.0, %v2462
    %v2464 = vpop.f32.mrf.mxu0
    %2465 = vmatprep.mubr.f32.mxu0 0.0
    %2466 = vmatmul.mubr.f32.gmra.mxu0 %v2392
    %v2467 = vpop.f32.mrf.mxu0
    %v2468 = vadd.f32 0.0, %v2467
    %v2469 = vpop.f32.mrf.mxu0
    %2470 = vdwg.mxu0
    %v2472 = vsel %vm282, %v2463, 0
    %v2475 = vsel %vm282, %v2468, 0
    %2477 = vmatprep.subr.mxu0 0.0
    %2478 = vmatpush1.msra.mxu0 0.0
    %2479 = vmatprep.subr.mxu0 0.0
    %2480 = vmatpush1.msra.mxu0 0.0
    %2481 = vmatprep.subr.mxu0 0.0
    %2482 = vmatpush1.msra.mxu0 0.0
    %2483 = vmatprep.subr.mxu0 0.0
    %2484 = vmatpush1.msra.mxu0 0.0
    %2485 = vmatprep.subr.mxu0 0.0
    %2486 = vmatpush1.msra.mxu0 0.0
    %2487 = vmatprep.subr.mxu0 0.0
    %2488 = vmatpush1.msra.mxu0 0.0
    %2489 = vmatprep.subr.mxu0 0.0
    %2490 = vmatpush1.msra.mxu0 0.0
    %2491 = vmatprep.subr.mxu0 0.0
    %2492 = vmatpush1.msra.mxu0 0.0
    %2493 = vmatprep.subr.mxu0 0.0
    %2494 = vmatpush1.msra.mxu0 0.0
    %2495 = vmatprep.subr.mxu0 0.0
    %2496 = vmatpush1.msra.mxu0 0.0
    %2497 = vmatprep.subr.mxu0 0.0
    %2498 = vmatpush1.msra.mxu0 0.0
    %2499 = vmatprep.subr.mxu0 0.0
    %2500 = vmatpush1.msra.mxu0 0.0
    %2501 = vmatprep.subr.mxu0 0.0
    %2502 = vmatpush1.msra.mxu0 0.0
    %2503 = vmatprep.subr.mxu0 0.0
    %2504 = vmatpush1.msra.mxu0 0.0
    %2505 = vmatprep.subr.mxu0 0.0
    %2506 = vmatpush1.msra.mxu0 0.0
    %2507 = vmatprep.subr.mxu0 0.0
    %2508 = vmatpush1.msra.mxu0 %v2060
    %2509 = vmatprep.subr.mxu0 0.0
    %2510 = vmatpush2.msra.mxu0 0.0
    %2511 = vmatprep.subr.mxu0 0.0
    %2512 = vmatpush2.msra.mxu0 0.0
    %2513 = vmatprep.subr.mxu0 0.0
    %2514 = vmatpush2.msra.mxu0 0.0
    %2515 = vmatprep.subr.mxu0 0.0
    %2516 = vmatpush2.msra.mxu0 0.0
    %2517 = vmatprep.subr.mxu0 0.0
    %2518 = vmatpush2.msra.mxu0 0.0
    %2519 = vmatprep.subr.mxu0 0.0
    %2520 = vmatpush2.msra.mxu0 0.0
    %2521 = vmatprep.subr.mxu0 0.0
    %2522 = vmatpush2.msra.mxu0 0.0
    %2523 = vmatprep.subr.mxu0 0.0
    %2524 = vmatpush2.msra.mxu0 0.0
    %2525 = vmatprep.subr.mxu0 0.0
    %2526 = vmatpush2.msra.mxu0 0.0
    %2527 = vmatprep.subr.mxu0 0.0
    %2528 = vmatpush2.msra.mxu0 0.0
    %2529 = vmatprep.subr.mxu0 0.0
    %2530 = vmatpush2.msra.mxu0 0.0
    %2531 = vmatprep.subr.mxu0 0.0
    %2532 = vmatpush2.msra.mxu0 0.0
    %2533 = vmatprep.subr.mxu0 0.0
    %2534 = vmatpush2.msra.mxu0 0.0
    %2535 = vmatprep.subr.mxu0 0.0
    %2536 = vmatpush2.msra.mxu0 0.0
    %2537 = vmatprep.subr.mxu0 0.0
    %2538 = vmatpush2.msra.mxu0 0.0
    %2539 = vmatprep.subr.mxu0 0.0
    %2540 = vmatpush2.msra.mxu0 0.0
    %2541 = vmatprep.mubr.f32.mxu0 0.0
    %2542 = vmatmul.mubr.f32.gmra.mxu0 %v2472
    %v2543 = vpop.f32.mrf.mxu0
    %v2544 = vadd.f32 0.0, %v2543
    %v2545 = vpop.f32.mrf.mxu0
    %2546 = vmatprep.mubr.f32.mxu0 0.0
    %2547 = vmatmul.mubr.f32.gmra.mxu0 %v2475
    %v2548 = vpop.f32.mrf.mxu0
    %v2549 = vadd.f32 0.0, %v2548
    %v2550 = vpop.f32.mrf.mxu0
    %2551 = vdwg.mxu0
    %v2553 = vsel %vm282, %v2258, 0
    %v2556 = vsel %vm282, %v2263, 0
    %2558 = vmatprep.subr.mxu0 0.0
    %2559 = vmatpush1.msra.mxu0 0.0
    %2560 = vmatprep.subr.mxu0 0.0
    %2561 = vmatpush1.msra.mxu0 0.0
    %2562 = vmatprep.subr.mxu0 0.0
    %2563 = vmatpush1.msra.mxu0 0.0
    %2564 = vmatprep.subr.mxu0 0.0
    %2565 = vmatpush1.msra.mxu0 0.0
    %2566 = vmatprep.subr.mxu0 0.0
    %2567 = vmatpush1.msra.mxu0 0.0
    %2568 = vmatprep.subr.mxu0 0.0
    %2569 = vmatpush1.msra.mxu0 0.0
    %2570 = vmatprep.subr.mxu0 0.0
    %2571 = vmatpush1.msra.mxu0 0.0
    %2572 = vmatprep.subr.mxu0 0.0
    %2573 = vmatpush1.msra.mxu0 0.0
    %2574 = vmatprep.subr.mxu0 0.0
    %2575 = vmatpush1.msra.mxu0 0.0
    %2576 = vmatprep.subr.mxu0 0.0
    %2577 = vmatpush1.msra.mxu0 0.0
    %2578 = vmatprep.subr.mxu0 0.0
    %2579 = vmatpush1.msra.mxu0 0.0
    %2580 = vmatprep.subr.mxu0 0.0
    %2581 = vmatpush1.msra.mxu0 0.0
    %2582 = vmatprep.subr.mxu0 0.0
    %2583 = vmatpush1.msra.mxu0 0.0
    %2584 = vmatprep.subr.mxu0 0.0
    %2585 = vmatpush1.msra.mxu0 0.0
    %2586 = vmatprep.subr.mxu0 0.0
    %2587 = vmatpush1.msra.mxu0 0.0
    %2588 = vmatprep.subr.mxu0 0.0
    %2589 = vmatpush1.msra.mxu0 %v2059
    %2590 = vmatprep.subr.mxu0 0.0
    %2591 = vmatpush2.msra.mxu0 0.0
    %2592 = vmatprep.subr.mxu0 0.0
    %2593 = vmatpush2.msra.mxu0 0.0
    %2594 = vmatprep.subr.mxu0 0.0
    %2595 = vmatpush2.msra.mxu0 0.0
    %2596 = vmatprep.subr.mxu0 0.0
    %2597 = vmatpush2.msra.mxu0 0.0
    %2598 = vmatprep.subr.mxu0 0.0
    %2599 = vmatpush2.msra.mxu0 0.0
    %2600 = vmatprep.subr.mxu0 0.0
    %2601 = vmatpush2.msra.mxu0 0.0
    %2602 = vmatprep.subr.mxu0 0.0
    %2603 = vmatpush2.msra.mxu0 0.0
    %2604 = vmatprep.subr.mxu0 0.0
    %2605 = vmatpush2.msra.mxu0 0.0
    %2606 = vmatprep.subr.mxu0 0.0
    %2607 = vmatpush2.msra.mxu0 0.0
    %2608 = vmatprep.subr.mxu0 0.0
    %2609 = vmatpush2.msra.mxu0 0.0
    %2610 = vmatprep.subr.mxu0 0.0
    %2611 = vmatpush2.msra.mxu0 0.0
    %2612 = vmatprep.subr.mxu0 0.0
    %2613 = vmatpush2.msra.mxu0 0.0
    %2614 = vmatprep.subr.mxu0 0.0
    %2615 = vmatpush2.msra.mxu0 0.0
    %2616 = vmatprep.subr.mxu0 0.0
    %2617 = vmatpush2.msra.mxu0 0.0
    %2618 = vmatprep.subr.mxu0 0.0
    %2619 = vmatpush2.msra.mxu0 0.0
    %2620 = vmatprep.subr.mxu0 0.0
    %2621 = vmatpush2.msra.mxu0 0.0
    %2622 = vmatprep.mubr.f32.mxu0 0.0
    %2623 = vmatmul.mubr.f32.gmra.mxu0 %v2553
    %v2624 = vpop.f32.mrf.mxu0
    %v2625 = vadd.f32 %v2544, %v2624
    %v2626 = vpop.f32.mrf.mxu0
    %2627 = vmatprep.mubr.f32.mxu0 0.0
    %2628 = vmatmul.mubr.f32.gmra.mxu0 %v2556
    %v2629 = vpop.f32.mrf.mxu0
    %v2630 = vadd.f32 %v2549, %v2629
    %v2631 = vpop.f32.mrf.mxu0
    %2632 = vdwg.mxu0
    %2633 = vrot.lane.b32.xlu0 %v2051, 112
    %v2634 = vpop.permute.xlu0 %2633
    %2635 = vrot.lane.b32.xlu0 %v2056, 112
    %v2636 = vpop.permute.xlu0 %2635
    %2637 = vrot.lane.b32.xlu0 %v2051, 80
    %v2638 = vpop.permute.xlu0 %2637
    %2639 = vrot.lane.b32.xlu0 %v2056, 80
    %v2640 = vpop.permute.xlu0 %2639
    %v2641 = vsel %vm282, %v2634, 0
    %v2643 = vsel %vm282, %v2636, 0
    %v2645 = vsel %vm282, %v2638, 0
    %v2647 = vsel %vm282, %v2640, 0
    %2649 = vmatprep.subr.mxu0 0.0
    %2650 = vmatpush1.xpose.msra.mxu0 0.0
    %2651 = vmatprep.subr.mxu0 0.0
    %2652 = vmatpush1.xpose.msra.mxu0 0.0
    %2653 = vmatprep.subr.mxu0 0.0
    %2654 = vmatpush1.xpose.msra.mxu0 0.0
    %2655 = vmatprep.subr.mxu0 0.0
    %2656 = vmatpush1.xpose.msra.mxu0 0.0
    %2657 = vmatprep.subr.mxu0 0.0
    %2658 = vmatpush1.xpose.msra.mxu0 0.0
    %2659 = vmatprep.subr.mxu0 0.0
    %2660 = vmatpush1.xpose.msra.mxu0 0.0
    %2661 = vmatprep.subr.mxu0 0.0
    %2662 = vmatpush1.xpose.msra.mxu0 0.0
    %2663 = vmatprep.subr.mxu0 0.0
    %2664 = vmatpush1.xpose.msra.mxu0 0.0
    %2665 = vmatprep.subr.mxu0 0.0
    %2666 = vmatpush1.xpose.msra.mxu0 0.0
    %2667 = vmatprep.subr.mxu0 0.0
    %2668 = vmatpush1.xpose.msra.mxu0 0.0
    %2669 = vmatprep.subr.mxu0 0.0
    %2670 = vmatpush1.xpose.msra.mxu0 0.0
    %2671 = vmatprep.subr.mxu0 0.0
    %2672 = vmatpush1.xpose.msra.mxu0 0.0
    %2673 = vmatprep.subr.mxu0 0.0
    %2674 = vmatpush1.xpose.msra.mxu0 0.0
    %2675 = vmatprep.subr.mxu0 0.0
    %2676 = vmatpush1.xpose.msra.mxu0 0.0
    %2677 = vmatprep.subr.mxu0 0.0
    %2678 = vmatpush1.xpose.msra.mxu0 %v2647
    %2679 = vmatprep.subr.mxu0 0.0
    %2680 = vmatpush1.xpose.msra.mxu0 %v2645
    %2681 = vmatprep.subr.mxu0 0.0
    %2682 = vmatpush2.xpose.msra.mxu0 0.0
    %2683 = vmatprep.subr.mxu0 0.0
    %2684 = vmatpush2.xpose.msra.mxu0 0.0
    %2685 = vmatprep.subr.mxu0 0.0
    %2686 = vmatpush2.xpose.msra.mxu0 0.0
    %2687 = vmatprep.subr.mxu0 0.0
    %2688 = vmatpush2.xpose.msra.mxu0 0.0
    %2689 = vmatprep.subr.mxu0 0.0
    %2690 = vmatpush2.xpose.msra.mxu0 0.0
    %2691 = vmatprep.subr.mxu0 0.0
    %2692 = vmatpush2.xpose.msra.mxu0 0.0
    %2693 = vmatprep.subr.mxu0 0.0
    %2694 = vmatpush2.xpose.msra.mxu0 0.0
    %2695 = vmatprep.subr.mxu0 0.0
    %2696 = vmatpush2.xpose.msra.mxu0 0.0
    %2697 = vmatprep.subr.mxu0 0.0
    %2698 = vmatpush2.xpose.msra.mxu0 0.0
    %2699 = vmatprep.subr.mxu0 0.0
    %2700 = vmatpush2.xpose.msra.mxu0 0.0
    %2701 = vmatprep.subr.mxu0 0.0
    %2702 = vmatpush2.xpose.msra.mxu0 0.0
    %2703 = vmatprep.subr.mxu0 0.0
    %2704 = vmatpush2.xpose.msra.mxu0 0.0
    %2705 = vmatprep.subr.mxu0 0.0
    %2706 = vmatpush2.xpose.msra.mxu0 0.0
    %2707 = vmatprep.subr.mxu0 0.0
    %2708 = vmatpush2.xpose.msra.mxu0 0.0
    %2709 = vmatprep.subr.mxu0 0.0
    %2710 = vmatpush2.xpose.msra.mxu0 0.0
    %2711 = vmatprep.subr.mxu0 0.0
    %2712 = vmatpush2.xpose.msra.mxu0 0.0
    %2713 = vmatprep.mubr.f32.mxu0 0.0
    %2714 = vmatmul.mubr.f32.gmra.mxu0 %v2641
    %v2715 = vpop.f32.mrf.mxu0
    %v2716 = vadd.f32 0.0, %v2715
    %v2717 = vpop.f32.mrf.mxu0
    %2718 = vmatprep.mubr.f32.mxu0 0.0
    %2719 = vmatmul.mubr.f32.gmra.mxu0 %v2643
    %v2720 = vpop.f32.mrf.mxu0
    %v2721 = vadd.f32 0.0, %v2720
    %v2722 = vpop.f32.mrf.mxu0
    %2723 = vdwg.mxu0
    %v2724 = vmul.f32 %v2716, 0.35355338
    %v2725 = vmul.f32 %v2721, 0.35355338
    %v2726 = vadd.f32 %v2724, %v364
    %v2727 = vadd.f32 %v2725, %v365
    %v2728 = vsel %vm602, %v2726, -inf
    %2729 = vmax.xlane.f32.xlu0 %v2728
    %v2730 = vpop.xlane.xlu0 %2729
    %v2731 = vsel %vm606, %v2727, -inf
    %2732 = vmax.xlane.f32.xlu0 %v2731
    %v2733 = vpop.xlane.xlu0 %2732
    %v2734 = vsub.f32 %v2726, %v2730
    %v2735 = vsub.f32 %v2727, %v2733
    %v2736 = vmul.f32 %v2734, 1.442695
    %v2737 = vpow.pop %v2736
    %v2738 = vmul.f32 %v2735, 1.442695
    %v2739 = vpow.pop %v2738
    %v2740 = vsel %vm602, %v2737, 0.0
    %2741 = vadd.xlane.f32.xlu0 %v2740
    %v2742 = vpop.xlane.xlu0 %2741
    %v2743 = vsel %vm606, %v2739, 0.0
    %2744 = vadd.xlane.f32.xlu0 %v2743
    %v2745 = vpop.xlane.xlu0 %2744
    %v2746 = vrcp.pop %v2742
    %v2747 = vrcp.pop %v2745
    %v2748 = vmul.f32 %v2737, %v2746
    %v2749 = vmul.f32 %v2739, %v2747
    %2750 = vrot.lane.b32.xlu0 %v2051, 48
    %v2751 = vpop.permute.xlu0 %2750
    %2752 = vrot.lane.b32.xlu0 %v2056, 48
    %v2753 = vpop.permute.xlu0 %2752
    %v2756 = vsel %vm602, %v2748, 0
    %v2759 = vsel %vm602, %v2749, 0
    %v2761 = vsel %vm637, %v2753, 0
    %2763 = vmatprep.subr.mxu0 0.0
    %2764 = vmatpush1.msra.mxu0 0.0
    %2765 = vmatprep.subr.mxu0 0.0
    %2766 = vmatpush1.msra.mxu0 0.0
    %2767 = vmatprep.subr.mxu0 0.0
    %2768 = vmatpush1.msra.mxu0 0.0
    %2769 = vmatprep.subr.mxu0 0.0
    %2770 = vmatpush1.msra.mxu0 0.0
    %2771 = vmatprep.subr.mxu0 0.0
    %2772 = vmatpush1.msra.mxu0 0.0
    %2773 = vmatprep.subr.mxu0 0.0
    %2774 = vmatpush1.msra.mxu0 0.0
    %2775 = vmatprep.subr.mxu0 0.0
    %2776 = vmatpush1.msra.mxu0 0.0
    %2777 = vmatprep.subr.mxu0 0.0
    %2778 = vmatpush1.msra.mxu0 0.0
    %2779 = vmatprep.subr.mxu0 0.0
    %2780 = vmatpush1.msra.mxu0 0.0
    %2781 = vmatprep.subr.mxu0 0.0
    %2782 = vmatpush1.msra.mxu0 0.0
    %2783 = vmatprep.subr.mxu0 0.0
    %2784 = vmatpush1.msra.mxu0 0.0
    %2785 = vmatprep.subr.mxu0 0.0
    %2786 = vmatpush1.msra.mxu0 0.0
    %2787 = vmatprep.subr.mxu0 0.0
    %2788 = vmatpush1.msra.mxu0 0.0
    %2789 = vmatprep.subr.mxu0 0.0
    %2790 = vmatpush1.msra.mxu0 0.0
    %2791 = vmatprep.subr.mxu0 0.0
    %2792 = vmatpush1.msra.mxu0 %v2761
    %2793 = vmatprep.subr.mxu0 0.0
    %2794 = vmatpush1.msra.mxu0 %v2751
    %2795 = vmatprep.subr.mxu0 0.0
    %2796 = vmatpush2.msra.mxu0 0.0
    %2797 = vmatprep.subr.mxu0 0.0
    %2798 = vmatpush2.msra.mxu0 0.0
    %2799 = vmatprep.subr.mxu0 0.0
    %2800 = vmatpush2.msra.mxu0 0.0
    %2801 = vmatprep.subr.mxu0 0.0
    %2802 = vmatpush2.msra.mxu0 0.0
    %2803 = vmatprep.subr.mxu0 0.0
    %2804 = vmatpush2.msra.mxu0 0.0
    %2805 = vmatprep.subr.mxu0 0.0
    %2806 = vmatpush2.msra.mxu0 0.0
    %2807 = vmatprep.subr.mxu0 0.0
    %2808 = vmatpush2.msra.mxu0 0.0
    %2809 = vmatprep.subr.mxu0 0.0
    %2810 = vmatpush2.msra.mxu0 0.0
    %2811 = vmatprep.subr.mxu0 0.0
    %2812 = vmatpush2.msra.mxu0 0.0
    %2813 = vmatprep.subr.mxu0 0.0
    %2814 = vmatpush2.msra.mxu0 0.0
    %2815 = vmatprep.subr.mxu0 0.0
    %2816 = vmatpush2.msra.mxu0 0.0
    %2817 = vmatprep.subr.mxu0 0.0
    %2818 = vmatpush2.msra.mxu0 0.0
    %2819 = vmatprep.subr.mxu0 0.0
    %2820 = vmatpush2.msra.mxu0 0.0
    %2821 = vmatprep.subr.mxu0 0.0
    %2822 = vmatpush2.msra.mxu0 0.0
    %2823 = vmatprep.subr.mxu0 0.0
    %2824 = vmatpush2.msra.mxu0 0.0
    %2825 = vmatprep.subr.mxu0 0.0
    %2826 = vmatpush2.msra.mxu0 0.0
    %2827 = vmatprep.mubr.f32.mxu0 0.0
    %2828 = vmatmul.mubr.f32.gmra.mxu0 %v2756
    %v2829 = vpop.f32.mrf.mxu0
    %v2830 = vadd.f32 0.0, %v2829
    %v2831 = vpop.f32.mrf.mxu0
    %2832 = vmatprep.mubr.f32.mxu0 0.0
    %2833 = vmatmul.mubr.f32.gmra.mxu0 %v2759
    %v2834 = vpop.f32.mrf.mxu0
    %v2835 = vadd.f32 0.0, %v2834
    %v2836 = vpop.f32.mrf.mxu0
    %2837 = vdwg.mxu0
    %v2839 = vsel %vm282, %v2830, 0
    %v2842 = vsel %vm282, %v2835, 0
    %2844 = vmatprep.subr.mxu0 0.0
    %2845 = vmatpush1.msra.mxu0 0.0
    %2846 = vmatprep.subr.mxu0 0.0
    %2847 = vmatpush1.msra.mxu0 0.0
    %2848 = vmatprep.subr.mxu0 0.0
    %2849 = vmatpush1.msra.mxu0 0.0
    %2850 = vmatprep.subr.mxu0 0.0
    %2851 = vmatpush1.msra.mxu0 0.0
    %2852 = vmatprep.subr.mxu0 0.0
    %2853 = vmatpush1.msra.mxu0 0.0
    %2854 = vmatprep.subr.mxu0 0.0
    %2855 = vmatpush1.msra.mxu0 0.0
    %2856 = vmatprep.subr.mxu0 0.0
    %2857 = vmatpush1.msra.mxu0 0.0
    %2858 = vmatprep.subr.mxu0 0.0
    %2859 = vmatpush1.msra.mxu0 0.0
    %2860 = vmatprep.subr.mxu0 0.0
    %2861 = vmatpush1.msra.mxu0 0.0
    %2862 = vmatprep.subr.mxu0 0.0
    %2863 = vmatpush1.msra.mxu0 0.0
    %2864 = vmatprep.subr.mxu0 0.0
    %2865 = vmatpush1.msra.mxu0 0.0
    %2866 = vmatprep.subr.mxu0 0.0
    %2867 = vmatpush1.msra.mxu0 0.0
    %2868 = vmatprep.subr.mxu0 0.0
    %2869 = vmatpush1.msra.mxu0 0.0
    %2870 = vmatprep.subr.mxu0 0.0
    %2871 = vmatpush1.msra.mxu0 0.0
    %2872 = vmatprep.subr.mxu0 0.0
    %2873 = vmatpush1.msra.mxu0 0.0
    %2874 = vmatprep.subr.mxu0 0.0
    %2875 = vmatpush1.msra.mxu0 %v2061
    %2876 = vmatprep.subr.mxu0 0.0
    %2877 = vmatpush2.msra.mxu0 0.0
    %2878 = vmatprep.subr.mxu0 0.0
    %2879 = vmatpush2.msra.mxu0 0.0
    %2880 = vmatprep.subr.mxu0 0.0
    %2881 = vmatpush2.msra.mxu0 0.0
    %2882 = vmatprep.subr.mxu0 0.0
    %2883 = vmatpush2.msra.mxu0 0.0
    %2884 = vmatprep.subr.mxu0 0.0
    %2885 = vmatpush2.msra.mxu0 0.0
    %2886 = vmatprep.subr.mxu0 0.0
    %2887 = vmatpush2.msra.mxu0 0.0
    %2888 = vmatprep.subr.mxu0 0.0
    %2889 = vmatpush2.msra.mxu0 0.0
    %2890 = vmatprep.subr.mxu0 0.0
    %2891 = vmatpush2.msra.mxu0 0.0
    %2892 = vmatprep.subr.mxu0 0.0
    %2893 = vmatpush2.msra.mxu0 0.0
    %2894 = vmatprep.subr.mxu0 0.0
    %2895 = vmatpush2.msra.mxu0 0.0
    %2896 = vmatprep.subr.mxu0 0.0
    %2897 = vmatpush2.msra.mxu0 0.0
    %2898 = vmatprep.subr.mxu0 0.0
    %2899 = vmatpush2.msra.mxu0 0.0
    %2900 = vmatprep.subr.mxu0 0.0
    %2901 = vmatpush2.msra.mxu0 0.0
    %2902 = vmatprep.subr.mxu0 0.0
    %2903 = vmatpush2.msra.mxu0 0.0
    %2904 = vmatprep.subr.mxu0 0.0
    %2905 = vmatpush2.msra.mxu0 0.0
    %2906 = vmatprep.subr.mxu0 0.0
    %2907 = vmatpush2.msra.mxu0 0.0
    %2908 = vmatprep.mubr.f32.mxu0 0.0
    %2909 = vmatmul.mubr.f32.gmra.mxu0 %v2839
    %v2910 = vpop.f32.mrf.mxu0
    %v2911 = vadd.f32 0.0, %v2910
    %v2912 = vpop.f32.mrf.mxu0
    %2913 = vmatprep.mubr.f32.mxu0 0.0
    %2914 = vmatmul.mubr.f32.gmra.mxu0 %v2842
    %v2915 = vpop.f32.mrf.mxu0
    %v2916 = vadd.f32 0.0, %v2915
    %v2917 = vpop.f32.mrf.mxu0
    %2918 = vdwg.mxu0
    %v2919 = vadd.f32 %v2625, %v2911
    %v2920 = vadd.f32 %v2630, %v2916
    %2921 = vrot.lane.b32.xlu0 %v2051, 104
    %v2922 = vpop.permute.xlu0 %2921
    %2923 = vrot.lane.b32.xlu0 %v2056, 104
    %v2924 = vpop.permute.xlu0 %2923
    %2925 = vrot.lane.b32.xlu0 %v2051, 72
    %v2926 = vpop.permute.xlu0 %2925
    %2927 = vrot.lane.b32.xlu0 %v2056, 72
    %v2928 = vpop.permute.xlu0 %2927
    %v2929 = vsel %vm282, %v2922, 0
    %v2931 = vsel %vm282, %v2924, 0
    %v2933 = vsel %vm282, %v2926, 0
    %v2935 = vsel %vm282, %v2928, 0
    %2937 = vmatprep.subr.mxu0 0.0
    %2938 = vmatpush1.xpose.msra.mxu0 0.0
    %2939 = vmatprep.subr.mxu0 0.0
    %2940 = vmatpush1.xpose.msra.mxu0 0.0
    %2941 = vmatprep.subr.mxu0 0.0
    %2942 = vmatpush1.xpose.msra.mxu0 0.0
    %2943 = vmatprep.subr.mxu0 0.0
    %2944 = vmatpush1.xpose.msra.mxu0 0.0
    %2945 = vmatprep.subr.mxu0 0.0
    %2946 = vmatpush1.xpose.msra.mxu0 0.0
    %2947 = vmatprep.subr.mxu0 0.0
    %2948 = vmatpush1.xpose.msra.mxu0 0.0
    %2949 = vmatprep.subr.mxu0 0.0
    %2950 = vmatpush1.xpose.msra.mxu0 0.0
    %2951 = vmatprep.subr.mxu0 0.0
    %2952 = vmatpush1.xpose.msra.mxu0 0.0
    %2953 = vmatprep.subr.mxu0 0.0
    %2954 = vmatpush1.xpose.msra.mxu0 0.0
    %2955 = vmatprep.subr.mxu0 0.0
    %2956 = vmatpush1.xpose.msra.mxu0 0.0
    %2957 = vmatprep.subr.mxu0 0.0
    %2958 = vmatpush1.xpose.msra.mxu0 0.0
    %2959 = vmatprep.subr.mxu0 0.0
    %2960 = vmatpush1.xpose.msra.mxu0 0.0
    %2961 = vmatprep.subr.mxu0 0.0
    %2962 = vmatpush1.xpose.msra.mxu0 0.0
    %2963 = vmatprep.subr.mxu0 0.0
    %2964 = vmatpush1.xpose.msra.mxu0 0.0
    %2965 = vmatprep.subr.mxu0 0.0
    %2966 = vmatpush1.xpose.msra.mxu0 %v2935
    %2967 = vmatprep.subr.mxu0 0.0
    %2968 = vmatpush1.xpose.msra.mxu0 %v2933
    %2969 = vmatprep.subr.mxu0 0.0
    %2970 = vmatpush2.xpose.msra.mxu0 0.0
    %2971 = vmatprep.subr.mxu0 0.0
    %2972 = vmatpush2.xpose.msra.mxu0 0.0
    %2973 = vmatprep.subr.mxu0 0.0
    %2974 = vmatpush2.xpose.msra.mxu0 0.0
    %2975 = vmatprep.subr.mxu0 0.0
    %2976 = vmatpush2.xpose.msra.mxu0 0.0
    %2977 = vmatprep.subr.mxu0 0.0
    %2978 = vmatpush2.xpose.msra.mxu0 0.0
    %2979 = vmatprep.subr.mxu0 0.0
    %2980 = vmatpush2.xpose.msra.mxu0 0.0
    %2981 = vmatprep.subr.mxu0 0.0
    %2982 = vmatpush2.xpose.msra.mxu0 0.0
    %2983 = vmatprep.subr.mxu0 0.0
    %2984 = vmatpush2.xpose.msra.mxu0 0.0
    %2985 = vmatprep.subr.mxu0 0.0
    %2986 = vmatpush2.xpose.msra.mxu0 0.0
    %2987 = vmatprep.subr.mxu0 0.0
    %2988 = vmatpush2.xpose.msra.mxu0 0.0
    %2989 = vmatprep.subr.mxu0 0.0
    %2990 = vmatpush2.xpose.msra.mxu0 0.0
    %2991 = vmatprep.subr.mxu0 0.0
    %2992 = vmatpush2.xpose.msra.mxu0 0.0
    %2993 = vmatprep.subr.mxu0 0.0
    %2994 = vmatpush2.xpose.msra.mxu0 0.0
    %2995 = vmatprep.subr.mxu0 0.0
    %2996 = vmatpush2.xpose.msra.mxu0 0.0
    %2997 = vmatprep.subr.mxu0 0.0
    %2998 = vmatpush2.xpose.msra.mxu0 0.0
    %2999 = vmatprep.subr.mxu0 0.0
    %3000 = vmatpush2.xpose.msra.mxu0 0.0
    %3001 = vmatprep.mubr.f32.mxu0 0.0
    %3002 = vmatmul.mubr.f32.gmra.mxu0 %v2929
    %v3003 = vpop.f32.mrf.mxu0
    %v3004 = vadd.f32 0.0, %v3003
    %v3005 = vpop.f32.mrf.mxu0
    %3006 = vmatprep.mubr.f32.mxu0 0.0
    %3007 = vmatmul.mubr.f32.gmra.mxu0 %v2931
    %v3008 = vpop.f32.mrf.mxu0
    %v3009 = vadd.f32 0.0, %v3008
    %v3010 = vpop.f32.mrf.mxu0
    %3011 = vdwg.mxu0
    %v3012 = vmul.f32 %v3004, 0.35355338
    %v3013 = vmul.f32 %v3009, 0.35355338
    %v3014 = vadd.f32 %v3012, %v364
    %v3015 = vadd.f32 %v3013, %v365
    %v3016 = vsel %vm602, %v3014, -inf
    %3017 = vmax.xlane.f32.xlu0 %v3016
    %v3018 = vpop.xlane.xlu0 %3017
    %v3019 = vsel %vm606, %v3015, -inf
    %3020 = vmax.xlane.f32.xlu0 %v3019
    %v3021 = vpop.xlane.xlu0 %3020
    %v3022 = vsub.f32 %v3014, %v3018
    %v3023 = vsub.f32 %v3015, %v3021
    %v3024 = vmul.f32 %v3022, 1.442695
    %v3025 = vpow.pop %v3024
    %v3026 = vmul.f32 %v3023, 1.442695
    %v3027 = vpow.pop %v3026
    %v3028 = vsel %vm602, %v3025, 0.0
    %3029 = vadd.xlane.f32.xlu0 %v3028
    %v3030 = vpop.xlane.xlu0 %3029
    %v3031 = vsel %vm606, %v3027, 0.0
    %3032 = vadd.xlane.f32.xlu0 %v3031
    %v3033 = vpop.xlane.xlu0 %3032
    %v3034 = vrcp.pop %v3030
    %v3035 = vrcp.pop %v3033
    %v3036 = vmul.f32 %v3025, %v3034
    %v3037 = vmul.f32 %v3027, %v3035
    %3038 = vrot.lane.b32.xlu0 %v2051, 40
    %v3039 = vpop.permute.xlu0 %3038
    %3040 = vrot.lane.b32.xlu0 %v2056, 40
    %v3041 = vpop.permute.xlu0 %3040
    %v3044 = vsel %vm602, %v3036, 0
    %v3047 = vsel %vm602, %v3037, 0
    %v3049 = vsel %vm637, %v3041, 0
    %3051 = vmatprep.subr.mxu0 0.0
    %3052 = vmatpush1.msra.mxu0 0.0
    %3053 = vmatprep.subr.mxu0 0.0
    %3054 = vmatpush1.msra.mxu0 0.0
    %3055 = vmatprep.subr.mxu0 0.0
    %3056 = vmatpush1.msra.mxu0 0.0
    %3057 = vmatprep.subr.mxu0 0.0
    %3058 = vmatpush1.msra.mxu0 0.0
    %3059 = vmatprep.subr.mxu0 0.0
    %3060 = vmatpush1.msra.mxu0 0.0
    %3061 = vmatprep.subr.mxu0 0.0
    %3062 = vmatpush1.msra.mxu0 0.0
    %3063 = vmatprep.subr.mxu0 0.0
    %3064 = vmatpush1.msra.mxu0 0.0
    %3065 = vmatprep.subr.mxu0 0.0
    %3066 = vmatpush1.msra.mxu0 0.0
    %3067 = vmatprep.subr.mxu0 0.0
    %3068 = vmatpush1.msra.mxu0 0.0
    %3069 = vmatprep.subr.mxu0 0.0
    %3070 = vmatpush1.msra.mxu0 0.0
    %3071 = vmatprep.subr.mxu0 0.0
    %3072 = vmatpush1.msra.mxu0 0.0
    %3073 = vmatprep.subr.mxu0 0.0
    %3074 = vmatpush1.msra.mxu0 0.0
    %3075 = vmatprep.subr.mxu0 0.0
    %3076 = vmatpush1.msra.mxu0 0.0
    %3077 = vmatprep.subr.mxu0 0.0
    %3078 = vmatpush1.msra.mxu0 0.0
    %3079 = vmatprep.subr.mxu0 0.0
    %3080 = vmatpush1.msra.mxu0 %v3049
    %3081 = vmatprep.subr.mxu0 0.0
    %3082 = vmatpush1.msra.mxu0 %v3039
    %3083 = vmatprep.subr.mxu0 0.0
    %3084 = vmatpush2.msra.mxu0 0.0
    %3085 = vmatprep.subr.mxu0 0.0
    %3086 = vmatpush2.msra.mxu0 0.0
    %3087 = vmatprep.subr.mxu0 0.0
    %3088 = vmatpush2.msra.mxu0 0.0
    %3089 = vmatprep.subr.mxu0 0.0
    %3090 = vmatpush2.msra.mxu0 0.0
    %3091 = vmatprep.subr.mxu0 0.0
    %3092 = vmatpush2.msra.mxu0 0.0
    %3093 = vmatprep.subr.mxu0 0.0
    %3094 = vmatpush2.msra.mxu0 0.0
    %3095 = vmatprep.subr.mxu0 0.0
    %3096 = vmatpush2.msra.mxu0 0.0
    %3097 = vmatprep.subr.mxu0 0.0
    %3098 = vmatpush2.msra.mxu0 0.0
    %3099 = vmatprep.subr.mxu0 0.0
    %3100 = vmatpush2.msra.mxu0 0.0
    %3101 = vmatprep.subr.mxu0 0.0
    %3102 = vmatpush2.msra.mxu0 0.0
    %3103 = vmatprep.subr.mxu0 0.0
    %3104 = vmatpush2.msra.mxu0 0.0
    %3105 = vmatprep.subr.mxu0 0.0
    %3106 = vmatpush2.msra.mxu0 0.0
    %3107 = vmatprep.subr.mxu0 0.0
    %3108 = vmatpush2.msra.mxu0 0.0
    %3109 = vmatprep.subr.mxu0 0.0
    %3110 = vmatpush2.msra.mxu0 0.0
    %3111 = vmatprep.subr.mxu0 0.0
    %3112 = vmatpush2.msra.mxu0 0.0
    %3113 = vmatprep.subr.mxu0 0.0
    %3114 = vmatpush2.msra.mxu0 0.0
    %3115 = vmatprep.mubr.f32.mxu0 0.0
    %3116 = vmatmul.mubr.f32.gmra.mxu0 %v3044
    %v3117 = vpop.f32.mrf.mxu0
    %v3118 = vadd.f32 0.0, %v3117
    %v3119 = vpop.f32.mrf.mxu0
    %3120 = vmatprep.mubr.f32.mxu0 0.0
    %3121 = vmatmul.mubr.f32.gmra.mxu0 %v3047
    %v3122 = vpop.f32.mrf.mxu0
    %v3123 = vadd.f32 0.0, %v3122
    %v3124 = vpop.f32.mrf.mxu0
    %3125 = vdwg.mxu0
    %v3127 = vsel %vm282, %v3118, 0
    %v3130 = vsel %vm282, %v3123, 0
    %3132 = vmatprep.subr.mxu0 0.0
    %3133 = vmatpush1.msra.mxu0 0.0
    %3134 = vmatprep.subr.mxu0 0.0
    %3135 = vmatpush1.msra.mxu0 0.0
    %3136 = vmatprep.subr.mxu0 0.0
    %3137 = vmatpush1.msra.mxu0 0.0
    %3138 = vmatprep.subr.mxu0 0.0
    %3139 = vmatpush1.msra.mxu0 0.0
    %3140 = vmatprep.subr.mxu0 0.0
    %3141 = vmatpush1.msra.mxu0 0.0
    %3142 = vmatprep.subr.mxu0 0.0
    %3143 = vmatpush1.msra.mxu0 0.0
    %3144 = vmatprep.subr.mxu0 0.0
    %3145 = vmatpush1.msra.mxu0 0.0
    %3146 = vmatprep.subr.mxu0 0.0
    %3147 = vmatpush1.msra.mxu0 0.0
    %3148 = vmatprep.subr.mxu0 0.0
    %3149 = vmatpush1.msra.mxu0 0.0
    %3150 = vmatprep.subr.mxu0 0.0
    %3151 = vmatpush1.msra.mxu0 0.0
    %3152 = vmatprep.subr.mxu0 0.0
    %3153 = vmatpush1.msra.mxu0 0.0
    %3154 = vmatprep.subr.mxu0 0.0
    %3155 = vmatpush1.msra.mxu0 0.0
    %3156 = vmatprep.subr.mxu0 0.0
    %3157 = vmatpush1.msra.mxu0 0.0
    %3158 = vmatprep.subr.mxu0 0.0
    %3159 = vmatpush1.msra.mxu0 0.0
    %3160 = vmatprep.subr.mxu0 0.0
    %3161 = vmatpush1.msra.mxu0 0.0
    %3162 = vmatprep.subr.mxu0 0.0
    %3163 = vmatpush1.msra.mxu0 %v2062
    %3164 = vmatprep.subr.mxu0 0.0
    %3165 = vmatpush2.msra.mxu0 0.0
    %3166 = vmatprep.subr.mxu0 0.0
    %3167 = vmatpush2.msra.mxu0 0.0
    %3168 = vmatprep.subr.mxu0 0.0
    %3169 = vmatpush2.msra.mxu0 0.0
    %3170 = vmatprep.subr.mxu0 0.0
    %3171 = vmatpush2.msra.mxu0 0.0
    %3172 = vmatprep.subr.mxu0 0.0
    %3173 = vmatpush2.msra.mxu0 0.0
    %3174 = vmatprep.subr.mxu0 0.0
    %3175 = vmatpush2.msra.mxu0 0.0
    %3176 = vmatprep.subr.mxu0 0.0
    %3177 = vmatpush2.msra.mxu0 0.0
    %3178 = vmatprep.subr.mxu0 0.0
    %3179 = vmatpush2.msra.mxu0 0.0
    %3180 = vmatprep.subr.mxu0 0.0
    %3181 = vmatpush2.msra.mxu0 0.0
    %3182 = vmatprep.subr.mxu0 0.0
    %3183 = vmatpush2.msra.mxu0 0.0
    %3184 = vmatprep.subr.mxu0 0.0
    %3185 = vmatpush2.msra.mxu0 0.0
    %3186 = vmatprep.subr.mxu0 0.0
    %3187 = vmatpush2.msra.mxu0 0.0
    %3188 = vmatprep.subr.mxu0 0.0
    %3189 = vmatpush2.msra.mxu0 0.0
    %3190 = vmatprep.subr.mxu0 0.0
    %3191 = vmatpush2.msra.mxu0 0.0
    %3192 = vmatprep.subr.mxu0 0.0
    %3193 = vmatpush2.msra.mxu0 0.0
    %3194 = vmatprep.subr.mxu0 0.0
    %3195 = vmatpush2.msra.mxu0 0.0
    %3196 = vmatprep.mubr.f32.mxu0 0.0
    %3197 = vmatmul.mubr.f32.gmra.mxu0 %v3127
    %v3198 = vpop.f32.mrf.mxu0
    %v3199 = vadd.f32 0.0, %v3198
    %v3200 = vpop.f32.mrf.mxu0
    %3201 = vmatprep.mubr.f32.mxu0 0.0
    %3202 = vmatmul.mubr.f32.gmra.mxu0 %v3130
    %v3203 = vpop.f32.mrf.mxu0
    %v3204 = vadd.f32 0.0, %v3203
    %v3205 = vpop.f32.mrf.mxu0
    %3206 = vdwg.mxu0
    %v3207 = vadd.f32 %v2919, %v3199
    %v3208 = vadd.f32 %v2920, %v3204
    %v3209 = vadd.f32 %v1921, %v3207
    %v3210 = vadd.f32 %v1922, %v3208
    %v3211 = vld [vmem:[%s49] sm:$0x1]
    %v3213 = vlaneseq
    %v3214 = vshrl.u32 %v3213, 7
    %v3215 = vsub.s32 0, %v3214
    %v3216 = vrot.slane %v3211, %v3215
    %v3218 = vadd.f32 %v3209, %v3216
    %v3219 = vadd.f32 %v3210, %v3216
    %v3220 = vld [vmem:[%s51] sm:$0x1]
    %v3221 = vld [vmem:[%s53] sm:$0x1]
    %v3222 = vsel %vm368, %v3218, 0.0
    %3223 = vadd.xlane.f32.xlu0 %v3222
    %v3224 = vpop.xlane.xlu0 %3223
    %v3225 = vsel %vm372, %v3219, 0.0
    %3226 = vadd.xlane.f32.xlu0 %v3225
    %v3227 = vpop.xlane.xlu0 %3226
    %v3228 = vmul.f32 %v3224, %v376
    %v3229 = vmul.f32 %v3227, %v376
    %v3230 = vsub.f32 %v3218, %v3228
    %v3231 = vsub.f32 %v3219, %v3229
    %v3232 = vmul.f32 %v3230, %v3230
    %v3233 = vmul.f32 %v3231, %v3231
    %v3234 = vsel %vm368, %v3232, 0.0
    %3235 = vadd.xlane.f32.xlu0 %v3234
    %v3236 = vpop.xlane.xlu0 %3235
    %v3237 = vsel %vm372, %v3233, 0.0
    %3238 = vadd.xlane.f32.xlu0 %v3237
    %v3239 = vpop.xlane.xlu0 %3238
    %v3240 = vmul.f32 %v3236, %v376
    %v3241 = vmul.f32 %v3239, %v376
    %v3242 = vadd.f32 %v3240, 1e-12
    %v3243 = vadd.f32 %v3241, 1e-12
    %v3244 = vrsqrt.pop %v3242
    %v3245 = vrsqrt.pop %v3243
    %v3246 = vmul.f32 %v3230, %v3244
    %v3247 = vmul.f32 %v3231, %v3245
    %v3249 = vlaneseq
    %v3250 = vshrl.u32 %v3249, 7
    %v3251 = vsub.s32 0, %v3250
    %v3252 = vrot.slane %v3220, %v3251
    %v3254 = vmul.f32 %v3246, %v3252
    %v3255 = vmul.f32 %v3247, %v3252
    %v3257 = vlaneseq
    %v3258 = vshrl.u32 %v3257, 7
    %v3259 = vsub.s32 0, %v3258
    %v3260 = vrot.slane %v3221, %v3259
    %v3262 = vadd.f32 %v3254, %v3260
    %v3263 = vadd.f32 %v3255, %v3260
    %v3264 = vld [vmem:[%s55] sm:$0xff]
    %v3265 = vld [vmem:[%s55 + $0x8] sm:$0xff]
    %v3266 = vld [vmem:[%s55 + $0x10] sm:$0xff]
    %v3267 = vld [vmem:[%s55 + $0x18] sm:$0xff]
    %v3268 = vld [vmem:[%s57] sm:$0x1]
    %v3270 = vlaneseq
    %v3271 = vshrl.u32 %v3270, 7
    %v3272 = vsub.s32 0, %v3271
    %v3273 = vrot.slane %v3268, %v3272
    %v3276 = vsel %vm368, %v3262, 0
    %v3279 = vsel %vm368, %v3263, 0
    %3281 = vmatprep.subr.mxu0 0.0
    %3282 = vmatpush1.msra.mxu0 0.0
    %3283 = vmatprep.subr.mxu0 0.0
    %3284 = vmatpush1.msra.mxu0 0.0
    %3285 = vmatprep.subr.mxu0 0.0
    %3286 = vmatpush1.msra.mxu0 0.0
    %3287 = vmatprep.subr.mxu0 0.0
    %3288 = vmatpush1.msra.mxu0 0.0
    %3289 = vmatprep.subr.mxu0 0.0
    %3290 = vmatpush1.msra.mxu0 0.0
    %3291 = vmatprep.subr.mxu0 0.0
    %3292 = vmatpush1.msra.mxu0 0.0
    %3293 = vmatprep.subr.mxu0 0.0
    %3294 = vmatpush1.msra.mxu0 0.0
    %3295 = vmatprep.subr.mxu0 0.0
    %3296 = vmatpush1.msra.mxu0 0.0
    %3297 = vmatprep.subr.mxu0 0.0
    %3298 = vmatpush1.msra.mxu0 0.0
    %3299 = vmatprep.subr.mxu0 0.0
    %3300 = vmatpush1.msra.mxu0 0.0
    %3301 = vmatprep.subr.mxu0 0.0
    %3302 = vmatpush1.msra.mxu0 0.0
    %3303 = vmatprep.subr.mxu0 0.0
    %3304 = vmatpush1.msra.mxu0 0.0
    %3305 = vmatprep.subr.mxu0 0.0
    %3306 = vmatpush1.msra.mxu0 %v3267
    %3307 = vmatprep.subr.mxu0 0.0
    %3308 = vmatpush1.msra.mxu0 %v3266
    %3309 = vmatprep.subr.mxu0 0.0
    %3310 = vmatpush1.msra.mxu0 %v3265
    %3311 = vmatprep.subr.mxu0 0.0
    %3312 = vmatpush1.msra.mxu0 %v3264
    %3313 = vmatprep.subr.mxu0 0.0
    %3314 = vmatpush2.msra.mxu0 0.0
    %3315 = vmatprep.subr.mxu0 0.0
    %3316 = vmatpush2.msra.mxu0 0.0
    %3317 = vmatprep.subr.mxu0 0.0
    %3318 = vmatpush2.msra.mxu0 0.0
    %3319 = vmatprep.subr.mxu0 0.0
    %3320 = vmatpush2.msra.mxu0 0.0
    %3321 = vmatprep.subr.mxu0 0.0
    %3322 = vmatpush2.msra.mxu0 0.0
    %3323 = vmatprep.subr.mxu0 0.0
    %3324 = vmatpush2.msra.mxu0 0.0
    %3325 = vmatprep.subr.mxu0 0.0
    %3326 = vmatpush2.msra.mxu0 0.0
    %3327 = vmatprep.subr.mxu0 0.0
    %3328 = vmatpush2.msra.mxu0 0.0
    %3329 = vmatprep.subr.mxu0 0.0
    %3330 = vmatpush2.msra.mxu0 0.0
    %3331 = vmatprep.subr.mxu0 0.0
    %3332 = vmatpush2.msra.mxu0 0.0
    %3333 = vmatprep.subr.mxu0 0.0
    %3334 = vmatpush2.msra.mxu0 0.0
    %3335 = vmatprep.subr.mxu0 0.0
    %3336 = vmatpush2.msra.mxu0 0.0
    %3337 = vmatprep.subr.mxu0 0.0
    %3338 = vmatpush2.msra.mxu0 0.0
    %3339 = vmatprep.subr.mxu0 0.0
    %3340 = vmatpush2.msra.mxu0 0.0
    %3341 = vmatprep.subr.mxu0 0.0
    %3342 = vmatpush2.msra.mxu0 0.0
    %3343 = vmatprep.subr.mxu0 0.0
    %3344 = vmatpush2.msra.mxu0 0.0
    %3345 = vmatprep.mubr.f32.mxu0 0.0
    %3346 = vmatmul.mubr.f32.gmra.mxu0 %v3276
    %v3347 = vpop.f32.mrf.mxu0
    %v3348 = vadd.f32 %v3273, %v3347
    %v3349 = vpop.f32.mrf.mxu0
    %3350 = vmatprep.mubr.f32.mxu0 0.0
    %3351 = vmatmul.mubr.f32.gmra.mxu0 %v3279
    %v3352 = vpop.f32.mrf.mxu0
    %v3353 = vadd.f32 %v3273, %v3352
    %v3354 = vpop.f32.mrf.mxu0
    %3355 = vdwg.mxu0
    %v3356 = vmul.f32 %v3348, 0.5
    %v3357 = vmul.f32 %v3353, 0.5
    %v3358 = vmul.f32 %v3348, 0.044715
    %v3359 = vmul.f32 %v3353, 0.044715
    %v3360 = vmul.f32 %v3358, %v3348
    %v3361 = vmul.f32 %v3359, %v3353
    %v3362 = vmul.f32 %v3360, %v3348
    %v3363 = vmul.f32 %v3361, %v3353
    %v3364 = vadd.f32 %v3348, %v3362
    %v3365 = vadd.f32 %v3353, %v3363
    %v3366 = vmul.f32 %v3364, 0.7978846
    %v3367 = vmul.f32 %v3365, 0.7978846
    %v3368 = vtanh.pop %v3366
    %v3369 = vtanh.pop %v3367
    %v3370 = vadd.f32 %v3368, 1.0
    %v3371 = vadd.f32 %v3369, 1.0
    %v3372 = vmul.f32 %v3356, %v3370
    %v3373 = vmul.f32 %v3357, %v3371
    %v3374 = vld [vmem:[%s59] sm:$0xff]
    %v3375 = vld [vmem:[%s59 + $0x8] sm:$0xff]
    %v3376 = vld [vmem:[%s59 + $0x10] sm:$0xff]
    %v3377 = vld [vmem:[%s59 + $0x18] sm:$0xff]
    %v3378 = vld [vmem:[%s59 + $0x20] sm:$0xff]
    %v3379 = vld [vmem:[%s59 + $0x28] sm:$0xff]
    %v3380 = vld [vmem:[%s59 + $0x30] sm:$0xff]
    %v3381 = vld [vmem:[%s59 + $0x38] sm:$0xff]
    %v3382 = vld [vmem:[%s59 + $0x40] sm:$0xff]
    %v3383 = vld [vmem:[%s59 + $0x48] sm:$0xff]
    %v3384 = vld [vmem:[%s59 + $0x50] sm:$0xff]
    %v3385 = vld [vmem:[%s59 + $0x58] sm:$0xff]
    %v3386 = vld [vmem:[%s59 + $0x60] sm:$0xff]
    %v3387 = vld [vmem:[%s59 + $0x68] sm:$0xff]
    %v3388 = vld [vmem:[%s59 + $0x70] sm:$0xff]
    %v3389 = vld [vmem:[%s59 + $0x78] sm:$0xff]
    %v3390 = vld [vmem:[%s61] sm:$0x1]
    %v3392 = vlaneseq
    %v3393 = vshrl.u32 %v3392, 7
    %v3394 = vsub.s32 0, %v3393
    %v3395 = vrot.slane %v3390, %v3394
    %3397 = vmatprep.subr.mxu0 0.0
    %3398 = vmatpush1.msra.mxu0 %v3389
    %3399 = vmatprep.subr.mxu0 0.0
    %3400 = vmatpush1.msra.mxu0 %v3388
    %3401 = vmatprep.subr.mxu0 0.0
    %3402 = vmatpush1.msra.mxu0 %v3387
    %3403 = vmatprep.subr.mxu0 0.0
    %3404 = vmatpush1.msra.mxu0 %v3386
    %3405 = vmatprep.subr.mxu0 0.0
    %3406 = vmatpush1.msra.mxu0 %v3385
    %3407 = vmatprep.subr.mxu0 0.0
    %3408 = vmatpush1.msra.mxu0 %v3384
    %3409 = vmatprep.subr.mxu0 0.0
    %3410 = vmatpush1.msra.mxu0 %v3383
    %3411 = vmatprep.subr.mxu0 0.0
    %3412 = vmatpush1.msra.mxu0 %v3382
    %3413 = vmatprep.subr.mxu0 0.0
    %3414 = vmatpush1.msra.mxu0 %v3381
    %3415 = vmatprep.subr.mxu0 0.0
    %3416 = vmatpush1.msra.mxu0 %v3380
    %3417 = vmatprep.subr.mxu0 0.0
    %3418 = vmatpush1.msra.mxu0 %v3379
    %3419 = vmatprep.subr.mxu0 0.0
    %3420 = vmatpush1.msra.mxu0 %v3378
    %3421 = vmatprep.subr.mxu0 0.0
    %3422 = vmatpush1.msra.mxu0 %v3377
    %3423 = vmatprep.subr.mxu0 0.0
    %3424 = vmatpush1.msra.mxu0 %v3376
    %3425 = vmatprep.subr.mxu0 0.0
    %3426 = vmatpush1.msra.mxu0 %v3375
    %3427 = vmatprep.subr.mxu0 0.0
    %3428 = vmatpush1.msra.mxu0 %v3374
    %3429 = vmatprep.subr.mxu0 0.0
    %3430 = vmatpush2.msra.mxu0 0.0
    %3431 = vmatprep.subr.mxu0 0.0
    %3432 = vmatpush2.msra.mxu0 0.0
    %3433 = vmatprep.subr.mxu0 0.0
    %3434 = vmatpush2.msra.mxu0 0.0
    %3435 = vmatprep.subr.mxu0 0.0
    %3436 = vmatpush2.msra.mxu0 0.0
    %3437 = vmatprep.subr.mxu0 0.0
    %3438 = vmatpush2.msra.mxu0 0.0
    %3439 = vmatprep.subr.mxu0 0.0
    %3440 = vmatpush2.msra.mxu0 0.0
    %3441 = vmatprep.subr.mxu0 0.0
    %3442 = vmatpush2.msra.mxu0 0.0
    %3443 = vmatprep.subr.mxu0 0.0
    %3444 = vmatpush2.msra.mxu0 0.0
    %3445 = vmatprep.subr.mxu0 0.0
    %3446 = vmatpush2.msra.mxu0 0.0
    %3447 = vmatprep.subr.mxu0 0.0
    %3448 = vmatpush2.msra.mxu0 0.0
    %3449 = vmatprep.subr.mxu0 0.0
    %3450 = vmatpush2.msra.mxu0 0.0
    %3451 = vmatprep.subr.mxu0 0.0
    %3452 = vmatpush2.msra.mxu0 0.0
    %3453 = vmatprep.subr.mxu0 0.0
    %3454 = vmatpush2.msra.mxu0 0.0
    %3455 = vmatprep.subr.mxu0 0.0
    %3456 = vmatpush2.msra.mxu0 0.0
    %3457 = vmatprep.subr.mxu0 0.0
    %3458 = vmatpush2.msra.mxu0 0.0
    %3459 = vmatprep.subr.mxu0 0.0
    %3460 = vmatpush2.msra.mxu0 0.0
    %3461 = vmatprep.mubr.f32.mxu0 0.0
    %3462 = vmatmul.mubr.f32.gmra.mxu0 %v3372
    %v3463 = vpop.f32.mrf.mxu0
    %v3464 = vadd.f32 %v3395, %v3463
    %v3465 = vpop.f32.mrf.mxu0
    %3466 = vmatprep.mubr.f32.mxu0 0.0
    %3467 = vmatmul.mubr.f32.gmra.mxu0 %v3373
    %v3468 = vpop.f32.mrf.mxu0
    %v3469 = vadd.f32 %v3395, %v3468
    %v3470 = vpop.f32.mrf.mxu0
    %3471 = vdwg.mxu0
    %v3472 = vadd.f32 %v3218, %v3464
    %v3473 = vadd.f32 %v3219, %v3469
    %v3474 = vld [vmem:[%s9] sm:$0x3]
    %v3476 = vsel %vm602, %v3474, 0
    %v3479 = vsel %vm637, %v3473, 0
    %3481 = vmatprep.subr.mxu0 0.0
    %3482 = vmatpush1.msra.mxu0 0.0
    %3483 = vmatprep.subr.mxu0 0.0
    %3484 = vmatpush1.msra.mxu0 0.0
    %3485 = vmatprep.subr.mxu0 0.0
    %3486 = vmatpush1.msra.mxu0 0.0
    %3487 = vmatprep.subr.mxu0 0.0
    %3488 = vmatpush1.msra.mxu0 0.0
    %3489 = vmatprep.subr.mxu0 0.0
    %3490 = vmatpush1.msra.mxu0 0.0
    %3491 = vmatprep.subr.mxu0 0.0
    %3492 = vmatpush1.msra.mxu0 0.0
    %3493 = vmatprep.subr.mxu0 0.0
    %3494 = vmatpush1.msra.mxu0 0.0
    %3495 = vmatprep.subr.mxu0 0.0
    %3496 = vmatpush1.msra.mxu0 0.0
    %3497 = vmatprep.subr.mxu0 0.0
    %3498 = vmatpush1.msra.mxu0 0.0
    %3499 = vmatprep.subr.mxu0 0.0
    %3500 = vmatpush1.msra.mxu0 0.0
    %3501 = vmatprep.subr.mxu0 0.0
    %3502 = vmatpush1.msra.mxu0 0.0
    %3503 = vmatprep.subr.mxu0 0.0
    %3504 = vmatpush1.msra.mxu0 0.0
    %3505 = vmatprep.subr.mxu0 0.0
    %3506 = vmatpush1.msra.mxu0 0.0
    %3507 = vmatprep.subr.mxu0 0.0
    %3508 = vmatpush1.msra.mxu0 0.0
    %3509 = vmatprep.subr.mxu0 0.0
    %3510 = vmatpush1.msra.mxu0 %v3479
    %3511 = vmatprep.subr.mxu0 0.0
    %3512 = vmatpush1.msra.mxu0 %v3472
    %3513 = vmatprep.subr.mxu0 0.0
    %3514 = vmatpush2.msra.mxu0 0.0
    %3515 = vmatprep.subr.mxu0 0.0
    %3516 = vmatpush2.msra.mxu0 0.0
    %3517 = vmatprep.subr.mxu0 0.0
    %3518 = vmatpush2.msra.mxu0 0.0
    %3519 = vmatprep.subr.mxu0 0.0
    %3520 = vmatpush2.msra.mxu0 0.0
    %3521 = vmatprep.subr.mxu0 0.0
    %3522 = vmatpush2.msra.mxu0 0.0
    %3523 = vmatprep.subr.mxu0 0.0
    %3524 = vmatpush2.msra.mxu0 0.0
    %3525 = vmatprep.subr.mxu0 0.0
    %3526 = vmatpush2.msra.mxu0 0.0
    %3527 = vmatprep.subr.mxu0 0.0
    %3528 = vmatpush2.msra.mxu0 0.0
    %3529 = vmatprep.subr.mxu0 0.0
    %3530 = vmatpush2.msra.mxu0 0.0
    %3531 = vmatprep.subr.mxu0 0.0
    %3532 = vmatpush2.msra.mxu0 0.0
    %3533 = vmatprep.subr.mxu0 0.0
    %3534 = vmatpush2.msra.mxu0 0.0
    %3535 = vmatprep.subr.mxu0 0.0
    %3536 = vmatpush2.msra.mxu0 0.0
    %3537 = vmatprep.subr.mxu0 0.0
    %3538 = vmatpush2.msra.mxu0 0.0
    %3539 = vmatprep.subr.mxu0 0.0
    %3540 = vmatpush2.msra.mxu0 0.0
    %3541 = vmatprep.subr.mxu0 0.0
    %3542 = vmatpush2.msra.mxu0 0.0
    %3543 = vmatprep.subr.mxu0 0.0
    %3544 = vmatpush2.msra.mxu0 0.0
    %3545 = vmatprep.mubr.f32.mxu0 0.0
    %3546 = vmatmul.mubr.f32.gmra.mxu0 %v3476
    %v3547 = vpop.f32.mrf.mxu0
    %v3548 = vadd.f32 0.0, %v3547
    %v3549 = vpop.f32.mrf.mxu0
    %3550 = vdwg.mxu0
    %v3551 = vld [vmem:[%s63] sm:$0x1]
    %v3552 = vld [vmem:[%s65] sm:$0x1]
    %v3553 = vsel %vm372, %v3548, 0.0
    %3554 = vadd.xlane.f32.xlu0 %v3553
    %v3555 = vpop.xlane.xlu0 %3554
    %v3556 = vmul.f32 %v3555, %v376
    %v3557 = vsub.f32 %v3548, %v3556
    %v3558 = vmul.f32 %v3557, %v3557
    %v3559 = vsel %vm372, %v3558, 0.0
    %3560 = vadd.xlane.f32.xlu0 %v3559
    %v3561 = vpop.xlane.xlu0 %3560
    %v3562 = vmul.f32 %v3561, %v376
    %v3563 = vadd.f32 %v3562, 1e-12
    %v3564 = vrsqrt.pop %v3563
    %v3565 = vmul.f32 %v3557, %v3564
    %v3567 = vlaneseq
    %v3568 = vshrl.u32 %v3567, 7
    %v3569 = vsub.s32 0, %v3568
    %v3570 = vrot.slane %v3551, %v3569
    %v3572 = vmul.f32 %v3565, %v3570
    %v3574 = vlaneseq
    %v3575 = vshrl.u32 %v3574, 7
    %v3576 = vsub.s32 0, %v3575
    %v3577 = vrot.slane %v3552, %v3576
    %v3579 = vadd.f32 %v3572, %v3577
    %v3580 = vld [vmem:[%s67] sm:$0xff]
    %v3581 = vld [vmem:[%s67 + $0x8] sm:$0xff]
    %v3582 = vld [vmem:[%s67 + $0x10] sm:$0xff]
    %v3583 = vld [vmem:[%s67 + $0x18] sm:$0xff]
    %v3584 = vld [vmem:[%s69] sm:$0x1]
    %v3586 = vlaneseq
    %v3587 = vshrl.u32 %v3586, 7
    %v3588 = vsub.s32 0, %v3587
    %v3589 = vrot.slane %v3584, %v3588
    %v3592 = vsel %vm368, %v3579, 0
    %3594 = vmatprep.subr.mxu0 0.0
    %3595 = vmatpush1.msra.mxu0 0.0
    %3596 = vmatprep.subr.mxu0 0.0
    %3597 = vmatpush1.msra.mxu0 0.0
    %3598 = vmatprep.subr.mxu0 0.0
    %3599 = vmatpush1.msra.mxu0 0.0
    %3600 = vmatprep.subr.mxu0 0.0
    %3601 = vmatpush1.msra.mxu0 0.0
    %3602 = vmatprep.subr.mxu0 0.0
    %3603 = vmatpush1.msra.mxu0 0.0
    %3604 = vmatprep.subr.mxu0 0.0
    %3605 = vmatpush1.msra.mxu0 0.0
    %3606 = vmatprep.subr.mxu0 0.0
    %3607 = vmatpush1.msra.mxu0 0.0
    %3608 = vmatprep.subr.mxu0 0.0
    %3609 = vmatpush1.msra.mxu0 0.0
    %3610 = vmatprep.subr.mxu0 0.0
    %3611 = vmatpush1.msra.mxu0 0.0
    %3612 = vmatprep.subr.mxu0 0.0
    %3613 = vmatpush1.msra.mxu0 0.0
    %3614 = vmatprep.subr.mxu0 0.0
    %3615 = vmatpush1.msra.mxu0 0.0
    %3616 = vmatprep.subr.mxu0 0.0
    %3617 = vmatpush1.msra.mxu0 0.0
    %3618 = vmatprep.subr.mxu0 0.0
    %3619 = vmatpush1.msra.mxu0 %v3583
    %3620 = vmatprep.subr.mxu0 0.0
    %3621 = vmatpush1.msra.mxu0 %v3582
    %3622 = vmatprep.subr.mxu0 0.0
    %3623 = vmatpush1.msra.mxu0 %v3581
    %3624 = vmatprep.subr.mxu0 0.0
    %3625 = vmatpush1.msra.mxu0 %v3580
    %3626 = vmatprep.subr.mxu0 0.0
    %3627 = vmatpush2.msra.mxu0 0.0
    %3628 = vmatprep.subr.mxu0 0.0
    %3629 = vmatpush2.msra.mxu0 0.0
    %3630 = vmatprep.subr.mxu0 0.0
    %3631 = vmatpush2.msra.mxu0 0.0
    %3632 = vmatprep.subr.mxu0 0.0
    %3633 = vmatpush2.msra.mxu0 0.0
    %3634 = vmatprep.subr.mxu0 0.0
    %3635 = vmatpush2.msra.mxu0 0.0
    %3636 = vmatprep.subr.mxu0 0.0
    %3637 = vmatpush2.msra.mxu0 0.0
    %3638 = vmatprep.subr.mxu0 0.0
    %3639 = vmatpush2.msra.mxu0 0.0
    %3640 = vmatprep.subr.mxu0 0.0
    %3641 = vmatpush2.msra.mxu0 0.0
    %3642 = vmatprep.subr.mxu0 0.0
    %3643 = vmatpush2.msra.mxu0 0.0
    %3644 = vmatprep.subr.mxu0 0.0
    %3645 = vmatpush2.msra.mxu0 0.0
    %3646 = vmatprep.subr.mxu0 0.0
    %3647 = vmatpush2.msra.mxu0 0.0
    %3648 = vmatprep.subr.mxu0 0.0
    %3649 = vmatpush2.msra.mxu0 0.0
    %3650 = vmatprep.subr.mxu0 0.0
    %3651 = vmatpush2.msra.mxu0 0.0
    %3652 = vmatprep.subr.mxu0 0.0
    %3653 = vmatpush2.msra.mxu0 0.0
    %3654 = vmatprep.subr.mxu0 0.0
    %3655 = vmatpush2.msra.mxu0 0.0
    %3656 = vmatprep.subr.mxu0 0.0
    %3657 = vmatpush2.msra.mxu0 0.0
    %3658 = vmatprep.mubr.f32.mxu0 0.0
    %3659 = vmatmul.mubr.f32.gmra.mxu0 %v3592
    %v3660 = vpop.f32.mrf.mxu0
    %v3661 = vadd.f32 %v3589, %v3660
    %v3662 = vpop.f32.mrf.mxu0
    %3663 = vdwg.mxu0
    %v3664 = vtanh.pop %v3661
    %v3665 = vld [vmem:[%s71] sm:$0xff]
    %v3666 = vld [vmem:[%s71 + $0x8] sm:$0xff]
    %v3667 = vld [vmem:[%s71 + $0x10] sm:$0xff]
    %v3668 = vld [vmem:[%s71 + $0x18] sm:$0xff]
    %v3669 = vld [vmem:[%s71 + $0x20] sm:$0xff]
    %v3670 = vld [vmem:[%s71 + $0x28] sm:$0xff]
    %v3671 = vld [vmem:[%s71 + $0x30] sm:$0xff]
    %v3672 = vld [vmem:[%s71 + $0x38] sm:$0xff]
    %v3673 = vld [vmem:[%s73] sm:$0x3]
    %v3675 = vlaneseq
    %v3676 = vshrl.u32 %v3675, 7
    %v3677 = vsub.s32 0, %v3676
    %v3678 = vrot.slane %v3673, %v3677
    %v3679 = vlaneseq
    %v3680 = vshrl.u32 %v3679, 7
    %v3681 = vsub.s32 1, %v3680
    %v3682 = vrot.slane %v3673, %v3681
    %v3686 = vsel %vm368, %v3664, 0
    %3688 = vmatprep.subr.mxu0 0.0
    %3689 = vmatpush1.msra.mxu0 0.0
    %3690 = vmatprep.subr.mxu0 0.0
    %3691 = vmatpush1.msra.mxu0 0.0
    %3692 = vmatprep.subr.mxu0 0.0
    %3693 = vmatpush1.msra.mxu0 0.0
    %3694 = vmatprep.subr.mxu0 0.0
    %3695 = vmatpush1.msra.mxu0 0.0
    %3696 = vmatprep.subr.mxu0 0.0
    %3697 = vmatpush1.msra.mxu0 0.0
    %3698 = vmatprep.subr.mxu0 0.0
    %3699 = vmatpush1.msra.mxu0 0.0
    %3700 = vmatprep.subr.mxu0 0.0
    %3701 = vmatpush1.msra.mxu0 0.0
    %3702 = vmatprep.subr.mxu0 0.0
    %3703 = vmatpush1.msra.mxu0 0.0
    %3704 = vmatprep.subr.mxu0 0.0
    %3705 = vmatpush1.msra.mxu0 0.0
    %3706 = vmatprep.subr.mxu0 0.0
    %3707 = vmatpush1.msra.mxu0 0.0
    %3708 = vmatprep.subr.mxu0 0.0
    %3709 = vmatpush1.msra.mxu0 0.0
    %3710 = vmatprep.subr.mxu0 0.0
    %3711 = vmatpush1.msra.mxu0 0.0
    %3712 = vmatprep.subr.mxu0 %v3672
    %3713 = vmatpush1.msra.mxu0 %v3671
    %3714 = vmatprep.subr.mxu0 %v3670
    %3715 = vmatpush1.msra.mxu0 %v3669
    %3716 = vmatprep.subr.mxu0 %v3668
    %3717 = vmatpush1.msra.mxu0 %v3667
    %3718 = vmatprep.subr.mxu0 %v3666
    %3719 = vmatpush1.msra.mxu0 %v3665
    %3720 = vmatprep.subr.mxu0 0.0
    %3721 = vmatpush2.msra.mxu0 0.0
    %3722 = vmatprep.subr.mxu0 0.0
    %3723 = vmatpush2.msra.mxu0 0.0
    %3724 = vmatprep.subr.mxu0 0.0
    %3725 = vmatpush2.msra.mxu0 0.0
    %3726 = vmatprep.subr.mxu0 0.0
    %3727 = vmatpush2.msra.mxu0 0.0
    %3728 = vmatprep.subr.mxu0 0.0
    %3729 = vmatpush2.msra.mxu0 0.0
    %3730 = vmatprep.subr.mxu0 0.0
    %3731 = vmatpush2.msra.mxu0 0.0
    %3732 = vmatprep.subr.mxu0 0.0
    %3733 = vmatpush2.msra.mxu0 0.0
    %3734 = vmatprep.subr.mxu0 0.0
    %3735 = vmatpush2.msra.mxu0 0.0
    %3736 = vmatprep.subr.mxu0 0.0
    %3737 = vmatpush2.msra.mxu0 0.0
    %3738 = vmatprep.subr.mxu0 0.0
    %3739 = vmatpush2.msra.mxu0 0.0
    %3740 = vmatprep.subr.mxu0 0.0
    %3741 = vmatpush2.msra.mxu0 0.0
    %3742 = vmatprep.subr.mxu0 0.0
    %3743 = vmatpush2.msra.mxu0 0.0
    %3744 = vmatprep.subr.mxu0 0.0
    %3745 = vmatpush2.msra.mxu0 0.0
    %3746 = vmatprep.subr.mxu0 0.0
    %3747 = vmatpush2.msra.mxu0 0.0
    %3748 = vmatprep.subr.mxu0 0.0
    %3749 = vmatpush2.msra.mxu0 0.0
    %3750 = vmatprep.subr.mxu0 0.0
    %3751 = vmatpush2.msra.mxu0 0.0
    %3752 = vmatprep.mubr.f32.mxu0 0.0
    %3753 = vmatmul.mubr.f32.gmra.mxu0 %v3686
    %v3754 = vpop.f32.mrf.mxu0
    %v3755 = vadd.f32 %v3678, %v3754
    %v3756 = vpop.f32.mrf.mxu0
    %v3757 = vadd.f32 %v3682, %v3756
    %3758 = vdwg.mxu0
    %vm3759 = vcmp.gt.f32.partialorder %v3755, 0.0
    %vm3760 = vcmp.gt.f32.partialorder %v3757, 0.0
    %v3761 = vmul.f32 %v3755, 0.01
    %v3762 = vmul.f32 %v3757, 0.01
    %v3763 = vsel %vm3759, %v3755, %v3761
    %v3764 = vsel %vm3760, %v3757, %v3762
    %v3765 = vld [vmem:[%s75] sm:$0xff]
    %v3766 = vld [vmem:[%s75 + $0x8] sm:$0xff]
    %v3767 = vld [vmem:[%s75 + $0x10] sm:$0xff]
    %v3768 = vld [vmem:[%s75 + $0x18] sm:$0xff]
    %v3769 = vld [vmem:[%s75 + $0x20] sm:$0xff]
    %v3770 = vld [vmem:[%s75 + $0x28] sm:$0xff]
    %v3771 = vld [vmem:[%s75 + $0x30] sm:$0xff]
    %v3772 = vld [vmem:[%s75 + $0x38] sm:$0xff]
    %v3773 = vld [vmem:[%s75 + $0x40] sm:$0xff]
    %v3774 = vld [vmem:[%s75 + $0x48] sm:$0xff]
    %v3775 = vld [vmem:[%s75 + $0x50] sm:$0xff]
    %v3776 = vld [vmem:[%s75 + $0x58] sm:$0xff]
    %v3777 = vld [vmem:[%s75 + $0x60] sm:$0xff]
    %v3778 = vld [vmem:[%s75 + $0x68] sm:$0xff]
    %v3779 = vld [vmem:[%s75 + $0x70] sm:$0xff]
    %v3780 = vld [vmem:[%s75 + $0x78] sm:$0xff]
    %v3781 = vld [vmem:[%s75 + $0x80] sm:$0xff]
    %v3782 = vld [vmem:[%s75 + $0x88] sm:$0xff]
    %v3783 = vld [vmem:[%s75 + $0x90] sm:$0x3f]
    %v3784 = vld [vmem:[%s77] sm:$0x1]
    %v3786 = vlaneseq
    %v3787 = vshrl.u32 %v3786, 7
    %v3788 = vsub.s32 0, %v3787
    %v3789 = vrot.slane %v3784, %v3788
    %vm3791 = vcmask 179200
    %v3793 = vsel %vm3791, %v3764, 0
    %vm3795 = vcmask 1045504
    %v3797 = vsel %vm3795, %v3783, 0
    %3799 = vmatprep.subr.mxu0 0.0
    %3800 = vmatpush1.msra.mxu0 %v3780
    %3801 = vmatprep.subr.mxu0 0.0
    %3802 = vmatpush1.msra.mxu0 %v3779
    %3803 = vmatprep.subr.mxu0 0.0
    %3804 = vmatpush1.msra.mxu0 %v3778
    %3805 = vmatprep.subr.mxu0 0.0
    %3806 = vmatpush1.msra.mxu0 %v3777
    %3807 = vmatprep.subr.mxu0 0.0
    %3808 = vmatpush1.msra.mxu0 %v3776
    %3809 = vmatprep.subr.mxu0 0.0
    %3810 = vmatpush1.msra.mxu0 %v3775
    %3811 = vmatprep.subr.mxu0 0.0
    %3812 = vmatpush1.msra.mxu0 %v3774
    %3813 = vmatprep.subr.mxu0 0.0
    %3814 = vmatpush1.msra.mxu0 %v3773
    %3815 = vmatprep.subr.mxu0 0.0
    %3816 = vmatpush1.msra.mxu0 %v3772
    %3817 = vmatprep.subr.mxu0 0.0
    %3818 = vmatpush1.msra.mxu0 %v3771
    %3819 = vmatprep.subr.mxu0 0.0
    %3820 = vmatpush1.msra.mxu0 %v3770
    %3821 = vmatprep.subr.mxu0 0.0
    %3822 = vmatpush1.msra.mxu0 %v3769
    %3823 = vmatprep.subr.mxu0 0.0
    %3824 = vmatpush1.msra.mxu0 %v3768
    %3825 = vmatprep.subr.mxu0 0.0
    %3826 = vmatpush1.msra.mxu0 %v3767
    %3827 = vmatprep.subr.mxu0 0.0
    %3828 = vmatpush1.msra.mxu0 %v3766
    %3829 = vmatprep.subr.mxu0 0.0
    %3830 = vmatpush1.msra.mxu0 %v3765
    %3831 = vmatprep.subr.mxu0 0.0
    %3832 = vmatpush2.msra.mxu0 0.0
    %3833 = vmatprep.subr.mxu0 0.0
    %3834 = vmatpush2.msra.mxu0 0.0
    %3835 = vmatprep.subr.mxu0 0.0
    %3836 = vmatpush2.msra.mxu0 0.0
    %3837 = vmatprep.subr.mxu0 0.0
    %3838 = vmatpush2.msra.mxu0 0.0
    %3839 = vmatprep.subr.mxu0 0.0
    %3840 = vmatpush2.msra.mxu0 0.0
    %3841 = vmatprep.subr.mxu0 0.0
    %3842 = vmatpush2.msra.mxu0 0.0
    %3843 = vmatprep.subr.mxu0 0.0
    %3844 = vmatpush2.msra.mxu0 0.0
    %3845 = vmatprep.subr.mxu0 0.0
    %3846 = vmatpush2.msra.mxu0 0.0
    %3847 = vmatprep.subr.mxu0 0.0
    %3848 = vmatpush2.msra.mxu0 0.0
    %3849 = vmatprep.subr.mxu0 0.0
    %3850 = vmatpush2.msra.mxu0 0.0
    %3851 = vmatprep.subr.mxu0 0.0
    %3852 = vmatpush2.msra.mxu0 0.0
    %3853 = vmatprep.subr.mxu0 0.0
    %3854 = vmatpush2.msra.mxu0 0.0
    %3855 = vmatprep.subr.mxu0 0.0
    %3856 = vmatpush2.msra.mxu0 0.0
    %3857 = vmatprep.subr.mxu0 0.0
    %3858 = vmatpush2.msra.mxu0 %v3797
    %3859 = vmatprep.subr.mxu0 0.0
    %3860 = vmatpush2.msra.mxu0 %v3782
    %3861 = vmatprep.subr.mxu0 0.0
    %3862 = vmatpush2.msra.mxu0 %v3781
    %3863 = vmatprep.mubr.f32.mxu0 %v3793
    %3864 = vmatmul.mubr.f32.gmra.mxu0 %v3763
    %v3865 = vpop.f32.mrf.mxu0
    %v3866 = vadd.f32 %v3789, %v3865
    %v3867 = vpop.f32.mrf.mxu0
    %3868 = vdwg.mxu0
    %vm3869 = vcmp.gt.f32.partialorder %v3866, 0.0
    %v3870 = vmul.f32 %v3866, 0.01
    %v3871 = vsel %vm3869, %v3866, %v3870
    %v3872 = vld [vmem:[%s79] sm:$0xff]
    %v3873 = vld [vmem:[%s79 + $0x8] sm:$0xff]
    %v3874 = vld [vmem:[%s79 + $0x10] sm:$0xff]
    %v3875 = vld [vmem:[%s79 + $0x18] sm:$0xff]
    %v3876 = vld [vmem:[%s79 + $0x20] sm:$0xff]
    %v3877 = vld [vmem:[%s79 + $0x28] sm:$0xff]
    %v3878 = vld [vmem:[%s79 + $0x30] sm:$0x3]
    %v3879 = vld [vmem:[%s81] sm:$0x1]
    %v3881 = vlaneseq
    %v3882 = vshrl.u32 %v3881, 7
    %v3883 = vsub.s32 0, %v3882
    %v3884 = vrot.slane %v3879, %v3883
    %vm3886 = vcmask 408576
    %v3888 = vsel %vm3886, %v3871, 0
    %v3891 = vsel %vm637, %v3878, 0
    %3893 = vmatprep.subr.mxu0 0.0
    %3894 = vmatpush1.msra.mxu0 0.0
    %3895 = vmatprep.subr.mxu0 0.0
    %3896 = vmatpush1.msra.mxu0 0.0
    %3897 = vmatprep.subr.mxu0 0.0
    %3898 = vmatpush1.msra.mxu0 0.0
    %3899 = vmatprep.subr.mxu0 0.0
    %3900 = vmatpush1.msra.mxu0 0.0
    %3901 = vmatprep.subr.mxu0 0.0
    %3902 = vmatpush1.msra.mxu0 0.0
    %3903 = vmatprep.subr.mxu0 0.0
    %3904 = vmatpush1.msra.mxu0 0.0
    %3905 = vmatprep.subr.mxu0 0.0
    %3906 = vmatpush1.msra.mxu0 0.0
    %3907 = vmatprep.subr.mxu0 0.0
    %3908 = vmatpush1.msra.mxu0 0.0
    %3909 = vmatprep.subr.mxu0 0.0
    %3910 = vmatpush1.msra.mxu0 0.0
    %3911 = vmatprep.subr.mxu0 0.0
    %3912 = vmatpush1.msra.mxu0 %v3891
    %3913 = vmatprep.subr.mxu0 0.0
    %3914 = vmatpush1.msra.mxu0 %v3877
    %3915 = vmatprep.subr.mxu0 0.0
    %3916 = vmatpush1.msra.mxu0 %v3876
    %3917 = vmatprep.subr.mxu0 0.0
    %3918 = vmatpush1.msra.mxu0 %v3875
    %3919 = vmatprep.subr.mxu0 0.0
    %3920 = vmatpush1.msra.mxu0 %v3874
    %3921 = vmatprep.subr.mxu0 0.0
    %3922 = vmatpush1.msra.mxu0 %v3873
    %3923 = vmatprep.subr.mxu0 0.0
    %3924 = vmatpush1.msra.mxu0 %v3872
    %3925 = vmatprep.subr.mxu0 0.0
    %3926 = vmatpush2.msra.mxu0 0.0
    %3927 = vmatprep.subr.mxu0 0.0
    %3928 = vmatpush2.msra.mxu0 0.0
    %3929 = vmatprep.subr.mxu0 0.0
    %3930 = vmatpush2.msra.mxu0 0.0
    %3931 = vmatprep.subr.mxu0 0.0
    %3932 = vmatpush2.msra.mxu0 0.0
    %3933 = vmatprep.subr.mxu0 0.0
    %3934 = vmatpush2.msra.mxu0 0.0
    %3935 = vmatprep.subr.mxu0 0.0
    %3936 = vmatpush2.msra.mxu0 0.0
    %3937 = vmatprep.subr.mxu0 0.0
    %3938 = vmatpush2.msra.mxu0 0.0
    %3939 = vmatprep.subr.mxu0 0.0
    %3940 = vmatpush2.msra.mxu0 0.0
    %3941 = vmatprep.subr.mxu0 0.0
    %3942 = vmatpush2.msra.mxu0 0.0
    %3943 = vmatprep.subr.mxu0 0.0
    %3944 = vmatpush2.msra.mxu0 0.0
    %3945 = vmatprep.subr.mxu0 0.0
    %3946 = vmatpush2.msra.mxu0 0.0
    %3947 = vmatprep.subr.mxu0 0.0
    %3948 = vmatpush2.msra.mxu0 0.0
    %3949 = vmatprep.subr.mxu0 0.0
    %3950 = vmatpush2.msra.mxu0 0.0
    %3951 = vmatprep.subr.mxu0 0.0
    %3952 = vmatpush2.msra.mxu0 0.0
    %3953 = vmatprep.subr.mxu0 0.0
    %3954 = vmatpush2.msra.mxu0 0.0
    %3955 = vmatprep.subr.mxu0 0.0
    %3956 = vmatpush2.msra.mxu0 0.0
    %3957 = vmatprep.mubr.f32.mxu0 0.0
    %3958 = vmatmul.mubr.f32.gmra.mxu0 %v3888
    %v3959 = vpop.f32.mrf.mxu0
    %v3960 = vadd.f32 %v3884, %v3959
    %v3961 = vpop.f32.mrf.mxu0
    %3962 = vdwg.mxu0
    %3963 = vst.msk [vmem:[#allocation2] sm:$0x3] %vm606, %v3960
    // Predicated region
    $region166: #{tpu_custom_call.1} parent=1 // pred_check
      _
    $region167: #{tpu_custom_call.1} parent=1 // pred_check_branch
      %3965 = sbr.rel (0) target = $region169
    $region168: #{tpu_custom_call.1} parent=1 // pred_region
      %s3967 = ssub.s32 32, 32
      %3968 = vsyncadd [#allocation3], %s3967
      %s3970 = sshll.u32 [#allocation2], 4
      %s3971 = int_to_ptr.vmem [resolvable:$true] %s3970
      %3973 = dma.vmem_to_hbm [thread:$0]  %s3971, 32, %s83, [#allocation3]
    $region169: #{tpu_custom_call.1} parent=1 // pred_fallthru
      _
    // Predicated region
    $region170: #{tpu_custom_call.1} parent=1 // pred_check
      _
    $region171: #{tpu_custom_call.1} parent=1 // pred_check_branch
      %3975 = sbr.rel (0) target = $region173
    $region172: #{tpu_custom_call.1} parent=1 // pred_region
      %3976 = dma.done [#allocation3], 32
    $region173: #{tpu_custom_call.1} parent=1 // pred_fallthru
      _
    %3977 = vsyncpa [#allocation3], 1

</llo_original>
